<compile_context>
chip_gen: v7x
topology: tpu7x:2x2x1
jax: 0.10.0
libtpu: 0.0.40
codegen_flags: <defaults>
</compile_context>

<pallas_src>
import jax
import jax.numpy as jnp
from jax.experimental import pallas as pl
from jax.experimental.pallas import tpu as pltpu

_BN_EPS = 1e-5


def _sigmoid(x):
  # Numerically-stable logistic.  exp and the approximate reciprocal both run
  # on the EUP slot, keeping the f32 divide off the VALU.
  ex = jnp.exp(-jnp.abs(x))
  p = pl.reciprocal(1.0 + ex, approx=True)
  return jnp.where(x >= 0.0, p, ex * p)


def _silu(x):
  return x * _sigmoid(x)


# ----------------------------------------------------------------------------
# Fused MBConv kernel: one grid step == B_TILE images.
# ----------------------------------------------------------------------------
def _make_mbconv_kernel(H, W, k, pad, ce, b_tile, has_shortcut):
  HW = H * W
  Hp, Wp = H + 2 * pad, W + 2 * pad
  inv_hw = 1.0 / HW

  def kernel(x_ref, we_ref, be_ref, wd_ref, bd_ref,
             wr_ref, br_ref, wx_ref, bx_ref, wp_ref, bp_ref,
             o_ref, pad_ref, dse_ref):
    # x_ref:   (B_TILE, H*W, Cin) f32
    # we_ref:  (Cin, Ce)   bf16   expand 1x1  (BN scale pre-folded)
    # wd_ref:  (k*k, Ce)   f32    depthwise   (BN scale pre-folded)
    # wr_ref:  (Ce, Cs)  wx_ref: (Cs, Ce)     squeeze-excite
    # wp_ref:  (Ce, Cout)  bf16   project 1x1 (BN scale pre-folded)
    # b*_ref:  (1, C)      f32    per-channel biases
    # pad_ref: (H+2p, W+2p, Ce) f32  VMEM halo scratch (border kept zero)
    # dse_ref: (B_TILE, H*W, Ce) bf16 SE-scaled depthwise activations

    cin = x_ref.shape[-1]
    x2 = x_ref[...].reshape(b_tile * HW, cin)                 # (B*HW, Cin)

    # --- 1) expand 1x1 conv (+BN) + SiLU: one big MXU matmul (M=B*HW) ------
    h = jnp.dot(x2.astype(jnp.bfloat16), we_ref[...],
                preferred_element_type=jnp.float32) + be_ref[...]
    h = _silu(h)                                              # (B*HW, Ce) f32
    h4 = h.reshape(b_tile, H, W, ce)

    # Loop-invariant loads, hoisted once.
    wd = wd_ref[...]                                          # (k*k, Ce)
    bd = bd_ref[...]
    wr, br = wr_ref[...], br_ref[...]
    wx, bx = wx_ref[...], bx_ref[...]

    # --- 2) depthwise halo: zero ONLY the thin border strips ----------------
    # (interior is fully overwritten per image below; the old full-scratch
    #  zeroing pass is removed from the store-slot critical path).
    if pad > 0:
      zrow = jnp.zeros((pad, Wp, ce), jnp.float32)
      zcol = jnp.zeros((H, pad, ce), jnp.float32)
      pad_ref[0:pad, :, :] = zrow
      pad_ref[H + pad:Hp, :, :] = zrow
      pad_ref[pad:pad + H, 0:pad, :] = zcol
      pad_ref[pad:pad + H, W + pad:Wp, :] = zcol

    for b in range(b_tile):
      # Depthwise kxk conv (+BN) + SiLU: 3-D tap accumulation directly from
      # the halo scratch -- no per-tap (HW, Ce) reshape copies; one reshape
      # after the tap loop.
      pad_ref[pad:pad + H, pad:pad + W, :] = h4[b]
      acc3 = pad_ref[0:H, 0:W, :] * wd[0]
      for t in range(1, k * k):                               # unrolled FMAs
        di, dj = t // k, t % k
        acc3 = acc3 + pad_ref[di:di + H, dj:dj + W, :] * wd[t]
      d = _silu(acc3.reshape(HW, ce) + bd)                    # (HW, Ce) f32

      # --- 3) squeeze-excite (global pool is per image) ---------------------
      s = jnp.sum(d, axis=0, keepdims=True) * inv_hw          # (1, Ce)
      r = _silu(jnp.dot(s, wr, preferred_element_type=jnp.float32) + br)
      e = _sigmoid(jnp.dot(r, wx, preferred_element_type=jnp.float32) + bx)
      dse_ref[b] = (d * e).astype(jnp.bfloat16)

    # --- 4) project 1x1 conv (+BN, no act): one big matmul over all images --
    dse = dse_ref[...].reshape(b_tile * HW, ce)
    y = jnp.dot(dse, wp_ref[...],
                preferred_element_type=jnp.float32) + bp_ref[...]

    # --- 5) shortcut (DropPath == identity at inference) --------------------
    if has_shortcut:
      y = y + x2
    o_ref[...] = y.reshape(b_tile, HW, -1)

  return kernel


# ----------------------------------------------------------------------------
# Wrapper: BN folding + single pallas_call per MBConv block.
# ----------------------------------------------------------------------------
def mbconv_pallas(params, x_nhwc, cfg, images_per_step=None):
  N, H, W, cin = x_nhwc.shape
  k, stride = cfg["kernel_size"], cfg["stride"]
  assert stride == 1, "TODO(synk): stride=2 depthwise not implemented"
  pad = (k - 1) // 2
  ce = cin * cfg["expand_ratio"]
  cs = int(cfg["input_c"] * cfg["se_ratio"])
  cout = cfg["out_c"]
  has_shortcut = (stride == 1 and cin == cout)
  HW = H * W

  if images_per_step is None:
    images_per_step = 2 if N % 2 == 0 else 1
  bt = images_per_step
  assert N % bt == 0, (N, bt)

  we, sce, be = params["expand"]
  wd, scd, bd = params["dw"]
  wr, br = params["se_r"]
  wx, bx = params["se_x"]
  wp, scp, bp = params["project"]

  # Fold BN scale into the conv weights: x @ (W*s) == (x @ W) * s.
  we_f = (we * sce[None, :]).astype(jnp.bfloat16)            # (Cin, Ce)
  wd_f = (wd * scd[None, None, :]).reshape(k * k, ce)        # (k*k, Ce) f32
  wp_f = (wp * scp[None, :]).astype(jnp.bfloat16)            # (Ce, Cout)

  x3 = x_nhwc.reshape(N, HW, cin)
  const2 = lambda n: (0, 0)

  # Explicit scoped-VMEM budget (defaults: 16/32 MiB) with 2x headroom.
  est = (
      2 * bt * HW * (cin + cout) * 4                 # double-buffered x / out
      + 2 * ((cin * ce + ce * cout) * 2              # bf16 matmul weights
             + (k * k * ce + ce * cs + cs * ce) * 4  # f32 dw + SE weights
             + (3 * ce + cs + cout) * 4)             # biases
      + (H + 2 * pad) * (W + 2 * pad) * ce * 4       # halo scratch
      + bt * HW * ce * 2                             # bf16 SE-scaled scratch
      + 4 * bt * HW * ce * 4                         # live f32 intermediates
  )
  vmem_limit = int(min(2 * est + (8 << 20), 100 << 20))

  flops = N * (2 * HW * cin * ce          # expand matmul
               + 2 * k * k * HW * ce      # depthwise FMAs
               + 2 * HW * ce * cout       # project matmul
               + 4 * ce * cs              # SE matmuls
               + 8 * HW * ce)             # activations / SE scale / pooling
  transcendentals = N * (2 * HW * ce + 2 * ce + cs)
  bytes_accessed = (N * HW * (cin + cout) * 4
                    + (cin * ce + ce * cout) * 2
                    + (k * k * ce + ce * cs + cs * ce) * 4)

  out = pl.pallas_call(
      _make_mbconv_kernel(H, W, k, pad, ce, bt, has_shortcut),
      out_shape=jax.ShapeDtypeStruct((N, HW, cout), jnp.float32),
      grid=(N // bt,),
      in_specs=[
          pl.BlockSpec((bt, HW, cin), lambda n: (n, 0, 0)),   # x
          pl.BlockSpec((cin, ce), const2),                    # expand W
          pl.BlockSpec((1, ce), const2),                      # expand bias
          pl.BlockSpec((k * k, ce), const2),                  # depthwise W
          pl.BlockSpec((1, ce), const2),                      # depthwise bias
          pl.BlockSpec((ce, cs), const2),                     # SE reduce W
          pl.BlockSpec((1, cs), const2),                      # SE reduce bias
          pl.BlockSpec((cs, ce), const2),                     # SE expand W
          pl.BlockSpec((1, ce), const2),                      # SE expand bias
          pl.BlockSpec((ce, cout), const2),                   # project W
          pl.BlockSpec((1, cout), const2),                    # project bias
      ],
      out_specs=pl.BlockSpec((bt, HW, cout), lambda n: (n, 0, 0)),
      scratch_shapes=[
          pltpu.VMEM((H + 2 * pad, W + 2 * pad, ce), jnp.float32),
          pltpu.VMEM((bt, HW, ce), jnp.bfloat16),
      ],
      compiler_params=pltpu.CompilerParams(
          dimension_semantics=("parallel",),
          vmem_limit_bytes=vmem_limit),
      cost_estimate=pl.CostEstimate(
          flops=flops, transcendentals=transcendentals,
          bytes_accessed=bytes_accessed),
  )(x3, we_f, be.reshape(1, ce), wd_f, bd.reshape(1, ce),
    wr, br.reshape(1, cs), wx, bx.reshape(1, ce),
    wp_f, bp.reshape(1, cout))
  return out.reshape(N, H, W, cout)


# ----------------------------------------------------------------------------
# Deterministic parameter construction (Conv + BN, BN folded to scale/bias).
# ----------------------------------------------------------------------------
def _bn_fold(key, c):
  k1, k2, k3, k4 = jax.random.split(key, 4)
  gamma = 1.0 + 0.1 * jax.random.normal(k1, (c,), jnp.float32)
  beta = 0.1 * jax.random.normal(k2, (c,), jnp.float32)
  mean = 0.1 * jax.random.normal(k3, (c,), jnp.float32)
  var = jnp.abs(jax.random.normal(k4, (c,), jnp.float32)) + 0.5
  scale = gamma / jnp.sqrt(var + _BN_EPS)
  bias = beta - mean * scale
  return scale, bias


def init_mbconv_params(key, cfg):
  cin, cout = cfg["input_c"], cfg["out_c"]
  ce = cin * cfg["expand_ratio"]
  cs = int(cin * cfg["se_ratio"])
  k = cfg["kernel_size"]
  keys = jax.random.split(key, 10)
  return {
      "expand": (0.08 * jax.random.normal(keys[0], (cin, ce), jnp.float32),
                 *_bn_fold(keys[1], ce)),
      "dw": (0.25 * jax.random.normal(keys[2], (k, k, ce), jnp.float32),
             *_bn_fold(keys[3], ce)),
      "se_r": (0.1 * jax.random.normal(keys[4], (ce, cs), jnp.float32),
               0.05 * jax.random.normal(keys[5], (cs,), jnp.float32)),
      "se_x": (0.1 * jax.random.normal(keys[6], (cs, ce), jnp.float32),
               0.05 * jax.random.normal(keys[7], (ce,), jnp.float32)),
      "project": (0.08 * jax.random.normal(keys[8], (ce, cout), jnp.float32),
                  *_bn_fold(keys[9], cout)),
  }


# ----------------------------------------------------------------------------
# Pure-JAX reference (same math, lax conv) for the correctness check.
# ----------------------------------------------------------------------------
def mbconv_reference(params, x_nhwc, cfg):
  k, stride = cfg["kernel_size"], cfg["stride"]
  pad = (k - 1) // 2
  cin = cfg["input_c"]
  ce = cin * cfg["expand_ratio"]
  has_shortcut = (stride == 1 and cin == cfg["out_c"])
  hi = jax.lax.Precision.HIGHEST

  we, sce, be = params["expand"]
  wd, scd, bd = params["dw"]
  wr, br = params["se_r"]
  wx, bx = params["se_x"]
  wp, scp, bp = params["project"]

  h = jnp.einsum("nhwc,ce->nhwe", x_nhwc, we, precision=hi) * sce + be
  h = jax.nn.silu(h)
  d = jax.lax.conv_general_dilated(
      h, wd[:, :, None, :], window_strides=(stride, stride),
      padding=[(pad, pad), (pad, pad)],
      dimension_numbers=("NHWC", "HWIO", "NHWC"),
      feature_group_count=ce, precision=hi)
  d = jax.nn.silu(d * scd + bd)
  s = d.mean(axis=(1, 2))                                    # (N, Ce)
  r = jax.nn.silu(jnp.dot(s, wr, precision=hi) + br)
  e = jax.nn.sigmoid(jnp.dot(r, wx, precision=hi) + bx)      # (N, Ce)
  d = d * e[:, None, None, :]
  y = jnp.einsum("nhwc,co->nhwo", d, wp, precision=hi) * scp + bp
  if has_shortcut:
    y = y + x_nhwc
  return y


if __name__ == "__main__":
  key = jax.random.PRNGKey(0)
  k_p1, k_p2, k_x = jax.random.split(key, 3)

  # PyTorch-layout input: NCHW [2, 32, 16, 16].
  x_nchw = jax.random.normal(k_x, (2, 32, 16, 16), jnp.float32)
  x_nhwc = jnp.transpose(x_nchw, (0, 2, 3, 1))

  # MBConv(kernel_size=3, input_c=32, out_c=32, expand_ratio=4, stride=1,
  #        se_ratio=0.25, drop_rate=0.1)  -> has_shortcut=True.
  # Uses images_per_step=2 (one grid step processes both images: bigger MXU M).
  cfg1 = dict(kernel_size=3, input_c=32, out_c=32, expand_ratio=4, stride=1,
              se_ratio=0.25, drop_rate=0.1)
  p1 = init_mbconv_params(k_p1, cfg1)
  out1 = mbconv_pallas(p1, x_nhwc, cfg1, images_per_step=2)
  jax.block_until_ready(out1)
  out1_nchw = jnp.transpose(out1, (0, 3, 1, 2))              # back to NCHW
  assert out1_nchw.shape == (2, 32, 16, 16), out1_nchw.shape

  ref1 = mbconv_reference(p1, x_nhwc, cfg1)
  assert bool(jnp.all(jnp.isfinite(out1)))
  assert jnp.allclose(out1, ref1, rtol=2e-2, atol=2e-2), (
      float(jnp.max(jnp.abs(out1 - ref1))))

  # A second MBConv without the shortcut (out_c != input_c), run with one
  # image per grid step (exercises the multi-step parallel-batch path).
  cfg2 = dict(kernel_size=3, input_c=32, out_c=48, expand_ratio=4, stride=1,
              se_ratio=0.25, drop_rate=0.0)
  p2 = init_mbconv_params(k_p2, cfg2)
  out2 = mbconv_pallas(p2, x_nhwc, cfg2, images_per_step=1)
  jax.block_until_ready(out2)
  ref2 = mbconv_reference(p2, x_nhwc, cfg2)
  assert out2.shape == (2, 16, 16, 48), out2.shape
  assert bool(jnp.all(jnp.isfinite(out2)))
  assert jnp.allclose(out2, ref2, rtol=2e-2, atol=2e-2), (
      float(jnp.max(jnp.abs(out2 - ref2))))

  print("KERNEL_OK")
</pallas_src>

<mosaic_0001>
module attributes {stable_mosaic.version = 11 : i64} {
  func.func @kernel(%arg0: i32, %arg1: memref<2x256x32xf32, #tpu.memory_space<vmem>>, %arg2: memref<32x128xbf16, #tpu.memory_space<vmem>>, %arg3: memref<1x128xf32, #tpu.memory_space<vmem>>, %arg4: memref<9x128xf32, #tpu.memory_space<vmem>>, %arg5: memref<1x128xf32, #tpu.memory_space<vmem>>, %arg6: memref<128x8xf32, #tpu.memory_space<vmem>>, %arg7: memref<1x8xf32, #tpu.memory_space<vmem>>, %arg8: memref<8x128xf32, #tpu.memory_space<vmem>>, %arg9: memref<1x128xf32, #tpu.memory_space<vmem>>, %arg10: memref<128x32xbf16, #tpu.memory_space<vmem>>, %arg11: memref<1x32xf32, #tpu.memory_space<vmem>>, %arg12: memref<2x256x32xf32, #tpu.memory_space<vmem>>, %arg13: memref<18x18x128xf32, #tpu.memory_space<vmem>>, %arg14: memref<2x256x128xbf16, #tpu.memory_space<vmem>>) attributes {dimension_semantics = [#tpu.dimension_semantics<parallel>], iteration_bounds = array<i64: 1>, scalar_prefetch = 0 : i64, scratch_operands = 2 : i64, tpu.core_type = #tpu.core_type<tc>, window_params = [{transform_indices = @transform_0, window_bounds = array<i64: 2, 256, 32>}, {pipeline_mode = #tpu.pipeline_mode<synchronous>, transform_indices = @transform_1, window_bounds = array<i64: 32, 128>}, {pipeline_mode = #tpu.pipeline_mode<synchronous>, transform_indices = @transform_2, window_bounds = array<i64: 1, 128>}, {pipeline_mode = #tpu.pipeline_mode<synchronous>, transform_indices = @transform_3, window_bounds = array<i64: 9, 128>}, {pipeline_mode = #tpu.pipeline_mode<synchronous>, transform_indices = @transform_4, window_bounds = array<i64: 1, 128>}, {pipeline_mode = #tpu.pipeline_mode<synchronous>, transform_indices = @transform_5, window_bounds = array<i64: 128, 8>}, {pipeline_mode = #tpu.pipeline_mode<synchronous>, transform_indices = @transform_6, window_bounds = array<i64: 1, 8>}, {pipeline_mode = #tpu.pipeline_mode<synchronous>, transform_indices = @transform_7, window_bounds = array<i64: 8, 128>}, {pipeline_mode = #tpu.pipeline_mode<synchronous>, transform_indices = @transform_8, window_bounds = array<i64: 1, 128>}, {pipeline_mode = #tpu.pipeline_mode<synchronous>, transform_indices = @transform_9, window_bounds = array<i64: 128, 32>}, {pipeline_mode = #tpu.pipeline_mode<synchronous>, transform_indices = @transform_10, window_bounds = array<i64: 1, 32>}, {transform_indices = @transform_11, window_bounds = array<i64: 2, 256, 32>}]} {
    %c0 = arith.constant 0 : index
    %c0_0 = arith.constant 0 : index
    %c0_1 = arith.constant 0 : index
    %0 = vector.load %arg1[%c0, %c0_0, %c0_1] : memref<2x256x32xf32, #tpu.memory_space<vmem>>, vector<2x256x32xf32>
    %1 = vector.shape_cast %0 : vector<2x256x32xf32> to vector<512x32xf32>
    %2 = arith.truncf %1 : vector<512x32xf32> to vector<512x32xbf16>
    %c0_2 = arith.constant 0 : index
    %c0_3 = arith.constant 0 : index
    %3 = vector.load %arg2[%c0_2, %c0_3] : memref<32x128xbf16, #tpu.memory_space<vmem>>, vector<32x128xbf16>
    %cst = arith.constant dense<0.000000e+00> : vector<512x128xf32>
    %4 = tpu.matmul %2, %3, %cst {dimension_numbers = #tpu.dot_dimension_numbers<[1], [0], [0], [1], [0, 0, 1, 1], [], []>} : vector<512x32xbf16>, vector<32x128xbf16>, vector<512x128xf32> -> vector<512x128xf32>
    %c0_4 = arith.constant 0 : index
    %c0_5 = arith.constant 0 : index
    %5 = vector.load %arg3[%c0_4, %c0_5] : memref<1x128xf32, #tpu.memory_space<vmem>>, vector<1x128xf32>
    %6 = vector.broadcast %5 : vector<1x128xf32> to vector<512x128xf32>
    %7 = arith.addf %4, %6 : vector<512x128xf32>
    %8 = math.absf %7 : vector<512x128xf32>
    %cst_6 = arith.constant 0.000000e+00 : f32
    %9 = vector.broadcast %cst_6 : f32 to vector<512x128xf32>
    %10 = arith.subf %9, %8 : vector<512x128xf32>
    %11 = math.exp %10 : vector<512x128xf32>
    %cst_7 = arith.constant 1.000000e+00 : f32
    %12 = vector.broadcast %cst_7 : f32 to vector<512x128xf32>
    %13 = arith.addf %12, %11 : vector<512x128xf32>
    %14 = tpu.reciprocal %13 {approx = true} : vector<512x128xf32> -> vector<512x128xf32>
    %cst_8 = arith.constant 0.000000e+00 : f32
    %15 = vector.broadcast %cst_8 : f32 to vector<512x128xf32>
    %16 = arith.cmpf oge, %7, %15 : vector<512x128xf32>
    %17 = arith.mulf %11, %14 : vector<512x128xf32>
    %18 = arith.select %16, %14, %17 : vector<512x128xi1>, vector<512x128xf32>
    %19 = arith.mulf %7, %18 : vector<512x128xf32>
    %20 = vector.shape_cast %19 : vector<512x128xf32> to vector<2x16x16x128xf32>
    %c0_9 = arith.constant 0 : index
    %c0_10 = arith.constant 0 : index
    %21 = vector.load %arg4[%c0_9, %c0_10] : memref<9x128xf32, #tpu.memory_space<vmem>>, vector<9x128xf32>
    %c0_11 = arith.constant 0 : index
    %c0_12 = arith.constant 0 : index
    %22 = vector.load %arg5[%c0_11, %c0_12] : memref<1x128xf32, #tpu.memory_space<vmem>>, vector<1x128xf32>
    %c0_13 = arith.constant 0 : index
    %c0_14 = arith.constant 0 : index
    %23 = vector.load %arg6[%c0_13, %c0_14] : memref<128x8xf32, #tpu.memory_space<vmem>>, vector<128x8xf32>
    %c0_15 = arith.constant 0 : index
    %c0_16 = arith.constant 0 : index
    %24 = vector.load %arg7[%c0_15, %c0_16] : memref<1x8xf32, #tpu.memory_space<vmem>>, vector<1x8xf32>
    %c0_17 = arith.constant 0 : index
    %c0_18 = arith.constant 0 : index
    %25 = vector.load %arg8[%c0_17, %c0_18] : memref<8x128xf32, #tpu.memory_space<vmem>>, vector<8x128xf32>
    %c0_19 = arith.constant 0 : index
    %c0_20 = arith.constant 0 : index
    %26 = vector.load %arg9[%c0_19, %c0_20] : memref<1x128xf32, #tpu.memory_space<vmem>>, vector<1x128xf32>
    %cst_21 = arith.constant 0.000000e+00 : f32
    %27 = vector.broadcast %cst_21 : f32 to vector<1x18x128xf32>
    %cst_22 = arith.constant 0.000000e+00 : f32
    %28 = vector.broadcast %cst_22 : f32 to vector<16x1x128xf32>
    %c0_23 = arith.constant 0 : index
    %c0_24 = arith.constant 0 : index
    %c0_25 = arith.constant 0 : index
    %29 = vector.load %arg13[%c0_23, %c0_24, %c0_25] : memref<18x18x128xf32, #tpu.memory_space<vmem>>, vector<1x18x128xf32>
    tpu.vector_store %arg13[%c0_23, %c0_24, %c0_25], %27 {strides = array<i32>} : memref<18x18x128xf32, #tpu.memory_space<vmem>>, vector<1x18x128xf32>,
    %c17 = arith.constant 17 : index
    %c0_26 = arith.constant 0 : index
    %c0_27 = arith.constant 0 : index
    %30 = vector.load %arg13[%c17, %c0_26, %c0_27] : memref<18x18x128xf32, #tpu.memory_space<vmem>>, vector<1x18x128xf32>
    tpu.vector_store %arg13[%c17, %c0_26, %c0_27], %27 {strides = array<i32>} : memref<18x18x128xf32, #tpu.memory_space<vmem>>, vector<1x18x128xf32>,
    %c1 = arith.constant 1 : index
    %c0_28 = arith.constant 0 : index
    %c0_29 = arith.constant 0 : index
    %31 = vector.load %arg13[%c1, %c0_28, %c0_29] : memref<18x18x128xf32, #tpu.memory_space<vmem>>, vector<16x1x128xf32>
    tpu.vector_store %arg13[%c1, %c0_28, %c0_29], %28 {strides = array<i32>} : memref<18x18x128xf32, #tpu.memory_space<vmem>>, vector<16x1x128xf32>,
    %c1_30 = arith.constant 1 : index
    %c17_31 = arith.constant 17 : index
    %c0_32 = arith.constant 0 : index
    %32 = vector.load %arg13[%c1_30, %c17_31, %c0_32] : memref<18x18x128xf32, #tpu.memory_space<vmem>>, vector<16x1x128xf32>
    tpu.vector_store %arg13[%c1_30, %c17_31, %c0_32], %28 {strides = array<i32>} : memref<18x18x128xf32, #tpu.memory_space<vmem>>, vector<16x1x128xf32>,
    %33 = vector.extract_strided_slice %20 {offsets = [0, 0, 0, 0], sizes = [1, 16, 16, 128], strides = [1, 1, 1, 1]} : vector<2x16x16x128xf32> to vector<1x16x16x128xf32>
    %34 = vector.shape_cast %33 : vector<1x16x16x128xf32> to vector<16x16x128xf32>
    %c1_33 = arith.constant 1 : index
    %c1_34 = arith.constant 1 : index
    %c0_35 = arith.constant 0 : index
    %35 = vector.load %arg13[%c1_33, %c1_34, %c0_35] : memref<18x18x128xf32, #tpu.memory_space<vmem>>, vector<16x16x128xf32>
    tpu.vector_store %arg13[%c1_33, %c1_34, %c0_35], %34 {strides = array<i32>} : memref<18x18x128xf32, #tpu.memory_space<vmem>>, vector<16x16x128xf32>,
    %c0_36 = arith.constant 0 : index
    %c0_37 = arith.constant 0 : index
    %c0_38 = arith.constant 0 : index
    %36 = vector.load %arg13[%c0_36, %c0_37, %c0_38] : memref<18x18x128xf32, #tpu.memory_space<vmem>>, vector<16x16x128xf32>
    %37 = vector.extract_strided_slice %21 {offsets = [0, 0], sizes = [1, 128], strides = [1, 1]} : vector<9x128xf32> to vector<1x128xf32>
    %38 = vector.shape_cast %37 : vector<1x128xf32> to vector<128xf32>
    %39 = vector.shape_cast %38 : vector<128xf32> to vector<1x1x128xf32>
    %40 = vector.broadcast %39 : vector<1x1x128xf32> to vector<16x16x128xf32>
    %41 = arith.mulf %36, %40 : vector<16x16x128xf32>
    %c0_39 = arith.constant 0 : index
    %c1_40 = arith.constant 1 : index
    %c0_41 = arith.constant 0 : index
    %42 = vector.load %arg13[%c0_39, %c1_40, %c0_41] : memref<18x18x128xf32, #tpu.memory_space<vmem>>, vector<16x16x128xf32>
    %43 = vector.extract_strided_slice %21 {offsets = [1, 0], sizes = [1, 128], strides = [1, 1]} : vector<9x128xf32> to vector<1x128xf32>
    %44 = vector.shape_cast %43 : vector<1x128xf32> to vector<128xf32>
    %45 = vector.shape_cast %44 : vector<128xf32> to vector<1x1x128xf32>
    %46 = vector.broadcast %45 : vector<1x1x128xf32> to vector<16x16x128xf32>
    %47 = arith.mulf %42, %46 : vector<16x16x128xf32>
    %48 = arith.addf %41, %47 : vector<16x16x128xf32>
    %c0_42 = arith.constant 0 : index
    %c2 = arith.constant 2 : index
    %c0_43 = arith.constant 0 : index
    %49 = vector.load %arg13[%c0_42, %c2, %c0_43] : memref<18x18x128xf32, #tpu.memory_space<vmem>>, vector<16x16x128xf32>
    %50 = vector.extract_strided_slice %21 {offsets = [2, 0], sizes = [1, 128], strides = [1, 1]} : vector<9x128xf32> to vector<1x128xf32>
    %51 = vector.shape_cast %50 : vector<1x128xf32> to vector<128xf32>
    %52 = vector.shape_cast %51 : vector<128xf32> to vector<1x1x128xf32>
    %53 = vector.broadcast %52 : vector<1x1x128xf32> to vector<16x16x128xf32>
    %54 = arith.mulf %49, %53 : vector<16x16x128xf32>
    %55 = arith.addf %48, %54 : vector<16x16x128xf32>
    %c1_44 = arith.constant 1 : index
    %c0_45 = arith.constant 0 : index
    %c0_46 = arith.constant 0 : index
    %56 = vector.load %arg13[%c1_44, %c0_45, %c0_46] : memref<18x18x128xf32, #tpu.memory_space<vmem>>, vector<16x16x128xf32>
    %57 = vector.extract_strided_slice %21 {offsets = [3, 0], sizes = [1, 128], strides = [1, 1]} : vector<9x128xf32> to vector<1x128xf32>
    %58 = vector.shape_cast %57 : vector<1x128xf32> to vector<128xf32>
    %59 = vector.shape_cast %58 : vector<128xf32> to vector<1x1x128xf32>
    %60 = vector.broadcast %59 : vector<1x1x128xf32> to vector<16x16x128xf32>
    %61 = arith.mulf %56, %60 : vector<16x16x128xf32>
    %62 = arith.addf %55, %61 : vector<16x16x128xf32>
    %c1_47 = arith.constant 1 : index
    %c1_48 = arith.constant 1 : index
    %c0_49 = arith.constant 0 : index
    %63 = vector.load %arg13[%c1_47, %c1_48, %c0_49] : memref<18x18x128xf32, #tpu.memory_space<vmem>>, vector<16x16x128xf32>
    %64 = vector.extract_strided_slice %21 {offsets = [4, 0], sizes = [1, 128], strides = [1, 1]} : vector<9x128xf32> to vector<1x128xf32>
    %65 = vector.shape_cast %64 : vector<1x128xf32> to vector<128xf32>
    %66 = vector.shape_cast %65 : vector<128xf32> to vector<1x1x128xf32>
    %67 = vector.broadcast %66 : vector<1x1x128xf32> to vector<16x16x128xf32>
    %68 = arith.mulf %63, %67 : vector<16x16x128xf32>
    %69 = arith.addf %62, %68 : vector<16x16x128xf32>
    %c1_50 = arith.constant 1 : index
    %c2_51 = arith.constant 2 : index
    %c0_52 = arith.constant 0 : index
    %70 = vector.load %arg13[%c1_50, %c2_51, %c0_52] : memref<18x18x128xf32, #tpu.memory_space<vmem>>, vector<16x16x128xf32>
    %71 = vector.extract_strided_slice %21 {offsets = [5, 0], sizes = [1, 128], strides = [1, 1]} : vector<9x128xf32> to vector<1x128xf32>
    %72 = vector.shape_cast %71 : vector<1x128xf32> to vector<128xf32>
    %73 = vector.shape_cast %72 : vector<128xf32> to vector<1x1x128xf32>
    %74 = vector.broadcast %73 : vector<1x1x128xf32> to vector<16x16x128xf32>
    %75 = arith.mulf %70, %74 : vector<16x16x128xf32>
    %76 = arith.addf %69, %75 : vector<16x16x128xf32>
    %c2_53 = arith.constant 2 : index
    %c0_54 = arith.constant 0 : index
    %c0_55 = arith.constant 0 : index
    %77 = vector.load %arg13[%c2_53, %c0_54, %c0_55] : memref<18x18x128xf32, #tpu.memory_space<vmem>>, vector<16x16x128xf32>
    %78 = vector.extract_strided_slice %21 {offsets = [6, 0], sizes = [1, 128], strides = [1, 1]} : vector<9x128xf32> to vector<1x128xf32>
    %79 = vector.shape_cast %78 : vector<1x128xf32> to vector<128xf32>
    %80 = vector.shape_cast %79 : vector<128xf32> to vector<1x1x128xf32>
    %81 = vector.broadcast %80 : vector<1x1x128xf32> to vector<16x16x128xf32>
    %82 = arith.mulf %77, %81 : vector<16x16x128xf32>
    %83 = arith.addf %76, %82 : vector<16x16x128xf32>
    %c2_56 = arith.constant 2 : index
    %c1_57 = arith.constant 1 : index
    %c0_58 = arith.constant 0 : index
    %84 = vector.load %arg13[%c2_56, %c1_57, %c0_58] : memref<18x18x128xf32, #tpu.memory_space<vmem>>, vector<16x16x128xf32>
    %85 = vector.extract_strided_slice %21 {offsets = [7, 0], sizes = [1, 128], strides = [1, 1]} : vector<9x128xf32> to vector<1x128xf32>
    %86 = vector.shape_cast %85 : vector<1x128xf32> to vector<128xf32>
    %87 = vector.shape_cast %86 : vector<128xf32> to vector<1x1x128xf32>
    %88 = vector.broadcast %87 : vector<1x1x128xf32> to vector<16x16x128xf32>
    %89 = arith.mulf %84, %88 : vector<16x16x128xf32>
    %90 = arith.addf %83, %89 : vector<16x16x128xf32>
    %c2_59 = arith.constant 2 : index
    %c2_60 = arith.constant 2 : index
    %c0_61 = arith.constant 0 : index
    %91 = vector.load %arg13[%c2_59, %c2_60, %c0_61] : memref<18x18x128xf32, #tpu.memory_space<vmem>>, vector<16x16x128xf32>
    %92 = vector.extract_strided_slice %21 {offsets = [8, 0], sizes = [1, 128], strides = [1, 1]} : vector<9x128xf32> to vector<1x128xf32>
    %93 = vector.shape_cast %92 : vector<1x128xf32> to vector<128xf32>
    %94 = vector.shape_cast %93 : vector<128xf32> to vector<1x1x128xf32>
    %95 = vector.broadcast %94 : vector<1x1x128xf32> to vector<16x16x128xf32>
    %96 = arith.mulf %91, %95 : vector<16x16x128xf32>
    %97 = arith.addf %90, %96 : vector<16x16x128xf32>
    %98 = vector.shape_cast %97 : vector<16x16x128xf32> to vector<256x128xf32>
    %99 = vector.broadcast %22 : vector<1x128xf32> to vector<256x128xf32>
    %100 = arith.addf %98, %99 : vector<256x128xf32>
    %101 = math.absf %100 : vector<256x128xf32>
    %cst_62 = arith.constant 0.000000e+00 : f32
    %102 = vector.broadcast %cst_62 : f32 to vector<256x128xf32>
    %103 = arith.subf %102, %101 : vector<256x128xf32>
    %104 = math.exp %103 : vector<256x128xf32>
    %cst_63 = arith.constant 1.000000e+00 : f32
    %105 = vector.broadcast %cst_63 : f32 to vector<256x128xf32>
    %106 = arith.addf %105, %104 : vector<256x128xf32>
    %107 = tpu.reciprocal %106 {approx = true} : vector<256x128xf32> -> vector<256x128xf32>
    %cst_64 = arith.constant 0.000000e+00 : f32
    %108 = vector.broadcast %cst_64 : f32 to vector<256x128xf32>
    %109 = arith.cmpf oge, %100, %108 : vector<256x128xf32>
    %110 = arith.mulf %104, %107 : vector<256x128xf32>
    %111 = arith.select %109, %107, %110 : vector<256x128xi1>, vector<256x128xf32>
    %112 = arith.mulf %100, %111 : vector<256x128xf32>
    %cst_65 = arith.constant dense<0.000000e+00> : vector<128xf32>
    %113 = vector.multi_reduction <add>, %112, %cst_65 [0] : vector<256x128xf32> to vector<128xf32>
    %114 = vector.shape_cast %113 : vector<128xf32> to vector<1x128xf32>
    %cst_66 = arith.constant 3.906250e-03 : f32
    %115 = vector.broadcast %cst_66 : f32 to vector<1x128xf32>
    %116 = arith.mulf %114, %115 : vector<1x128xf32>
    %cst_67 = arith.constant dense<0.000000e+00> : vector<1x8xf32>
    %117 = tpu.matmul %116, %23, %cst_67 {dimension_numbers = #tpu.dot_dimension_numbers<[1], [0], [0], [1], [0, 0, 1, 1], [], []>} : vector<1x128xf32>, vector<128x8xf32>, vector<1x8xf32> -> vector<1x8xf32>
    %118 = arith.addf %117, %24 : vector<1x8xf32>
    %119 = math.absf %118 : vector<1x8xf32>
    %cst_68 = arith.constant 0.000000e+00 : f32
    %120 = vector.broadcast %cst_68 : f32 to vector<1x8xf32>
    %121 = arith.subf %120, %119 : vector<1x8xf32>
    %122 = math.exp %121 : vector<1x8xf32>
    %cst_69 = arith.constant 1.000000e+00 : f32
    %123 = vector.broadcast %cst_69 : f32 to vector<1x8xf32>
    %124 = arith.addf %123, %122 : vector<1x8xf32>
    %125 = tpu.reciprocal %124 {approx = true} : vector<1x8xf32> -> vector<1x8xf32>
    %cst_70 = arith.constant 0.000000e+00 : f32
    %126 = vector.broadcast %cst_70 : f32 to vector<1x8xf32>
    %127 = arith.cmpf oge, %118, %126 : vector<1x8xf32>
    %128 = arith.mulf %122, %125 : vector<1x8xf32>
    %129 = arith.select %127, %125, %128 : vector<1x8xi1>, vector<1x8xf32>
    %130 = arith.mulf %118, %129 : vector<1x8xf32>
    %cst_71 = arith.constant dense<0.000000e+00> : vector<1x128xf32>
    %131 = tpu.matmul %130, %25, %cst_71 {dimension_numbers = #tpu.dot_dimension_numbers<[1], [0], [0], [1], [0, 0, 1, 1], [], []>} : vector<1x8xf32>, vector<8x128xf32>, vector<1x128xf32> -> vector<1x128xf32>
    %132 = arith.addf %131, %26 : vector<1x128xf32>
    %133 = math.absf %132 : vector<1x128xf32>
    %cst_72 = arith.constant 0.000000e+00 : f32
    %134 = vector.broadcast %cst_72 : f32 to vector<1x128xf32>
    %135 = arith.subf %134, %133 : vector<1x128xf32>
    %136 = math.exp %135 : vector<1x128xf32>
    %cst_73 = arith.constant 1.000000e+00 : f32
    %137 = vector.broadcast %cst_73 : f32 to vector<1x128xf32>
    %138 = arith.addf %137, %136 : vector<1x128xf32>
    %139 = tpu.reciprocal %138 {approx = true} : vector<1x128xf32> -> vector<1x128xf32>
    %cst_74 = arith.constant 0.000000e+00 : f32
    %140 = vector.broadcast %cst_74 : f32 to vector<1x128xf32>
    %141 = arith.cmpf oge, %132, %140 : vector<1x128xf32>
    %142 = arith.mulf %136, %139 : vector<1x128xf32>
    %143 = arith.select %141, %139, %142 : vector<1x128xi1>, vector<1x128xf32>
    %144 = vector.broadcast %143 : vector<1x128xf32> to vector<256x128xf32>
    %145 = arith.mulf %112, %144 : vector<256x128xf32>
    %146 = arith.truncf %145 : vector<256x128xf32> to vector<256x128xbf16>
    %c0_75 = arith.constant 0 : index
    %c0_76 = arith.constant 0 : index
    %c0_77 = arith.constant 0 : index
    %147 = vector.load %arg14[%c0_75, %c0_76, %c0_77] : memref<2x256x128xbf16, #tpu.memory_space<vmem>>, vector<1x256x128xbf16>
    %148 = vector.shape_cast %147 : vector<1x256x128xbf16> to vector<256x128xbf16>
    %149 = vector.shape_cast %146 : vector<256x128xbf16> to vector<1x256x128xbf16>
    tpu.vector_store %arg14[%c0_75, %c0_76, %c0_77], %149 {strides = array<i32>} : memref<2x256x128xbf16, #tpu.memory_space<vmem>>, vector<1x256x128xbf16>,
    %150 = vector.extract_strided_slice %20 {offsets = [1, 0, 0, 0], sizes = [1, 16, 16, 128], strides = [1, 1, 1, 1]} : vector<2x16x16x128xf32> to vector<1x16x16x128xf32>
    %151 = vector.shape_cast %150 : vector<1x16x16x128xf32> to vector<16x16x128xf32>
    %c1_78 = arith.constant 1 : index
    %c1_79 = arith.constant 1 : index
    %c0_80 = arith.constant 0 : index
    %152 = vector.load %arg13[%c1_78, %c1_79, %c0_80] : memref<18x18x128xf32, #tpu.memory_space<vmem>>, vector<16x16x128xf32>
    tpu.vector_store %arg13[%c1_78, %c1_79, %c0_80], %151 {strides = array<i32>} : memref<18x18x128xf32, #tpu.memory_space<vmem>>, vector<16x16x128xf32>,
    %c0_81 = arith.constant 0 : index
    %c0_82 = arith.constant 0 : index
    %c0_83 = arith.constant 0 : index
    %153 = vector.load %arg13[%c0_81, %c0_82, %c0_83] : memref<18x18x128xf32, #tpu.memory_space<vmem>>, vector<16x16x128xf32>
    %154 = vector.extract_strided_slice %21 {offsets = [0, 0], sizes = [1, 128], strides = [1, 1]} : vector<9x128xf32> to vector<1x128xf32>
    %155 = vector.shape_cast %154 : vector<1x128xf32> to vector<128xf32>
    %156 = vector.shape_cast %155 : vector<128xf32> to vector<1x1x128xf32>
    %157 = vector.broadcast %156 : vector<1x1x128xf32> to vector<16x16x128xf32>
    %158 = arith.mulf %153, %157 : vector<16x16x128xf32>
    %c0_84 = arith.constant 0 : index
    %c1_85 = arith.constant 1 : index
    %c0_86 = arith.constant 0 : index
    %159 = vector.load %arg13[%c0_84, %c1_85, %c0_86] : memref<18x18x128xf32, #tpu.memory_space<vmem>>, vector<16x16x128xf32>
    %160 = vector.extract_strided_slice %21 {offsets = [1, 0], sizes = [1, 128], strides = [1, 1]} : vector<9x128xf32> to vector<1x128xf32>
    %161 = vector.shape_cast %160 : vector<1x128xf32> to vector<128xf32>
    %162 = vector.shape_cast %161 : vector<128xf32> to vector<1x1x128xf32>
    %163 = vector.broadcast %162 : vector<1x1x128xf32> to vector<16x16x128xf32>
    %164 = arith.mulf %159, %163 : vector<16x16x128xf32>
    %165 = arith.addf %158, %164 : vector<16x16x128xf32>
    %c0_87 = arith.constant 0 : index
    %c2_88 = arith.constant 2 : index
    %c0_89 = arith.constant 0 : index
    %166 = vector.load %arg13[%c0_87, %c2_88, %c0_89] : memref<18x18x128xf32, #tpu.memory_space<vmem>>, vector<16x16x128xf32>
    %167 = vector.extract_strided_slice %21 {offsets = [2, 0], sizes = [1, 128], strides = [1, 1]} : vector<9x128xf32> to vector<1x128xf32>
    %168 = vector.shape_cast %167 : vector<1x128xf32> to vector<128xf32>
    %169 = vector.shape_cast %168 : vector<128xf32> to vector<1x1x128xf32>
    %170 = vector.broadcast %169 : vector<1x1x128xf32> to vector<16x16x128xf32>
    %171 = arith.mulf %166, %170 : vector<16x16x128xf32>
    %172 = arith.addf %165, %171 : vector<16x16x128xf32>
    %c1_90 = arith.constant 1 : index
    %c0_91 = arith.constant 0 : index
    %c0_92 = arith.constant 0 : index
    %173 = vector.load %arg13[%c1_90, %c0_91, %c0_92] : memref<18x18x128xf32, #tpu.memory_space<vmem>>, vector<16x16x128xf32>
    %174 = vector.extract_strided_slice %21 {offsets = [3, 0], sizes = [1, 128], strides = [1, 1]} : vector<9x128xf32> to vector<1x128xf32>
    %175 = vector.shape_cast %174 : vector<1x128xf32> to vector<128xf32>
    %176 = vector.shape_cast %175 : vector<128xf32> to vector<1x1x128xf32>
    %177 = vector.broadcast %176 : vector<1x1x128xf32> to vector<16x16x128xf32>
    %178 = arith.mulf %173, %177 : vector<16x16x128xf32>
    %179 = arith.addf %172, %178 : vector<16x16x128xf32>
    %c1_93 = arith.constant 1 : index
    %c1_94 = arith.constant 1 : index
    %c0_95 = arith.constant 0 : index
    %180 = vector.load %arg13[%c1_93, %c1_94, %c0_95] : memref<18x18x128xf32, #tpu.memory_space<vmem>>, vector<16x16x128xf32>
    %181 = vector.extract_strided_slice %21 {offsets = [4, 0], sizes = [1, 128], strides = [1, 1]} : vector<9x128xf32> to vector<1x128xf32>
    %182 = vector.shape_cast %181 : vector<1x128xf32> to vector<128xf32>
    %183 = vector.shape_cast %182 : vector<128xf32> to vector<1x1x128xf32>
    %184 = vector.broadcast %183 : vector<1x1x128xf32> to vector<16x16x128xf32>
    %185 = arith.mulf %180, %184 : vector<16x16x128xf32>
    %186 = arith.addf %179, %185 : vector<16x16x128xf32>
    %c1_96 = arith.constant 1 : index
    %c2_97 = arith.constant 2 : index
    %c0_98 = arith.constant 0 : index
    %187 = vector.load %arg13[%c1_96, %c2_97, %c0_98] : memref<18x18x128xf32, #tpu.memory_space<vmem>>, vector<16x16x128xf32>
    %188 = vector.extract_strided_slice %21 {offsets = [5, 0], sizes = [1, 128], strides = [1, 1]} : vector<9x128xf32> to vector<1x128xf32>
    %189 = vector.shape_cast %188 : vector<1x128xf32> to vector<128xf32>
    %190 = vector.shape_cast %189 : vector<128xf32> to vector<1x1x128xf32>
    %191 = vector.broadcast %190 : vector<1x1x128xf32> to vector<16x16x128xf32>
    %192 = arith.mulf %187, %191 : vector<16x16x128xf32>
    %193 = arith.addf %186, %192 : vector<16x16x128xf32>
    %c2_99 = arith.constant 2 : index
    %c0_100 = arith.constant 0 : index
    %c0_101 = arith.constant 0 : index
    %194 = vector.load %arg13[%c2_99, %c0_100, %c0_101] : memref<18x18x128xf32, #tpu.memory_space<vmem>>, vector<16x16x128xf32>
    %195 = vector.extract_strided_slice %21 {offsets = [6, 0], sizes = [1, 128], strides = [1, 1]} : vector<9x128xf32> to vector<1x128xf32>
    %196 = vector.shape_cast %195 : vector<1x128xf32> to vector<128xf32>
    %197 = vector.shape_cast %196 : vector<128xf32> to vector<1x1x128xf32>
    %198 = vector.broadcast %197 : vector<1x1x128xf32> to vector<16x16x128xf32>
    %199 = arith.mulf %194, %198 : vector<16x16x128xf32>
    %200 = arith.addf %193, %199 : vector<16x16x128xf32>
    %c2_102 = arith.constant 2 : index
    %c1_103 = arith.constant 1 : index
    %c0_104 = arith.constant 0 : index
    %201 = vector.load %arg13[%c2_102, %c1_103, %c0_104] : memref<18x18x128xf32, #tpu.memory_space<vmem>>, vector<16x16x128xf32>
    %202 = vector.extract_strided_slice %21 {offsets = [7, 0], sizes = [1, 128], strides = [1, 1]} : vector<9x128xf32> to vector<1x128xf32>
    %203 = vector.shape_cast %202 : vector<1x128xf32> to vector<128xf32>
    %204 = vector.shape_cast %203 : vector<128xf32> to vector<1x1x128xf32>
    %205 = vector.broadcast %204 : vector<1x1x128xf32> to vector<16x16x128xf32>
    %206 = arith.mulf %201, %205 : vector<16x16x128xf32>
    %207 = arith.addf %200, %206 : vector<16x16x128xf32>
    %c2_105 = arith.constant 2 : index
    %c2_106 = arith.constant 2 : index
    %c0_107 = arith.constant 0 : index
    %208 = vector.load %arg13[%c2_105, %c2_106, %c0_107] : memref<18x18x128xf32, #tpu.memory_space<vmem>>, vector<16x16x128xf32>
    %209 = vector.extract_strided_slice %21 {offsets = [8, 0], sizes = [1, 128], strides = [1, 1]} : vector<9x128xf32> to vector<1x128xf32>
    %210 = vector.shape_cast %209 : vector<1x128xf32> to vector<128xf32>
    %211 = vector.shape_cast %210 : vector<128xf32> to vector<1x1x128xf32>
    %212 = vector.broadcast %211 : vector<1x1x128xf32> to vector<16x16x128xf32>
    %213 = arith.mulf %208, %212 : vector<16x16x128xf32>
    %214 = arith.addf %207, %213 : vector<16x16x128xf32>
    %215 = vector.shape_cast %214 : vector<16x16x128xf32> to vector<256x128xf32>
    %216 = vector.broadcast %22 : vector<1x128xf32> to vector<256x128xf32>
    %217 = arith.addf %215, %216 : vector<256x128xf32>
    %218 = math.absf %217 : vector<256x128xf32>
    %cst_108 = arith.constant 0.000000e+00 : f32
    %219 = vector.broadcast %cst_108 : f32 to vector<256x128xf32>
    %220 = arith.subf %219, %218 : vector<256x128xf32>
    %221 = math.exp %220 : vector<256x128xf32>
    %cst_109 = arith.constant 1.000000e+00 : f32
    %222 = vector.broadcast %cst_109 : f32 to vector<256x128xf32>
    %223 = arith.addf %222, %221 : vector<256x128xf32>
    %224 = tpu.reciprocal %223 {approx = true} : vector<256x128xf32> -> vector<256x128xf32>
    %cst_110 = arith.constant 0.000000e+00 : f32
    %225 = vector.broadcast %cst_110 : f32 to vector<256x128xf32>
    %226 = arith.cmpf oge, %217, %225 : vector<256x128xf32>
    %227 = arith.mulf %221, %224 : vector<256x128xf32>
    %228 = arith.select %226, %224, %227 : vector<256x128xi1>, vector<256x128xf32>
    %229 = arith.mulf %217, %228 : vector<256x128xf32>
    %cst_111 = arith.constant dense<0.000000e+00> : vector<128xf32>
    %230 = vector.multi_reduction <add>, %229, %cst_111 [0] : vector<256x128xf32> to vector<128xf32>
    %231 = vector.shape_cast %230 : vector<128xf32> to vector<1x128xf32>
    %cst_112 = arith.constant 3.906250e-03 : f32
    %232 = vector.broadcast %cst_112 : f32 to vector<1x128xf32>
    %233 = arith.mulf %231, %232 : vector<1x128xf32>
    %cst_113 = arith.constant dense<0.000000e+00> : vector<1x8xf32>
    %234 = tpu.matmul %233, %23, %cst_113 {dimension_numbers = #tpu.dot_dimension_numbers<[1], [0], [0], [1], [0, 0, 1, 1], [], []>} : vector<1x128xf32>, vector<128x8xf32>, vector<1x8xf32> -> vector<1x8xf32>
    %235 = arith.addf %234, %24 : vector<1x8xf32>
    %236 = math.absf %235 : vector<1x8xf32>
    %cst_114 = arith.constant 0.000000e+00 : f32
    %237 = vector.broadcast %cst_114 : f32 to vector<1x8xf32>
    %238 = arith.subf %237, %236 : vector<1x8xf32>
    %239 = math.exp %238 : vector<1x8xf32>
    %cst_115 = arith.constant 1.000000e+00 : f32
    %240 = vector.broadcast %cst_115 : f32 to vector<1x8xf32>
    %241 = arith.addf %240, %239 : vector<1x8xf32>
    %242 = tpu.reciprocal %241 {approx = true} : vector<1x8xf32> -> vector<1x8xf32>
    %cst_116 = arith.constant 0.000000e+00 : f32
    %243 = vector.broadcast %cst_116 : f32 to vector<1x8xf32>
    %244 = arith.cmpf oge, %235, %243 : vector<1x8xf32>
    %245 = arith.mulf %239, %242 : vector<1x8xf32>
    %246 = arith.select %244, %242, %245 : vector<1x8xi1>, vector<1x8xf32>
    %247 = arith.mulf %235, %246 : vector<1x8xf32>
    %cst_117 = arith.constant dense<0.000000e+00> : vector<1x128xf32>
    %248 = tpu.matmul %247, %25, %cst_117 {dimension_numbers = #tpu.dot_dimension_numbers<[1], [0], [0], [1], [0, 0, 1, 1], [], []>} : vector<1x8xf32>, vector<8x128xf32>, vector<1x128xf32> -> vector<1x128xf32>
    %249 = arith.addf %248, %26 : vector<1x128xf32>
    %250 = math.absf %249 : vector<1x128xf32>
    %cst_118 = arith.constant 0.000000e+00 : f32
    %251 = vector.broadcast %cst_118 : f32 to vector<1x128xf32>
    %252 = arith.subf %251, %250 : vector<1x128xf32>
    %253 = math.exp %252 : vector<1x128xf32>
    %cst_119 = arith.constant 1.000000e+00 : f32
    %254 = vector.broadcast %cst_119 : f32 to vector<1x128xf32>
    %255 = arith.addf %254, %253 : vector<1x128xf32>
    %256 = tpu.reciprocal %255 {approx = true} : vector<1x128xf32> -> vector<1x128xf32>
    %cst_120 = arith.constant 0.000000e+00 : f32
    %257 = vector.broadcast %cst_120 : f32 to vector<1x128xf32>
    %258 = arith.cmpf oge, %249, %257 : vector<1x128xf32>
    %259 = arith.mulf %253, %256 : vector<1x128xf32>
    %260 = arith.select %258, %256, %259 : vector<1x128xi1>, vector<1x128xf32>
    %261 = vector.broadcast %260 : vector<1x128xf32> to vector<256x128xf32>
    %262 = arith.mulf %229, %261 : vector<256x128xf32>
    %263 = arith.truncf %262 : vector<256x128xf32> to vector<256x128xbf16>
    %c1_121 = arith.constant 1 : index
    %c0_122 = arith.constant 0 : index
    %c0_123 = arith.constant 0 : index
    %264 = vector.load %arg14[%c1_121, %c0_122, %c0_123] : memref<2x256x128xbf16, #tpu.memory_space<vmem>>, vector<1x256x128xbf16>
    %265 = vector.shape_cast %264 : vector<1x256x128xbf16> to vector<256x128xbf16>
    %266 = vector.shape_cast %263 : vector<256x128xbf16> to vector<1x256x128xbf16>
    tpu.vector_store %arg14[%c1_121, %c0_122, %c0_123], %266 {strides = array<i32>} : memref<2x256x128xbf16, #tpu.memory_space<vmem>>, vector<1x256x128xbf16>,
    %c0_124 = arith.constant 0 : index
    %c0_125 = arith.constant 0 : index
    %c0_126 = arith.constant 0 : index
    %267 = vector.load %arg14[%c0_124, %c0_125, %c0_126] : memref<2x256x128xbf16, #tpu.memory_space<vmem>>, vector<2x256x128xbf16>
    %268 = vector.shape_cast %267 : vector<2x256x128xbf16> to vector<512x128xbf16>
    %c0_127 = arith.constant 0 : index
    %c0_128 = arith.constant 0 : index
    %269 = vector.load %arg10[%c0_127, %c0_128] : memref<128x32xbf16, #tpu.memory_space<vmem>>, vector<128x32xbf16>
    %cst_129 = arith.constant dense<0.000000e+00> : vector<512x32xf32>
    %270 = tpu.matmul %268, %269, %cst_129 {dimension_numbers = #tpu.dot_dimension_numbers<[1], [0], [0], [1], [0, 0, 1, 1], [], []>} : vector<512x128xbf16>, vector<128x32xbf16>, vector<512x32xf32> -> vector<512x32xf32>
    %c0_130 = arith.constant 0 : index
    %c0_131 = arith.constant 0 : index
    %271 = vector.load %arg11[%c0_130, %c0_131] : memref<1x32xf32, #tpu.memory_space<vmem>>, vector<1x32xf32>
    %272 = vector.broadcast %271 : vector<1x32xf32> to vector<512x32xf32>
    %273 = arith.addf %270, %272 : vector<512x32xf32>
    %274 = arith.addf %273, %1 : vector<512x32xf32>
    %275 = vector.shape_cast %274 : vector<512x32xf32> to vector<2x256x32xf32>
    %c0_132 = arith.constant 0 : index
    %c0_133 = arith.constant 0 : index
    %c0_134 = arith.constant 0 : index
    %276 = vector.load %arg12[%c0_132, %c0_133, %c0_134] : memref<2x256x32xf32, #tpu.memory_space<vmem>>, vector<2x256x32xf32>
    tpu.vector_store %arg12[%c0_132, %c0_133, %c0_134], %275 {strides = array<i32>} : memref<2x256x32xf32, #tpu.memory_space<vmem>>, vector<2x256x32xf32>,
    return
  }
  func.func @transform_0(%arg0: i32) -> (i32, i32, i32) {
    %c0_i32 = arith.constant 0 : i32
    %c0_i32_0 = arith.constant 0 : i32
    %c0_i32_1 = arith.constant 0 : i32
    return %arg0, %c0_i32, %c0_i32_0 : i32, i32, i32
  }
  func.func @transform_1(%arg0: i32) -> (i32, i32) {
    %c0_i32 = arith.constant 0 : i32
    %c0_i32_0 = arith.constant 0 : i32
    %c0_i32_1 = arith.constant 0 : i32
    return %c0_i32, %c0_i32_0 : i32, i32
  }
  func.func @transform_2(%arg0: i32) -> (i32, i32) {
    %c0_i32 = arith.constant 0 : i32
    %c0_i32_0 = arith.constant 0 : i32
    %c0_i32_1 = arith.constant 0 : i32
    return %c0_i32, %c0_i32_0 : i32, i32
  }
  func.func @transform_3(%arg0: i32) -> (i32, i32) {
    %c0_i32 = arith.constant 0 : i32
    %c0_i32_0 = arith.constant 0 : i32
    %c0_i32_1 = arith.constant 0 : i32
    return %c0_i32, %c0_i32_0 : i32, i32
  }
  func.func @transform_4(%arg0: i32) -> (i32, i32) {
    %c0_i32 = arith.constant 0 : i32
    %c0_i32_0 = arith.constant 0 : i32
    %c0_i32_1 = arith.constant 0 : i32
    return %c0_i32, %c0_i32_0 : i32, i32
  }
  func.func @transform_5(%arg0: i32) -> (i32, i32) {
    %c0_i32 = arith.constant 0 : i32
    %c0_i32_0 = arith.constant 0 : i32
    %c0_i32_1 = arith.constant 0 : i32
    return %c0_i32, %c0_i32_0 : i32, i32
  }
  func.func @transform_6(%arg0: i32) -> (i32, i32) {
    %c0_i32 = arith.constant 0 : i32
    %c0_i32_0 = arith.constant 0 : i32
    %c0_i32_1 = arith.constant 0 : i32
    return %c0_i32, %c0_i32_0 : i32, i32
  }
  func.func @transform_7(%arg0: i32) -> (i32, i32) {
    %c0_i32 = arith.constant 0 : i32
    %c0_i32_0 = arith.constant 0 : i32
    %c0_i32_1 = arith.constant 0 : i32
    return %c0_i32, %c0_i32_0 : i32, i32
  }
  func.func @transform_8(%arg0: i32) -> (i32, i32) {
    %c0_i32 = arith.constant 0 : i32
    %c0_i32_0 = arith.constant 0 : i32
    %c0_i32_1 = arith.constant 0 : i32
    return %c0_i32, %c0_i32_0 : i32, i32
  }
  func.func @transform_9(%arg0: i32) -> (i32, i32) {
    %c0_i32 = arith.constant 0 : i32
    %c0_i32_0 = arith.constant 0 : i32
    %c0_i32_1 = arith.constant 0 : i32
    return %c0_i32, %c0_i32_0 : i32, i32
  }
  func.func @transform_10(%arg0: i32) -> (i32, i32) {
    %c0_i32 = arith.constant 0 : i32
    %c0_i32_0 = arith.constant 0 : i32
    %c0_i32_1 = arith.constant 0 : i32
    return %c0_i32, %c0_i32_0 : i32, i32
  }
  func.func @transform_11(%arg0: i32) -> (i32, i32, i32) {
    %c0_i32 = arith.constant 0 : i32
    %c0_i32_0 = arith.constant 0 : i32
    %c0_i32_1 = arith.constant 0 : i32
    return %arg0, %c0_i32, %c0_i32_0 : i32, i32, i32
  }
}

</mosaic_0001>

<llo_original>
// kernel: tpu_custom_call.1
$region0: #{tpu_custom_call.1}
  #allocation0 [shape = 'u32[]', space=smem, size = 0x4, offset = 0x4, fixed_abs, tag = 'smem constant byte address 0x4 - core index']
  #allocation1 [shape = 'u32[144,128]{1,0:T(1,128)}', space=vmem, size = 0x12000, scoped, tag = 'internal scratch']
  #allocation2 [shape = 'f32[18,18,128]{2,1,0:T(8,128)}', space=vmem, size = 0x36000, scoped, tag = 'scratch operand']
  #allocation3 [shape = 'bf16[2,256,128]{2,1,0:T(16,128)(2,1)}', space=vmem, size = 0x20000, scoped, tag = 'scratch operand']
  %s0 = inlined_call_operand.vmem [shape: f32[2,256,32], index: 0, kind: input, shape index: {}]
  %s1 = inlined_call_operand.vmem [shape: bf16[32,128], index: 1, kind: input, shape index: {}]
  %s2 = inlined_call_operand.vmem [shape: f32[1,128], index: 2, kind: input, shape index: {}]
  %s3 = inlined_call_operand.vmem [shape: f32[9,128], index: 3, kind: input, shape index: {}]
  %s4 = inlined_call_operand.vmem [shape: f32[1,128], index: 4, kind: input, shape index: {}]
  %s5 = inlined_call_operand.vmem [shape: f32[128,8], index: 5, kind: input, shape index: {}]
  %s6 = inlined_call_operand.vmem [shape: f32[1,8], index: 6, kind: input, shape index: {}]
  %s7 = inlined_call_operand.vmem [shape: f32[8,128], index: 7, kind: input, shape index: {}]
  %s8 = inlined_call_operand.vmem [shape: f32[1,128], index: 8, kind: input, shape index: {}]
  %s9 = inlined_call_operand.vmem [shape: bf16[128,32], index: 9, kind: input, shape index: {}]
  %s10 = inlined_call_operand.vmem [shape: f32[1,32], index: 10, kind: input, shape index: {}]
  %s11 = inlined_call_operand.vmem [shape: f32[2,256,32], index: 11, kind: output, shape index: {}]
  %s12 = sld [smem:[#allocation0]]
  $region54: #{tpu_custom_call.1} parent=0
    _
  %s14 = ssub.s32 1, %s12
  %s15 = scalar_select 0, %s14, %s12
  // Predicated region
  $region2: #{tpu_custom_call.1} parent=0 // pred_check
    _
  $region3: #{tpu_custom_call.1} parent=0 // pred_check_branch
    %17 = sbr.rel (0) target = $region5
  $region4: #{tpu_custom_call.1} parent=0 // pred_region
    _
  $region5: #{tpu_custom_call.1} parent=0 // pred_fallthru
    _
  // Predicated region
  $region6: #{tpu_custom_call.1} parent=0 // pred_check
    _
  $region7: #{tpu_custom_call.1} parent=0 // pred_check_branch
    %19 = sbr.rel (0) target = $region9
  $region8: #{tpu_custom_call.1} parent=0 // pred_region
    _
  $region9: #{tpu_custom_call.1} parent=0 // pred_fallthru
    _
  // Predicated region
  $region10: #{tpu_custom_call.1} parent=0 // pred_check
    _
  $region11: #{tpu_custom_call.1} parent=0 // pred_check_branch
    %21 = sbr.rel (0) target = $region13
  $region12: #{tpu_custom_call.1} parent=0 // pred_region
    _
  $region13: #{tpu_custom_call.1} parent=0 // pred_fallthru
    _
  // Predicated region
  $region14: #{tpu_custom_call.1} parent=0 // pred_check
    _
  $region15: #{tpu_custom_call.1} parent=0 // pred_check_branch
    %23 = sbr.rel (0) target = $region17
  $region16: #{tpu_custom_call.1} parent=0 // pred_region
    _
  $region17: #{tpu_custom_call.1} parent=0 // pred_fallthru
    _
  // Predicated region
  $region18: #{tpu_custom_call.1} parent=0 // pred_check
    _
  $region19: #{tpu_custom_call.1} parent=0 // pred_check_branch
    %25 = sbr.rel (0) target = $region21
  $region20: #{tpu_custom_call.1} parent=0 // pred_region
    _
  $region21: #{tpu_custom_call.1} parent=0 // pred_fallthru
    _
  // Predicated region
  $region22: #{tpu_custom_call.1} parent=0 // pred_check
    _
  $region23: #{tpu_custom_call.1} parent=0 // pred_check_branch
    %27 = sbr.rel (0) target = $region25
  $region24: #{tpu_custom_call.1} parent=0 // pred_region
    _
  $region25: #{tpu_custom_call.1} parent=0 // pred_fallthru
    _
  // Predicated region
  $region26: #{tpu_custom_call.1} parent=0 // pred_check
    _
  $region27: #{tpu_custom_call.1} parent=0 // pred_check_branch
    %29 = sbr.rel (0) target = $region29
  $region28: #{tpu_custom_call.1} parent=0 // pred_region
    _
  $region29: #{tpu_custom_call.1} parent=0 // pred_fallthru
    _
  // Predicated region
  $region30: #{tpu_custom_call.1} parent=0 // pred_check
    _
  $region31: #{tpu_custom_call.1} parent=0 // pred_check_branch
    %31 = sbr.rel (0) target = $region33
  $region32: #{tpu_custom_call.1} parent=0 // pred_region
    _
  $region33: #{tpu_custom_call.1} parent=0 // pred_fallthru
    _
  // Predicated region
  $region34: #{tpu_custom_call.1} parent=0 // pred_check
    _
  $region35: #{tpu_custom_call.1} parent=0 // pred_check_branch
    %33 = sbr.rel (0) target = $region37
  $region36: #{tpu_custom_call.1} parent=0 // pred_region
    _
  $region37: #{tpu_custom_call.1} parent=0 // pred_fallthru
    _
  // Predicated region
  $region38: #{tpu_custom_call.1} parent=0 // pred_check
    _
  $region39: #{tpu_custom_call.1} parent=0 // pred_check_branch
    %35 = sbr.rel (0) target = $region41
  $region40: #{tpu_custom_call.1} parent=0 // pred_region
    _
  $region41: #{tpu_custom_call.1} parent=0 // pred_fallthru
    _
  // Predicated region
  $region42: #{tpu_custom_call.1} parent=0 // pred_check
    _
  $region43: #{tpu_custom_call.1} parent=0 // pred_check_branch
    %37 = sbr.rel (0) target = $region45
  $region44: #{tpu_custom_call.1} parent=0 // pred_region
    _
  $region45: #{tpu_custom_call.1} parent=0 // pred_fallthru
    _
  %v39 = vld [vmem:[%s0] sm:$0xff]
  %v40 = vld [vmem:[%s0 + $0x8] sm:$0xff]
  %v41 = vld [vmem:[%s0 + $0x10] sm:$0xff]
  %v42 = vld [vmem:[%s0 + $0x18] sm:$0xff]
  %v43 = vld [vmem:[%s0 + $0x20] sm:$0xff]
  %v44 = vld [vmem:[%s0 + $0x28] sm:$0xff]
  %v45 = vld [vmem:[%s0 + $0x30] sm:$0xff]
  %v46 = vld [vmem:[%s0 + $0x38] sm:$0xff]
  %v47 = vld [vmem:[%s0 + $0x40] sm:$0xff]
  %v48 = vld [vmem:[%s0 + $0x48] sm:$0xff]
  %v49 = vld [vmem:[%s0 + $0x50] sm:$0xff]
  %v50 = vld [vmem:[%s0 + $0x58] sm:$0xff]
  %v51 = vld [vmem:[%s0 + $0x60] sm:$0xff]
  %v52 = vld [vmem:[%s0 + $0x68] sm:$0xff]
  %v53 = vld [vmem:[%s0 + $0x70] sm:$0xff]
  %v54 = vld [vmem:[%s0 + $0x78] sm:$0xff]
  %v55 = vld [vmem:[%s0 + $0x80] sm:$0xff]
  %v56 = vld [vmem:[%s0 + $0x88] sm:$0xff]
  %v57 = vld [vmem:[%s0 + $0x90] sm:$0xff]
  %v58 = vld [vmem:[%s0 + $0x98] sm:$0xff]
  %v59 = vld [vmem:[%s0 + $0xa0] sm:$0xff]
  %v60 = vld [vmem:[%s0 + $0xa8] sm:$0xff]
  %v61 = vld [vmem:[%s0 + $0xb0] sm:$0xff]
  %v62 = vld [vmem:[%s0 + $0xb8] sm:$0xff]
  %v63 = vld [vmem:[%s0 + $0xc0] sm:$0xff]
  %v64 = vld [vmem:[%s0 + $0xc8] sm:$0xff]
  %v65 = vld [vmem:[%s0 + $0xd0] sm:$0xff]
  %v66 = vld [vmem:[%s0 + $0xd8] sm:$0xff]
  %v67 = vld [vmem:[%s0 + $0xe0] sm:$0xff]
  %v68 = vld [vmem:[%s0 + $0xe8] sm:$0xff]
  %v69 = vld [vmem:[%s0 + $0xf0] sm:$0xff]
  %v70 = vld [vmem:[%s0 + $0xf8] sm:$0xff]
  %v71 = vld [vmem:[%s0 + $0x100] sm:$0xff]
  %v72 = vld [vmem:[%s0 + $0x108] sm:$0xff]
  %v73 = vld [vmem:[%s0 + $0x110] sm:$0xff]
  %v74 = vld [vmem:[%s0 + $0x118] sm:$0xff]
  %v75 = vld [vmem:[%s0 + $0x120] sm:$0xff]
  %v76 = vld [vmem:[%s0 + $0x128] sm:$0xff]
  %v77 = vld [vmem:[%s0 + $0x130] sm:$0xff]
  %v78 = vld [vmem:[%s0 + $0x138] sm:$0xff]
  %v79 = vld [vmem:[%s0 + $0x140] sm:$0xff]
  %v80 = vld [vmem:[%s0 + $0x148] sm:$0xff]
  %v81 = vld [vmem:[%s0 + $0x150] sm:$0xff]
  %v82 = vld [vmem:[%s0 + $0x158] sm:$0xff]
  %v83 = vld [vmem:[%s0 + $0x160] sm:$0xff]
  %v84 = vld [vmem:[%s0 + $0x168] sm:$0xff]
  %v85 = vld [vmem:[%s0 + $0x170] sm:$0xff]
  %v86 = vld [vmem:[%s0 + $0x178] sm:$0xff]
  %v87 = vld [vmem:[%s0 + $0x180] sm:$0xff]
  %v88 = vld [vmem:[%s0 + $0x188] sm:$0xff]
  %v89 = vld [vmem:[%s0 + $0x190] sm:$0xff]
  %v90 = vld [vmem:[%s0 + $0x198] sm:$0xff]
  %v91 = vld [vmem:[%s0 + $0x1a0] sm:$0xff]
  %v92 = vld [vmem:[%s0 + $0x1a8] sm:$0xff]
  %v93 = vld [vmem:[%s0 + $0x1b0] sm:$0xff]
  %v94 = vld [vmem:[%s0 + $0x1b8] sm:$0xff]
  %v95 = vld [vmem:[%s0 + $0x1c0] sm:$0xff]
  %v96 = vld [vmem:[%s0 + $0x1c8] sm:$0xff]
  %v97 = vld [vmem:[%s0 + $0x1d0] sm:$0xff]
  %v98 = vld [vmem:[%s0 + $0x1d8] sm:$0xff]
  %v99 = vld [vmem:[%s0 + $0x1e0] sm:$0xff]
  %v100 = vld [vmem:[%s0 + $0x1e8] sm:$0xff]
  %v101 = vld [vmem:[%s0 + $0x1f0] sm:$0xff]
  %v102 = vld [vmem:[%s0 + $0x1f8] sm:$0xff]
  %v103 = vpack.c.bf16 %v40, %v39
  %v104 = vpack.c.bf16 %v42, %v41
  %v105 = vpack.c.bf16 %v44, %v43
  %v106 = vpack.c.bf16 %v46, %v45
  %v107 = vpack.c.bf16 %v48, %v47
  %v108 = vpack.c.bf16 %v50, %v49
  %v109 = vpack.c.bf16 %v52, %v51
  %v110 = vpack.c.bf16 %v54, %v53
  %v111 = vpack.c.bf16 %v56, %v55
  %v112 = vpack.c.bf16 %v58, %v57
  %v113 = vpack.c.bf16 %v60, %v59
  %v114 = vpack.c.bf16 %v62, %v61
  %v115 = vpack.c.bf16 %v64, %v63
  %v116 = vpack.c.bf16 %v66, %v65
  %v117 = vpack.c.bf16 %v68, %v67
  %v118 = vpack.c.bf16 %v70, %v69
  %v119 = vpack.c.bf16 %v72, %v71
  %v120 = vpack.c.bf16 %v74, %v73
  %v121 = vpack.c.bf16 %v76, %v75
  %v122 = vpack.c.bf16 %v78, %v77
  %v123 = vpack.c.bf16 %v80, %v79
  %v124 = vpack.c.bf16 %v82, %v81
  %v125 = vpack.c.bf16 %v84, %v83
  %v126 = vpack.c.bf16 %v86, %v85
  %v127 = vpack.c.bf16 %v88, %v87
  %v128 = vpack.c.bf16 %v90, %v89
  %v129 = vpack.c.bf16 %v92, %v91
  %v130 = vpack.c.bf16 %v94, %v93
  %v131 = vpack.c.bf16 %v96, %v95
  %v132 = vpack.c.bf16 %v98, %v97
  %v133 = vpack.c.bf16 %v100, %v99
  %v134 = vpack.c.bf16 %v102, %v101
  %v135 = vld [vmem:[%s1] sm:$0xf]
  %v136 = vld [vmem:[%s1 + $0x4] sm:$0xf]
  %v137 = vld [vmem:[%s1 + $0x8] sm:$0xf]
  %v138 = vld [vmem:[%s1 + $0xc] sm:$0xf]
  %v139 = vld [vmem:[%s2] sm:$0x1]
  %v141 = vlaneseq
  %v142 = vshrl.u32 %v141, 7
  %v143 = vsub.s32 0, %v142
  %v144 = vrot.slane %v139, %v143
  %v150 = vunpack.c.l.b16 %v135
  %v151 = vunpack.c.l.b16 %v136
  %v152 = vunpack.c.l.b16 %v137
  %v153 = vunpack.c.l.b16 %v138
  %v154 = vpack.c.b16 %v151, %v150
  %v155 = vpack.c.b16 %v153, %v152
  %vm158 = vcmask 261120
  %v160 = vsel %vm158, %v103, 0
  %v163 = vsel %vm158, %v104, 0
  %v166 = vsel %vm158, %v105, 0
  %v169 = vsel %vm158, %v106, 0
  %v172 = vsel %vm158, %v107, 0
  %v175 = vsel %vm158, %v108, 0
  %v178 = vsel %vm158, %v109, 0
  %v181 = vsel %vm158, %v110, 0
  %v184 = vsel %vm158, %v111, 0
  %v187 = vsel %vm158, %v112, 0
  %v190 = vsel %vm158, %v113, 0
  %v193 = vsel %vm158, %v114, 0
  %v196 = vsel %vm158, %v115, 0
  %v199 = vsel %vm158, %v116, 0
  %v202 = vsel %vm158, %v117, 0
  %v205 = vsel %vm158, %v118, 0
  %v208 = vsel %vm158, %v119, 0
  %v211 = vsel %vm158, %v120, 0
  %v214 = vsel %vm158, %v121, 0
  %v217 = vsel %vm158, %v122, 0
  %v220 = vsel %vm158, %v123, 0
  %v223 = vsel %vm158, %v124, 0
  %v226 = vsel %vm158, %v125, 0
  %v229 = vsel %vm158, %v126, 0
  %v232 = vsel %vm158, %v127, 0
  %v235 = vsel %vm158, %v128, 0
  %v238 = vsel %vm158, %v129, 0
  %v241 = vsel %vm158, %v130, 0
  %v244 = vsel %vm158, %v131, 0
  %v247 = vsel %vm158, %v132, 0
  %v250 = vsel %vm158, %v133, 0
  %v253 = vsel %vm158, %v134, 0
  %255 = vmatprep.subr.bf16.mxu0 0
  %256 = vmatpush1.bf16.msra.mxu0 %v154
  %257 = vmatprep.subr.bf16.mxu0 0
  %258 = vmatpush1.bf16.msra.mxu0 %v155
  %259 = vmatprep.subr.bf16.mxu0 0
  %260 = vmatpush1.bf16.msra.mxu0 0
  %261 = vmatprep.subr.bf16.mxu0 0
  %262 = vmatpush1.bf16.msra.mxu0 0
  %263 = vmatprep.subr.bf16.mxu0 0
  %264 = vmatpush1.bf16.msra.mxu0 0
  %265 = vmatprep.subr.bf16.mxu0 0
  %266 = vmatpush1.bf16.msra.mxu0 0
  %267 = vmatprep.subr.bf16.mxu0 0
  %268 = vmatpush1.bf16.msra.mxu0 0
  %269 = vmatprep.subr.bf16.mxu0 0
  %270 = vmatpush1.bf16.msra.mxu0 0
  %271 = vmatprep.subr.bf16.mxu0 0
  %272 = vmatpush1.bf16.msra.mxu0 0
  %273 = vmatprep.subr.bf16.mxu0 0
  %274 = vmatpush1.bf16.msra.mxu0 0
  %275 = vmatprep.subr.bf16.mxu0 0
  %276 = vmatpush1.bf16.msra.mxu0 0
  %277 = vmatprep.subr.bf16.mxu0 0
  %278 = vmatpush1.bf16.msra.mxu0 0
  %279 = vmatprep.subr.bf16.mxu0 0
  %280 = vmatpush1.bf16.msra.mxu0 0
  %281 = vmatprep.subr.bf16.mxu0 0
  %282 = vmatpush1.bf16.msra.mxu0 0
  %283 = vmatprep.subr.bf16.mxu0 0
  %284 = vmatpush1.bf16.msra.mxu0 0
  %285 = vmatprep.subr.bf16.mxu0 0
  %286 = vmatpush1.bf16.msra.mxu0 0
  %287 = vmatprep.mubr.bf16.mxu0 0
  %288 = vmatmul.mubr.bf16.gmra.mrb[0].mxu0 %v160
  %v289 = vpop.f32.mrb[0].mxu0
  %v290 = vadd.f32 %v144, %v289
  %v291 = vpop.f32.mrb[0].mxu0
  %v292 = vpop.f32.mrb[0].mxu0
  %v293 = vadd.f32 %v144, %v292
  %v294 = vpop.f32.mrb[0].mxu0
  %295 = vmatprep.mubr.bf16.mxu0 0
  %296 = vmatmul.mubr.bf16.gmra.mrb[0].mxu0 %v163
  %v297 = vpop.f32.mrb[0].mxu0
  %v298 = vadd.f32 %v144, %v297
  %v299 = vpop.f32.mrb[0].mxu0
  %v300 = vpop.f32.mrb[0].mxu0
  %v301 = vadd.f32 %v144, %v300
  %v302 = vpop.f32.mrb[0].mxu0
  %303 = vmatprep.mubr.bf16.mxu0 0
  %304 = vmatmul.mubr.bf16.gmra.mrb[0].mxu0 %v166
  %v305 = vpop.f32.mrb[0].mxu0
  %v306 = vadd.f32 %v144, %v305
  %v307 = vpop.f32.mrb[0].mxu0
  %v308 = vpop.f32.mrb[0].mxu0
  %v309 = vadd.f32 %v144, %v308
  %v310 = vpop.f32.mrb[0].mxu0
  %311 = vmatprep.mubr.bf16.mxu0 0
  %312 = vmatmul.mubr.bf16.gmra.mrb[0].mxu0 %v169
  %v313 = vpop.f32.mrb[0].mxu0
  %v314 = vadd.f32 %v144, %v313
  %v315 = vpop.f32.mrb[0].mxu0
  %v316 = vpop.f32.mrb[0].mxu0
  %v317 = vadd.f32 %v144, %v316
  %v318 = vpop.f32.mrb[0].mxu0
  %319 = vmatprep.mubr.bf16.mxu0 0
  %320 = vmatmul.mubr.bf16.gmra.mrb[0].mxu0 %v172
  %v321 = vpop.f32.mrb[0].mxu0
  %v322 = vadd.f32 %v144, %v321
  %v323 = vpop.f32.mrb[0].mxu0
  %v324 = vpop.f32.mrb[0].mxu0
  %v325 = vadd.f32 %v144, %v324
  %v326 = vpop.f32.mrb[0].mxu0
  %327 = vmatprep.mubr.bf16.mxu0 0
  %328 = vmatmul.mubr.bf16.gmra.mrb[0].mxu0 %v175
  %v329 = vpop.f32.mrb[0].mxu0
  %v330 = vadd.f32 %v144, %v329
  %v331 = vpop.f32.mrb[0].mxu0
  %v332 = vpop.f32.mrb[0].mxu0
  %v333 = vadd.f32 %v144, %v332
  %v334 = vpop.f32.mrb[0].mxu0
  %335 = vmatprep.mubr.bf16.mxu0 0
  %336 = vmatmul.mubr.bf16.gmra.mrb[0].mxu0 %v178
  %v337 = vpop.f32.mrb[0].mxu0
  %v338 = vadd.f32 %v144, %v337
  %v339 = vpop.f32.mrb[0].mxu0
  %v340 = vpop.f32.mrb[0].mxu0
  %v341 = vadd.f32 %v144, %v340
  %v342 = vpop.f32.mrb[0].mxu0
  %343 = vmatprep.mubr.bf16.mxu0 0
  %344 = vmatmul.mubr.bf16.gmra.mrb[0].mxu0 %v181
  %v345 = vpop.f32.mrb[0].mxu0
  %v346 = vadd.f32 %v144, %v345
  %v347 = vpop.f32.mrb[0].mxu0
  %v348 = vpop.f32.mrb[0].mxu0
  %v349 = vadd.f32 %v144, %v348
  %v350 = vpop.f32.mrb[0].mxu0
  %351 = vmatprep.mubr.bf16.mxu0 0
  %352 = vmatmul.mubr.bf16.gmra.mrb[0].mxu0 %v184
  %v353 = vpop.f32.mrb[0].mxu0
  %v354 = vadd.f32 %v144, %v353
  %v355 = vpop.f32.mrb[0].mxu0
  %v356 = vpop.f32.mrb[0].mxu0
  %v357 = vadd.f32 %v144, %v356
  %v358 = vpop.f32.mrb[0].mxu0
  %359 = vmatprep.mubr.bf16.mxu0 0
  %360 = vmatmul.mubr.bf16.gmra.mrb[0].mxu0 %v187
  %v361 = vpop.f32.mrb[0].mxu0
  %v362 = vadd.f32 %v144, %v361
  %v363 = vpop.f32.mrb[0].mxu0
  %v364 = vpop.f32.mrb[0].mxu0
  %v365 = vadd.f32 %v144, %v364
  %v366 = vpop.f32.mrb[0].mxu0
  %367 = vmatprep.mubr.bf16.mxu0 0
  %368 = vmatmul.mubr.bf16.gmra.mrb[0].mxu0 %v190
  %v369 = vpop.f32.mrb[0].mxu0
  %v370 = vadd.f32 %v144, %v369
  %v371 = vpop.f32.mrb[0].mxu0
  %v372 = vpop.f32.mrb[0].mxu0
  %v373 = vadd.f32 %v144, %v372
  %v374 = vpop.f32.mrb[0].mxu0
  %375 = vmatprep.mubr.bf16.mxu0 0
  %376 = vmatmul.mubr.bf16.gmra.mrb[0].mxu0 %v193
  %v377 = vpop.f32.mrb[0].mxu0
  %v378 = vadd.f32 %v144, %v377
  %v379 = vpop.f32.mrb[0].mxu0
  %v380 = vpop.f32.mrb[0].mxu0
  %v381 = vadd.f32 %v144, %v380
  %v382 = vpop.f32.mrb[0].mxu0
  %383 = vmatprep.mubr.bf16.mxu0 0
  %384 = vmatmul.mubr.bf16.gmra.mrb[0].mxu0 %v196
  %v385 = vpop.f32.mrb[0].mxu0
  %v386 = vadd.f32 %v144, %v385
  %v387 = vpop.f32.mrb[0].mxu0
  %v388 = vpop.f32.mrb[0].mxu0
  %v389 = vadd.f32 %v144, %v388
  %v390 = vpop.f32.mrb[0].mxu0
  %391 = vmatprep.mubr.bf16.mxu0 0
  %392 = vmatmul.mubr.bf16.gmra.mrb[0].mxu0 %v199
  %v393 = vpop.f32.mrb[0].mxu0
  %v394 = vadd.f32 %v144, %v393
  %v395 = vpop.f32.mrb[0].mxu0
  %v396 = vpop.f32.mrb[0].mxu0
  %v397 = vadd.f32 %v144, %v396
  %v398 = vpop.f32.mrb[0].mxu0
  %399 = vmatprep.mubr.bf16.mxu0 0
  %400 = vmatmul.mubr.bf16.gmra.mrb[0].mxu0 %v202
  %v401 = vpop.f32.mrb[0].mxu0
  %v402 = vadd.f32 %v144, %v401
  %v403 = vpop.f32.mrb[0].mxu0
  %v404 = vpop.f32.mrb[0].mxu0
  %v405 = vadd.f32 %v144, %v404
  %v406 = vpop.f32.mrb[0].mxu0
  %407 = vmatprep.mubr.bf16.mxu0 0
  %408 = vmatmul.mubr.bf16.gmra.mrb[0].mxu0 %v205
  %v409 = vpop.f32.mrb[0].mxu0
  %v410 = vadd.f32 %v144, %v409
  %v411 = vpop.f32.mrb[0].mxu0
  %v412 = vpop.f32.mrb[0].mxu0
  %v413 = vadd.f32 %v144, %v412
  %v414 = vpop.f32.mrb[0].mxu0
  %415 = vmatprep.mubr.bf16.mxu0 0
  %416 = vmatmul.mubr.bf16.gmra.mrb[0].mxu0 %v208
  %v417 = vpop.f32.mrb[0].mxu0
  %v418 = vadd.f32 %v144, %v417
  %v419 = vpop.f32.mrb[0].mxu0
  %v420 = vpop.f32.mrb[0].mxu0
  %v421 = vadd.f32 %v144, %v420
  %v422 = vpop.f32.mrb[0].mxu0
  %423 = vmatprep.mubr.bf16.mxu0 0
  %424 = vmatmul.mubr.bf16.gmra.mrb[0].mxu0 %v211
  %v425 = vpop.f32.mrb[0].mxu0
  %v426 = vadd.f32 %v144, %v425
  %v427 = vpop.f32.mrb[0].mxu0
  %v428 = vpop.f32.mrb[0].mxu0
  %v429 = vadd.f32 %v144, %v428
  %v430 = vpop.f32.mrb[0].mxu0
  %431 = vmatprep.mubr.bf16.mxu0 0
  %432 = vmatmul.mubr.bf16.gmra.mrb[0].mxu0 %v214
  %v433 = vpop.f32.mrb[0].mxu0
  %v434 = vadd.f32 %v144, %v433
  %v435 = vpop.f32.mrb[0].mxu0
  %v436 = vpop.f32.mrb[0].mxu0
  %v437 = vadd.f32 %v144, %v436
  %v438 = vpop.f32.mrb[0].mxu0
  %439 = vmatprep.mubr.bf16.mxu0 0
  %440 = vmatmul.mubr.bf16.gmra.mrb[0].mxu0 %v217
  %v441 = vpop.f32.mrb[0].mxu0
  %v442 = vadd.f32 %v144, %v441
  %v443 = vpop.f32.mrb[0].mxu0
  %v444 = vpop.f32.mrb[0].mxu0
  %v445 = vadd.f32 %v144, %v444
  %v446 = vpop.f32.mrb[0].mxu0
  %447 = vmatprep.mubr.bf16.mxu0 0
  %448 = vmatmul.mubr.bf16.gmra.mrb[0].mxu0 %v220
  %v449 = vpop.f32.mrb[0].mxu0
  %v450 = vadd.f32 %v144, %v449
  %v451 = vpop.f32.mrb[0].mxu0
  %v452 = vpop.f32.mrb[0].mxu0
  %v453 = vadd.f32 %v144, %v452
  %v454 = vpop.f32.mrb[0].mxu0
  %455 = vmatprep.mubr.bf16.mxu0 0
  %456 = vmatmul.mubr.bf16.gmra.mrb[0].mxu0 %v223
  %v457 = vpop.f32.mrb[0].mxu0
  %v458 = vadd.f32 %v144, %v457
  %v459 = vpop.f32.mrb[0].mxu0
  %v460 = vpop.f32.mrb[0].mxu0
  %v461 = vadd.f32 %v144, %v460
  %v462 = vpop.f32.mrb[0].mxu0
  %463 = vmatprep.mubr.bf16.mxu0 0
  %464 = vmatmul.mubr.bf16.gmra.mrb[0].mxu0 %v226
  %v465 = vpop.f32.mrb[0].mxu0
  %v466 = vadd.f32 %v144, %v465
  %v467 = vpop.f32.mrb[0].mxu0
  %v468 = vpop.f32.mrb[0].mxu0
  %v469 = vadd.f32 %v144, %v468
  %v470 = vpop.f32.mrb[0].mxu0
  %471 = vmatprep.mubr.bf16.mxu0 0
  %472 = vmatmul.mubr.bf16.gmra.mrb[0].mxu0 %v229
  %v473 = vpop.f32.mrb[0].mxu0
  %v474 = vadd.f32 %v144, %v473
  %v475 = vpop.f32.mrb[0].mxu0
  %v476 = vpop.f32.mrb[0].mxu0
  %v477 = vadd.f32 %v144, %v476
  %v478 = vpop.f32.mrb[0].mxu0
  %479 = vmatprep.mubr.bf16.mxu0 0
  %480 = vmatmul.mubr.bf16.gmra.mrb[0].mxu0 %v232
  %v481 = vpop.f32.mrb[0].mxu0
  %v482 = vadd.f32 %v144, %v481
  %v483 = vpop.f32.mrb[0].mxu0
  %v484 = vpop.f32.mrb[0].mxu0
  %v485 = vadd.f32 %v144, %v484
  %v486 = vpop.f32.mrb[0].mxu0
  %487 = vmatprep.mubr.bf16.mxu0 0
  %488 = vmatmul.mubr.bf16.gmra.mrb[0].mxu0 %v235
  %v489 = vpop.f32.mrb[0].mxu0
  %v490 = vadd.f32 %v144, %v489
  %v491 = vpop.f32.mrb[0].mxu0
  %v492 = vpop.f32.mrb[0].mxu0
  %v493 = vadd.f32 %v144, %v492
  %v494 = vpop.f32.mrb[0].mxu0
  %495 = vmatprep.mubr.bf16.mxu0 0
  %496 = vmatmul.mubr.bf16.gmra.mrb[0].mxu0 %v238
  %v497 = vpop.f32.mrb[0].mxu0
  %v498 = vadd.f32 %v144, %v497
  %v499 = vpop.f32.mrb[0].mxu0
  %v500 = vpop.f32.mrb[0].mxu0
  %v501 = vadd.f32 %v144, %v500
  %v502 = vpop.f32.mrb[0].mxu0
  %503 = vmatprep.mubr.bf16.mxu0 0
  %504 = vmatmul.mubr.bf16.gmra.mrb[0].mxu0 %v241
  %v505 = vpop.f32.mrb[0].mxu0
  %v506 = vadd.f32 %v144, %v505
  %v507 = vpop.f32.mrb[0].mxu0
  %v508 = vpop.f32.mrb[0].mxu0
  %v509 = vadd.f32 %v144, %v508
  %v510 = vpop.f32.mrb[0].mxu0
  %511 = vmatprep.mubr.bf16.mxu0 0
  %512 = vmatmul.mubr.bf16.gmra.mrb[0].mxu0 %v244
  %v513 = vpop.f32.mrb[0].mxu0
  %v514 = vadd.f32 %v144, %v513
  %v515 = vpop.f32.mrb[0].mxu0
  %v516 = vpop.f32.mrb[0].mxu0
  %v517 = vadd.f32 %v144, %v516
  %v518 = vpop.f32.mrb[0].mxu0
  %519 = vmatprep.mubr.bf16.mxu0 0
  %520 = vmatmul.mubr.bf16.gmra.mrb[0].mxu0 %v247
  %v521 = vpop.f32.mrb[0].mxu0
  %v522 = vadd.f32 %v144, %v521
  %v523 = vpop.f32.mrb[0].mxu0
  %v524 = vpop.f32.mrb[0].mxu0
  %v525 = vadd.f32 %v144, %v524
  %v526 = vpop.f32.mrb[0].mxu0
  %527 = vmatprep.mubr.bf16.mxu0 0
  %528 = vmatmul.mubr.bf16.gmra.mrb[0].mxu0 %v250
  %v529 = vpop.f32.mrb[0].mxu0
  %v530 = vadd.f32 %v144, %v529
  %v531 = vpop.f32.mrb[0].mxu0
  %v532 = vpop.f32.mrb[0].mxu0
  %v533 = vadd.f32 %v144, %v532
  %v534 = vpop.f32.mrb[0].mxu0
  %535 = vmatprep.mubr.bf16.mxu0 0
  %536 = vmatmul.mubr.bf16.gmra.mrb[0].mxu0 %v253
  %v537 = vpop.f32.mrb[0].mxu0
  %v538 = vadd.f32 %v144, %v537
  %v539 = vpop.f32.mrb[0].mxu0
  %v540 = vpop.f32.mrb[0].mxu0
  %v541 = vadd.f32 %v144, %v540
  %v542 = vpop.f32.mrb[0].mxu0
  %543 = vdwg.mxu0
  %v544 = vand.u32 2147483647, %v290
  %v545 = vand.u32 2147483647, %v293
  %v546 = vand.u32 2147483647, %v298
  %v547 = vand.u32 2147483647, %v301
  %v548 = vand.u32 2147483647, %v306
  %v549 = vand.u32 2147483647, %v309
  %v550 = vand.u32 2147483647, %v314
  %v551 = vand.u32 2147483647, %v317
  %v552 = vand.u32 2147483647, %v322
  %v553 = vand.u32 2147483647, %v325
  %v554 = vand.u32 2147483647, %v330
  %v555 = vand.u32 2147483647, %v333
  %v556 = vand.u32 2147483647, %v338
  %v557 = vand.u32 2147483647, %v341
  %v558 = vand.u32 2147483647, %v346
  %v559 = vand.u32 2147483647, %v349
  %v560 = vand.u32 2147483647, %v354
  %v561 = vand.u32 2147483647, %v357
  %v562 = vand.u32 2147483647, %v362
  %v563 = vand.u32 2147483647, %v365
  %v564 = vand.u32 2147483647, %v370
  %v565 = vand.u32 2147483647, %v373
  %v566 = vand.u32 2147483647, %v378
  %v567 = vand.u32 2147483647, %v381
  %v568 = vand.u32 2147483647, %v386
  %v569 = vand.u32 2147483647, %v389
  %v570 = vand.u32 2147483647, %v394
  %v571 = vand.u32 2147483647, %v397
  %v572 = vand.u32 2147483647, %v402
  %v573 = vand.u32 2147483647, %v405
  %v574 = vand.u32 2147483647, %v410
  %v575 = vand.u32 2147483647, %v413
  %v576 = vand.u32 2147483647, %v418
  %v577 = vand.u32 2147483647, %v421
  %v578 = vand.u32 2147483647, %v426
  %v579 = vand.u32 2147483647, %v429
  %v580 = vand.u32 2147483647, %v434
  %v581 = vand.u32 2147483647, %v437
  %v582 = vand.u32 2147483647, %v442
  %v583 = vand.u32 2147483647, %v445
  %v584 = vand.u32 2147483647, %v450
  %v585 = vand.u32 2147483647, %v453
  %v586 = vand.u32 2147483647, %v458
  %v587 = vand.u32 2147483647, %v461
  %v588 = vand.u32 2147483647, %v466
  %v589 = vand.u32 2147483647, %v469
  %v590 = vand.u32 2147483647, %v474
  %v591 = vand.u32 2147483647, %v477
  %v592 = vand.u32 2147483647, %v482
  %v593 = vand.u32 2147483647, %v485
  %v594 = vand.u32 2147483647, %v490
  %v595 = vand.u32 2147483647, %v493
  %v596 = vand.u32 2147483647, %v498
  %v597 = vand.u32 2147483647, %v501
  %v598 = vand.u32 2147483647, %v506
  %v599 = vand.u32 2147483647, %v509
  %v600 = vand.u32 2147483647, %v514
  %v601 = vand.u32 2147483647, %v517
  %v602 = vand.u32 2147483647, %v522
  %v603 = vand.u32 2147483647, %v525
  %v604 = vand.u32 2147483647, %v530
  %v605 = vand.u32 2147483647, %v533
  %v606 = vand.u32 2147483647, %v538
  %v607 = vand.u32 2147483647, %v541
  %v608 = vsub.f32 0.0, %v544
  %v609 = vsub.f32 0.0, %v545
  %v610 = vsub.f32 0.0, %v546
  %v611 = vsub.f32 0.0, %v547
  %v612 = vsub.f32 0.0, %v548
  %v613 = vsub.f32 0.0, %v549
  %v614 = vsub.f32 0.0, %v550
  %v615 = vsub.f32 0.0, %v551
  %v616 = vsub.f32 0.0, %v552
  %v617 = vsub.f32 0.0, %v553
  %v618 = vsub.f32 0.0, %v554
  %v619 = vsub.f32 0.0, %v555
  %v620 = vsub.f32 0.0, %v556
  %v621 = vsub.f32 0.0, %v557
  %v622 = vsub.f32 0.0, %v558
  %v623 = vsub.f32 0.0, %v559
  %v624 = vsub.f32 0.0, %v560
  %v625 = vsub.f32 0.0, %v561
  %v626 = vsub.f32 0.0, %v562
  %v627 = vsub.f32 0.0, %v563
  %v628 = vsub.f32 0.0, %v564
  %v629 = vsub.f32 0.0, %v565
  %v630 = vsub.f32 0.0, %v566
  %v631 = vsub.f32 0.0, %v567
  %v632 = vsub.f32 0.0, %v568
  %v633 = vsub.f32 0.0, %v569
  %v634 = vsub.f32 0.0, %v570
  %v635 = vsub.f32 0.0, %v571
  %v636 = vsub.f32 0.0, %v572
  %v637 = vsub.f32 0.0, %v573
  %v638 = vsub.f32 0.0, %v574
  %v639 = vsub.f32 0.0, %v575
  %v640 = vsub.f32 0.0, %v576
  %v641 = vsub.f32 0.0, %v577
  %v642 = vsub.f32 0.0, %v578
  %v643 = vsub.f32 0.0, %v579
  %v644 = vsub.f32 0.0, %v580
  %v645 = vsub.f32 0.0, %v581
  %v646 = vsub.f32 0.0, %v582
  %v647 = vsub.f32 0.0, %v583
  %v648 = vsub.f32 0.0, %v584
  %v649 = vsub.f32 0.0, %v585
  %v650 = vsub.f32 0.0, %v586
  %v651 = vsub.f32 0.0, %v587
  %v652 = vsub.f32 0.0, %v588
  %v653 = vsub.f32 0.0, %v589
  %v654 = vsub.f32 0.0, %v590
  %v655 = vsub.f32 0.0, %v591
  %v656 = vsub.f32 0.0, %v592
  %v657 = vsub.f32 0.0, %v593
  %v658 = vsub.f32 0.0, %v594
  %v659 = vsub.f32 0.0, %v595
  %v660 = vsub.f32 0.0, %v596
  %v661 = vsub.f32 0.0, %v597
  %v662 = vsub.f32 0.0, %v598
  %v663 = vsub.f32 0.0, %v599
  %v664 = vsub.f32 0.0, %v600
  %v665 = vsub.f32 0.0, %v601
  %v666 = vsub.f32 0.0, %v602
  %v667 = vsub.f32 0.0, %v603
  %v668 = vsub.f32 0.0, %v604
  %v669 = vsub.f32 0.0, %v605
  %v670 = vsub.f32 0.0, %v606
  %v671 = vsub.f32 0.0, %v607
  %v672 = vmul.f32 %v608, 1.442695
  %v673 = vpow.pop %v672
  %v674 = vmul.f32 %v609, 1.442695
  %v675 = vpow.pop %v674
  %v676 = vmul.f32 %v610, 1.442695
  %v677 = vpow.pop %v676
  %v678 = vmul.f32 %v611, 1.442695
  %v679 = vpow.pop %v678
  %v680 = vmul.f32 %v612, 1.442695
  %v681 = vpow.pop %v680
  %v682 = vmul.f32 %v613, 1.442695
  %v683 = vpow.pop %v682
  %v684 = vmul.f32 %v614, 1.442695
  %v685 = vpow.pop %v684
  %v686 = vmul.f32 %v615, 1.442695
  %v687 = vpow.pop %v686
  %v688 = vmul.f32 %v616, 1.442695
  %v689 = vpow.pop %v688
  %v690 = vmul.f32 %v617, 1.442695
  %v691 = vpow.pop %v690
  %v692 = vmul.f32 %v618, 1.442695
  %v693 = vpow.pop %v692
  %v694 = vmul.f32 %v619, 1.442695
  %v695 = vpow.pop %v694
  %v696 = vmul.f32 %v620, 1.442695
  %v697 = vpow.pop %v696
  %v698 = vmul.f32 %v621, 1.442695
  %v699 = vpow.pop %v698
  %v700 = vmul.f32 %v622, 1.442695
  %v701 = vpow.pop %v700
  %v702 = vmul.f32 %v623, 1.442695
  %v703 = vpow.pop %v702
  %v704 = vmul.f32 %v624, 1.442695
  %v705 = vpow.pop %v704
  %v706 = vmul.f32 %v625, 1.442695
  %v707 = vpow.pop %v706
  %v708 = vmul.f32 %v626, 1.442695
  %v709 = vpow.pop %v708
  %v710 = vmul.f32 %v627, 1.442695
  %v711 = vpow.pop %v710
  %v712 = vmul.f32 %v628, 1.442695
  %v713 = vpow.pop %v712
  %v714 = vmul.f32 %v629, 1.442695
  %v715 = vpow.pop %v714
  %v716 = vmul.f32 %v630, 1.442695
  %v717 = vpow.pop %v716
  %v718 = vmul.f32 %v631, 1.442695
  %v719 = vpow.pop %v718
  %v720 = vmul.f32 %v632, 1.442695
  %v721 = vpow.pop %v720
  %v722 = vmul.f32 %v633, 1.442695
  %v723 = vpow.pop %v722
  %v724 = vmul.f32 %v634, 1.442695
  %v725 = vpow.pop %v724
  %v726 = vmul.f32 %v635, 1.442695
  %v727 = vpow.pop %v726
  %v728 = vmul.f32 %v636, 1.442695
  %v729 = vpow.pop %v728
  %v730 = vmul.f32 %v637, 1.442695
  %v731 = vpow.pop %v730
  %v732 = vmul.f32 %v638, 1.442695
  %v733 = vpow.pop %v732
  %v734 = vmul.f32 %v639, 1.442695
  %v735 = vpow.pop %v734
  %v736 = vmul.f32 %v640, 1.442695
  %v737 = vpow.pop %v736
  %v738 = vmul.f32 %v641, 1.442695
  %v739 = vpow.pop %v738
  %v740 = vmul.f32 %v642, 1.442695
  %v741 = vpow.pop %v740
  %v742 = vmul.f32 %v643, 1.442695
  %v743 = vpow.pop %v742
  %v744 = vmul.f32 %v644, 1.442695
  %v745 = vpow.pop %v744
  %v746 = vmul.f32 %v645, 1.442695
  %v747 = vpow.pop %v746
  %v748 = vmul.f32 %v646, 1.442695
  %v749 = vpow.pop %v748
  %v750 = vmul.f32 %v647, 1.442695
  %v751 = vpow.pop %v750
  %v752 = vmul.f32 %v648, 1.442695
  %v753 = vpow.pop %v752
  %v754 = vmul.f32 %v649, 1.442695
  %v755 = vpow.pop %v754
  %v756 = vmul.f32 %v650, 1.442695
  %v757 = vpow.pop %v756
  %v758 = vmul.f32 %v651, 1.442695
  %v759 = vpow.pop %v758
  %v760 = vmul.f32 %v652, 1.442695
  %v761 = vpow.pop %v760
  %v762 = vmul.f32 %v653, 1.442695
  %v763 = vpow.pop %v762
  %v764 = vmul.f32 %v654, 1.442695
  %v765 = vpow.pop %v764
  %v766 = vmul.f32 %v655, 1.442695
  %v767 = vpow.pop %v766
  %v768 = vmul.f32 %v656, 1.442695
  %v769 = vpow.pop %v768
  %v770 = vmul.f32 %v657, 1.442695
  %v771 = vpow.pop %v770
  %v772 = vmul.f32 %v658, 1.442695
  %v773 = vpow.pop %v772
  %v774 = vmul.f32 %v659, 1.442695
  %v775 = vpow.pop %v774
  %v776 = vmul.f32 %v660, 1.442695
  %v777 = vpow.pop %v776
  %v778 = vmul.f32 %v661, 1.442695
  %v779 = vpow.pop %v778
  %v780 = vmul.f32 %v662, 1.442695
  %v781 = vpow.pop %v780
  %v782 = vmul.f32 %v663, 1.442695
  %v783 = vpow.pop %v782
  %v784 = vmul.f32 %v664, 1.442695
  %v785 = vpow.pop %v784
  %v786 = vmul.f32 %v665, 1.442695
  %v787 = vpow.pop %v786
  %v788 = vmul.f32 %v666, 1.442695
  %v789 = vpow.pop %v788
  %v790 = vmul.f32 %v667, 1.442695
  %v791 = vpow.pop %v790
  %v792 = vmul.f32 %v668, 1.442695
  %v793 = vpow.pop %v792
  %v794 = vmul.f32 %v669, 1.442695
  %v795 = vpow.pop %v794
  %v796 = vmul.f32 %v670, 1.442695
  %v797 = vpow.pop %v796
  %v798 = vmul.f32 %v671, 1.442695
  %v799 = vpow.pop %v798
  %v800 = vadd.f32 %v673, 1.0
  %v801 = vadd.f32 %v675, 1.0
  %v802 = vadd.f32 %v677, 1.0
  %v803 = vadd.f32 %v679, 1.0
  %v804 = vadd.f32 %v681, 1.0
  %v805 = vadd.f32 %v683, 1.0
  %v806 = vadd.f32 %v685, 1.0
  %v807 = vadd.f32 %v687, 1.0
  %v808 = vadd.f32 %v689, 1.0
  %v809 = vadd.f32 %v691, 1.0
  %v810 = vadd.f32 %v693, 1.0
  %v811 = vadd.f32 %v695, 1.0
  %v812 = vadd.f32 %v697, 1.0
  %v813 = vadd.f32 %v699, 1.0
  %v814 = vadd.f32 %v701, 1.0
  %v815 = vadd.f32 %v703, 1.0
  %v816 = vadd.f32 %v705, 1.0
  %v817 = vadd.f32 %v707, 1.0
  %v818 = vadd.f32 %v709, 1.0
  %v819 = vadd.f32 %v711, 1.0
  %v820 = vadd.f32 %v713, 1.0
  %v821 = vadd.f32 %v715, 1.0
  %v822 = vadd.f32 %v717, 1.0
  %v823 = vadd.f32 %v719, 1.0
  %v824 = vadd.f32 %v721, 1.0
  %v825 = vadd.f32 %v723, 1.0
  %v826 = vadd.f32 %v725, 1.0
  %v827 = vadd.f32 %v727, 1.0
  %v828 = vadd.f32 %v729, 1.0
  %v829 = vadd.f32 %v731, 1.0
  %v830 = vadd.f32 %v733, 1.0
  %v831 = vadd.f32 %v735, 1.0
  %v832 = vadd.f32 %v737, 1.0
  %v833 = vadd.f32 %v739, 1.0
  %v834 = vadd.f32 %v741, 1.0
  %v835 = vadd.f32 %v743, 1.0
  %v836 = vadd.f32 %v745, 1.0
  %v837 = vadd.f32 %v747, 1.0
  %v838 = vadd.f32 %v749, 1.0
  %v839 = vadd.f32 %v751, 1.0
  %v840 = vadd.f32 %v753, 1.0
  %v841 = vadd.f32 %v755, 1.0
  %v842 = vadd.f32 %v757, 1.0
  %v843 = vadd.f32 %v759, 1.0
  %v844 = vadd.f32 %v761, 1.0
  %v845 = vadd.f32 %v763, 1.0
  %v846 = vadd.f32 %v765, 1.0
  %v847 = vadd.f32 %v767, 1.0
  %v848 = vadd.f32 %v769, 1.0
  %v849 = vadd.f32 %v771, 1.0
  %v850 = vadd.f32 %v773, 1.0
  %v851 = vadd.f32 %v775, 1.0
  %v852 = vadd.f32 %v777, 1.0
  %v853 = vadd.f32 %v779, 1.0
  %v854 = vadd.f32 %v781, 1.0
  %v855 = vadd.f32 %v783, 1.0
  %v856 = vadd.f32 %v785, 1.0
  %v857 = vadd.f32 %v787, 1.0
  %v858 = vadd.f32 %v789, 1.0
  %v859 = vadd.f32 %v791, 1.0
  %v860 = vadd.f32 %v793, 1.0
  %v861 = vadd.f32 %v795, 1.0
  %v862 = vadd.f32 %v797, 1.0
  %v863 = vadd.f32 %v799, 1.0
  %v864 = vrcp.pop %v800
  %v865 = vrcp.pop %v801
  %v866 = vrcp.pop %v802
  %v867 = vrcp.pop %v803
  %v868 = vrcp.pop %v804
  %v869 = vrcp.pop %v805
  %v870 = vrcp.pop %v806
  %v871 = vrcp.pop %v807
  %v872 = vrcp.pop %v808
  %v873 = vrcp.pop %v809
  %v874 = vrcp.pop %v810
  %v875 = vrcp.pop %v811
  %v876 = vrcp.pop %v812
  %v877 = vrcp.pop %v813
  %v878 = vrcp.pop %v814
  %v879 = vrcp.pop %v815
  %v880 = vrcp.pop %v816
  %v881 = vrcp.pop %v817
  %v882 = vrcp.pop %v818
  %v883 = vrcp.pop %v819
  %v884 = vrcp.pop %v820
  %v885 = vrcp.pop %v821
  %v886 = vrcp.pop %v822
  %v887 = vrcp.pop %v823
  %v888 = vrcp.pop %v824
  %v889 = vrcp.pop %v825
  %v890 = vrcp.pop %v826
  %v891 = vrcp.pop %v827
  %v892 = vrcp.pop %v828
  %v893 = vrcp.pop %v829
  %v894 = vrcp.pop %v830
  %v895 = vrcp.pop %v831
  %v896 = vrcp.pop %v832
  %v897 = vrcp.pop %v833
  %v898 = vrcp.pop %v834
  %v899 = vrcp.pop %v835
  %v900 = vrcp.pop %v836
  %v901 = vrcp.pop %v837
  %v902 = vrcp.pop %v838
  %v903 = vrcp.pop %v839
  %v904 = vrcp.pop %v840
  %v905 = vrcp.pop %v841
  %v906 = vrcp.pop %v842
  %v907 = vrcp.pop %v843
  %v908 = vrcp.pop %v844
  %v909 = vrcp.pop %v845
  %v910 = vrcp.pop %v846
  %v911 = vrcp.pop %v847
  %v912 = vrcp.pop %v848
  %v913 = vrcp.pop %v849
  %v914 = vrcp.pop %v850
  %v915 = vrcp.pop %v851
  %v916 = vrcp.pop %v852
  %v917 = vrcp.pop %v853
  %v918 = vrcp.pop %v854
  %v919 = vrcp.pop %v855
  %v920 = vrcp.pop %v856
  %v921 = vrcp.pop %v857
  %v922 = vrcp.pop %v858
  %v923 = vrcp.pop %v859
  %v924 = vrcp.pop %v860
  %v925 = vrcp.pop %v861
  %v926 = vrcp.pop %v862
  %v927 = vrcp.pop %v863
  %vm928 = vcmp.ge.f32.partialorder %v290, 0.0
  %vm929 = vcmp.ge.f32.partialorder %v293, 0.0
  %vm930 = vcmp.ge.f32.partialorder %v298, 0.0
  %vm931 = vcmp.ge.f32.partialorder %v301, 0.0
  %vm932 = vcmp.ge.f32.partialorder %v306, 0.0
  %vm933 = vcmp.ge.f32.partialorder %v309, 0.0
  %vm934 = vcmp.ge.f32.partialorder %v314, 0.0
  %vm935 = vcmp.ge.f32.partialorder %v317, 0.0
  %vm936 = vcmp.ge.f32.partialorder %v322, 0.0
  %vm937 = vcmp.ge.f32.partialorder %v325, 0.0
  %vm938 = vcmp.ge.f32.partialorder %v330, 0.0
  %vm939 = vcmp.ge.f32.partialorder %v333, 0.0
  %vm940 = vcmp.ge.f32.partialorder %v338, 0.0
  %vm941 = vcmp.ge.f32.partialorder %v341, 0.0
  %vm942 = vcmp.ge.f32.partialorder %v346, 0.0
  %vm943 = vcmp.ge.f32.partialorder %v349, 0.0
  %vm944 = vcmp.ge.f32.partialorder %v354, 0.0
  %vm945 = vcmp.ge.f32.partialorder %v357, 0.0
  %vm946 = vcmp.ge.f32.partialorder %v362, 0.0
  %vm947 = vcmp.ge.f32.partialorder %v365, 0.0
  %vm948 = vcmp.ge.f32.partialorder %v370, 0.0
  %vm949 = vcmp.ge.f32.partialorder %v373, 0.0
  %vm950 = vcmp.ge.f32.partialorder %v378, 0.0
  %vm951 = vcmp.ge.f32.partialorder %v381, 0.0
  %vm952 = vcmp.ge.f32.partialorder %v386, 0.0
  %vm953 = vcmp.ge.f32.partialorder %v389, 0.0
  %vm954 = vcmp.ge.f32.partialorder %v394, 0.0
  %vm955 = vcmp.ge.f32.partialorder %v397, 0.0
  %vm956 = vcmp.ge.f32.partialorder %v402, 0.0
  %vm957 = vcmp.ge.f32.partialorder %v405, 0.0
  %vm958 = vcmp.ge.f32.partialorder %v410, 0.0
  %vm959 = vcmp.ge.f32.partialorder %v413, 0.0
  %vm960 = vcmp.ge.f32.partialorder %v418, 0.0
  %vm961 = vcmp.ge.f32.partialorder %v421, 0.0
  %vm962 = vcmp.ge.f32.partialorder %v426, 0.0
  %vm963 = vcmp.ge.f32.partialorder %v429, 0.0
  %vm964 = vcmp.ge.f32.partialorder %v434, 0.0
  %vm965 = vcmp.ge.f32.partialorder %v437, 0.0
  %vm966 = vcmp.ge.f32.partialorder %v442, 0.0
  %vm967 = vcmp.ge.f32.partialorder %v445, 0.0
  %vm968 = vcmp.ge.f32.partialorder %v450, 0.0
  %vm969 = vcmp.ge.f32.partialorder %v453, 0.0
  %vm970 = vcmp.ge.f32.partialorder %v458, 0.0
  %vm971 = vcmp.ge.f32.partialorder %v461, 0.0
  %vm972 = vcmp.ge.f32.partialorder %v466, 0.0
  %vm973 = vcmp.ge.f32.partialorder %v469, 0.0
  %vm974 = vcmp.ge.f32.partialorder %v474, 0.0
  %vm975 = vcmp.ge.f32.partialorder %v477, 0.0
  %vm976 = vcmp.ge.f32.partialorder %v482, 0.0
  %vm977 = vcmp.ge.f32.partialorder %v485, 0.0
  %vm978 = vcmp.ge.f32.partialorder %v490, 0.0
  %vm979 = vcmp.ge.f32.partialorder %v493, 0.0
  %vm980 = vcmp.ge.f32.partialorder %v498, 0.0
  %vm981 = vcmp.ge.f32.partialorder %v501, 0.0
  %vm982 = vcmp.ge.f32.partialorder %v506, 0.0
  %vm983 = vcmp.ge.f32.partialorder %v509, 0.0
  %vm984 = vcmp.ge.f32.partialorder %v514, 0.0
  %vm985 = vcmp.ge.f32.partialorder %v517, 0.0
  %vm986 = vcmp.ge.f32.partialorder %v522, 0.0
  %vm987 = vcmp.ge.f32.partialorder %v525, 0.0
  %vm988 = vcmp.ge.f32.partialorder %v530, 0.0
  %vm989 = vcmp.ge.f32.partialorder %v533, 0.0
  %vm990 = vcmp.ge.f32.partialorder %v538, 0.0
  %vm991 = vcmp.ge.f32.partialorder %v541, 0.0
  %v992 = vmul.f32 %v673, %v864
  %v993 = vmul.f32 %v675, %v865
  %v994 = vmul.f32 %v677, %v866
  %v995 = vmul.f32 %v679, %v867
  %v996 = vmul.f32 %v681, %v868
  %v997 = vmul.f32 %v683, %v869
  %v998 = vmul.f32 %v685, %v870
  %v999 = vmul.f32 %v687, %v871
  %v1000 = vmul.f32 %v689, %v872
  %v1001 = vmul.f32 %v691, %v873
  %v1002 = vmul.f32 %v693, %v874
  %v1003 = vmul.f32 %v695, %v875
  %v1004 = vmul.f32 %v697, %v876
  %v1005 = vmul.f32 %v699, %v877
  %v1006 = vmul.f32 %v701, %v878
  %v1007 = vmul.f32 %v703, %v879
  %v1008 = vmul.f32 %v705, %v880
  %v1009 = vmul.f32 %v707, %v881
  %v1010 = vmul.f32 %v709, %v882
  %v1011 = vmul.f32 %v711, %v883
  %v1012 = vmul.f32 %v713, %v884
  %v1013 = vmul.f32 %v715, %v885
  %v1014 = vmul.f32 %v717, %v886
  %v1015 = vmul.f32 %v719, %v887
  %v1016 = vmul.f32 %v721, %v888
  %v1017 = vmul.f32 %v723, %v889
  %v1018 = vmul.f32 %v725, %v890
  %v1019 = vmul.f32 %v727, %v891
  %v1020 = vmul.f32 %v729, %v892
  %v1021 = vmul.f32 %v731, %v893
  %v1022 = vmul.f32 %v733, %v894
  %v1023 = vmul.f32 %v735, %v895
  %v1024 = vmul.f32 %v737, %v896
  %v1025 = vmul.f32 %v739, %v897
  %v1026 = vmul.f32 %v741, %v898
  %v1027 = vmul.f32 %v743, %v899
  %v1028 = vmul.f32 %v745, %v900
  %v1029 = vmul.f32 %v747, %v901
  %v1030 = vmul.f32 %v749, %v902
  %v1031 = vmul.f32 %v751, %v903
  %v1032 = vmul.f32 %v753, %v904
  %v1033 = vmul.f32 %v755, %v905
  %v1034 = vmul.f32 %v757, %v906
  %v1035 = vmul.f32 %v759, %v907
  %v1036 = vmul.f32 %v761, %v908
  %v1037 = vmul.f32 %v763, %v909
  %v1038 = vmul.f32 %v765, %v910
  %v1039 = vmul.f32 %v767, %v911
  %v1040 = vmul.f32 %v769, %v912
  %v1041 = vmul.f32 %v771, %v913
  %v1042 = vmul.f32 %v773, %v914
  %v1043 = vmul.f32 %v775, %v915
  %v1044 = vmul.f32 %v777, %v916
  %v1045 = vmul.f32 %v779, %v917
  %v1046 = vmul.f32 %v781, %v918
  %v1047 = vmul.f32 %v783, %v919
  %v1048 = vmul.f32 %v785, %v920
  %v1049 = vmul.f32 %v787, %v921
  %v1050 = vmul.f32 %v789, %v922
  %v1051 = vmul.f32 %v791, %v923
  %v1052 = vmul.f32 %v793, %v924
  %v1053 = vmul.f32 %v795, %v925
  %v1054 = vmul.f32 %v797, %v926
  %v1055 = vmul.f32 %v799, %v927
  %v1056 = vsel %vm928, %v864, %v992
  %v1057 = vsel %vm929, %v865, %v993
  %v1058 = vsel %vm930, %v866, %v994
  %v1059 = vsel %vm931, %v867, %v995
  %v1060 = vsel %vm932, %v868, %v996
  %v1061 = vsel %vm933, %v869, %v997
  %v1062 = vsel %vm934, %v870, %v998
  %v1063 = vsel %vm935, %v871, %v999
  %v1064 = vsel %vm936, %v872, %v1000
  %v1065 = vsel %vm937, %v873, %v1001
  %v1066 = vsel %vm938, %v874, %v1002
  %v1067 = vsel %vm939, %v875, %v1003
  %v1068 = vsel %vm940, %v876, %v1004
  %v1069 = vsel %vm941, %v877, %v1005
  %v1070 = vsel %vm942, %v878, %v1006
  %v1071 = vsel %vm943, %v879, %v1007
  %v1072 = vsel %vm944, %v880, %v1008
  %v1073 = vsel %vm945, %v881, %v1009
  %v1074 = vsel %vm946, %v882, %v1010
  %v1075 = vsel %vm947, %v883, %v1011
  %v1076 = vsel %vm948, %v884, %v1012
  %v1077 = vsel %vm949, %v885, %v1013
  %v1078 = vsel %vm950, %v886, %v1014
  %v1079 = vsel %vm951, %v887, %v1015
  %v1080 = vsel %vm952, %v888, %v1016
  %v1081 = vsel %vm953, %v889, %v1017
  %v1082 = vsel %vm954, %v890, %v1018
  %v1083 = vsel %vm955, %v891, %v1019
  %v1084 = vsel %vm956, %v892, %v1020
  %v1085 = vsel %vm957, %v893, %v1021
  %v1086 = vsel %vm958, %v894, %v1022
  %v1087 = vsel %vm959, %v895, %v1023
  %v1088 = vsel %vm960, %v896, %v1024
  %v1089 = vsel %vm961, %v897, %v1025
  %v1090 = vsel %vm962, %v898, %v1026
  %v1091 = vsel %vm963, %v899, %v1027
  %v1092 = vsel %vm964, %v900, %v1028
  %v1093 = vsel %vm965, %v901, %v1029
  %v1094 = vsel %vm966, %v902, %v1030
  %v1095 = vsel %vm967, %v903, %v1031
  %v1096 = vsel %vm968, %v904, %v1032
  %v1097 = vsel %vm969, %v905, %v1033
  %v1098 = vsel %vm970, %v906, %v1034
  %v1099 = vsel %vm971, %v907, %v1035
  %v1100 = vsel %vm972, %v908, %v1036
  %v1101 = vsel %vm973, %v909, %v1037
  %v1102 = vsel %vm974, %v910, %v1038
  %v1103 = vsel %vm975, %v911, %v1039
  %v1104 = vsel %vm976, %v912, %v1040
  %v1105 = vsel %vm977, %v913, %v1041
  %v1106 = vsel %vm978, %v914, %v1042
  %v1107 = vsel %vm979, %v915, %v1043
  %v1108 = vsel %vm980, %v916, %v1044
  %v1109 = vsel %vm981, %v917, %v1045
  %v1110 = vsel %vm982, %v918, %v1046
  %v1111 = vsel %vm983, %v919, %v1047
  %v1112 = vsel %vm984, %v920, %v1048
  %v1113 = vsel %vm985, %v921, %v1049
  %v1114 = vsel %vm986, %v922, %v1050
  %v1115 = vsel %vm987, %v923, %v1051
  %v1116 = vsel %vm988, %v924, %v1052
  %v1117 = vsel %vm989, %v925, %v1053
  %v1118 = vsel %vm990, %v926, %v1054
  %v1119 = vsel %vm991, %v927, %v1055
  %v1120 = vmul.f32 %v290, %v1056
  %v1121 = vmul.f32 %v293, %v1057
  %v1122 = vmul.f32 %v298, %v1058
  %v1123 = vmul.f32 %v301, %v1059
  %v1124 = vmul.f32 %v306, %v1060
  %v1125 = vmul.f32 %v309, %v1061
  %v1126 = vmul.f32 %v314, %v1062
  %v1127 = vmul.f32 %v317, %v1063
  %v1128 = vmul.f32 %v322, %v1064
  %v1129 = vmul.f32 %v325, %v1065
  %v1130 = vmul.f32 %v330, %v1066
  %v1131 = vmul.f32 %v333, %v1067
  %v1132 = vmul.f32 %v338, %v1068
  %v1133 = vmul.f32 %v341, %v1069
  %v1134 = vmul.f32 %v346, %v1070
  %v1135 = vmul.f32 %v349, %v1071
  %v1136 = vmul.f32 %v354, %v1072
  %v1137 = vmul.f32 %v357, %v1073
  %v1138 = vmul.f32 %v362, %v1074
  %v1139 = vmul.f32 %v365, %v1075
  %v1140 = vmul.f32 %v370, %v1076
  %v1141 = vmul.f32 %v373, %v1077
  %v1142 = vmul.f32 %v378, %v1078
  %v1143 = vmul.f32 %v381, %v1079
  %v1144 = vmul.f32 %v386, %v1080
  %v1145 = vmul.f32 %v389, %v1081
  %v1146 = vmul.f32 %v394, %v1082
  %v1147 = vmul.f32 %v397, %v1083
  %v1148 = vmul.f32 %v402, %v1084
  %v1149 = vmul.f32 %v405, %v1085
  %v1150 = vmul.f32 %v410, %v1086
  %v1151 = vmul.f32 %v413, %v1087
  %v1152 = vmul.f32 %v418, %v1088
  %v1153 = vmul.f32 %v421, %v1089
  %v1154 = vmul.f32 %v426, %v1090
  %v1155 = vmul.f32 %v429, %v1091
  %v1156 = vmul.f32 %v434, %v1092
  %v1157 = vmul.f32 %v437, %v1093
  %v1158 = vmul.f32 %v442, %v1094
  %v1159 = vmul.f32 %v445, %v1095
  %v1160 = vmul.f32 %v450, %v1096
  %v1161 = vmul.f32 %v453, %v1097
  %v1162 = vmul.f32 %v458, %v1098
  %v1163 = vmul.f32 %v461, %v1099
  %v1164 = vmul.f32 %v466, %v1100
  %v1165 = vmul.f32 %v469, %v1101
  %v1166 = vmul.f32 %v474, %v1102
  %v1167 = vmul.f32 %v477, %v1103
  %v1168 = vmul.f32 %v482, %v1104
  %v1169 = vmul.f32 %v485, %v1105
  %v1170 = vmul.f32 %v490, %v1106
  %v1171 = vmul.f32 %v493, %v1107
  %v1172 = vmul.f32 %v498, %v1108
  %v1173 = vmul.f32 %v501, %v1109
  %v1174 = vmul.f32 %v506, %v1110
  %v1175 = vmul.f32 %v509, %v1111
  %v1176 = vmul.f32 %v514, %v1112
  %v1177 = vmul.f32 %v517, %v1113
  %v1178 = vmul.f32 %v522, %v1114
  %v1179 = vmul.f32 %v525, %v1115
  %v1180 = vmul.f32 %v530, %v1116
  %v1181 = vmul.f32 %v533, %v1117
  %v1182 = vmul.f32 %v538, %v1118
  %v1183 = vmul.f32 %v541, %v1119
  %v1184 = vld [vmem:[%s3] sm:$0xff]
  %v1185 = vld [vmem:[%s3 + $0x8] sm:$0x1]
  %v1186 = vld [vmem:[%s4] sm:$0x1]
  %v1187 = vld [vmem:[%s5] sm:$0xff]
  %v1188 = vld [vmem:[%s5 + $0x8] sm:$0xff]
  %v1189 = vld [vmem:[%s5 + $0x10] sm:$0xff]
  %v1190 = vld [vmem:[%s5 + $0x18] sm:$0xff]
  %v1191 = vld [vmem:[%s5 + $0x20] sm:$0xff]
  %v1192 = vld [vmem:[%s5 + $0x28] sm:$0xff]
  %v1193 = vld [vmem:[%s5 + $0x30] sm:$0xff]
  %v1194 = vld [vmem:[%s5 + $0x38] sm:$0xff]
  %v1195 = vld [vmem:[%s5 + $0x40] sm:$0xff]
  %v1196 = vld [vmem:[%s5 + $0x48] sm:$0xff]
  %v1197 = vld [vmem:[%s5 + $0x50] sm:$0xff]
  %v1198 = vld [vmem:[%s5 + $0x58] sm:$0xff]
  %v1199 = vld [vmem:[%s5 + $0x60] sm:$0xff]
  %v1200 = vld [vmem:[%s5 + $0x68] sm:$0xff]
  %v1201 = vld [vmem:[%s5 + $0x70] sm:$0xff]
  %v1202 = vld [vmem:[%s5 + $0x78] sm:$0xff]
  %v1203 = vld [vmem:[%s6] sm:$0x1]
  %v1204 = vld [vmem:[%s7] sm:$0xff]
  %v1205 = vld [vmem:[%s8] sm:$0x1]
  %1206 = vst [vmem:[#allocation2] sm:$0xff] 0.0
  %1207 = vst [vmem:[#allocation2 + $0x8] sm:$0xff] 0.0
  %1208 = vst [vmem:[#allocation2 + $0x10] sm:$0x3] 0.0
  %s1209 = scalar_lea.vmem [#allocation2], 408
  %1210 = vst [vmem:[%s1209] sm:$0xff] 0.0
  %1211 = vst [vmem:[%s1209 + $0x8] sm:$0xff] 0.0
  %1212 = vst [vmem:[%s1209 + $0x10] sm:$0x3] 0.0
  %s1213 = scalar_lea.vmem [#allocation2], 24
  %1214 = vst [vmem:[%s1213] sm:$0x1] 0.0
  %1215 = vst [vmem:[%s1213 + $0x18] sm:$0x1] 0.0
  %1216 = vst [vmem:[%s1213 + $0x30] sm:$0x1] 0.0
  %1217 = vst [vmem:[%s1213 + $0x48] sm:$0x1] 0.0
  %1218 = vst [vmem:[%s1213 + $0x60] sm:$0x1] 0.0
  %1219 = vst [vmem:[%s1213 + $0x78] sm:$0x1] 0.0
  %1220 = vst [vmem:[%s1213 + $0x90] sm:$0x1] 0.0
  %1221 = vst [vmem:[%s1213 + $0xa8] sm:$0x1] 0.0
  %1222 = vst [vmem:[%s1213 + $0xc0] sm:$0x1] 0.0
  %1223 = vst [vmem:[%s1213 + $0xd8] sm:$0x1] 0.0
  %1224 = vst [vmem:[%s1213 + $0xf0] sm:$0x1] 0.0
  %1225 = vst [vmem:[%s1213 + $0x108] sm:$0x1] 0.0
  %1226 = vst [vmem:[%s1213 + $0x120] sm:$0x1] 0.0
  %1227 = vst [vmem:[%s1213 + $0x138] sm:$0x1] 0.0
  %1228 = vst [vmem:[%s1213 + $0x150] sm:$0x1] 0.0
  %1229 = vst [vmem:[%s1213 + $0x168] sm:$0x1] 0.0
  %1230 = vst [vmem:[%s1213 + $0x11] sm:$0x1] 0.0
  %1231 = vst [vmem:[%s1213 + $0x29] sm:$0x1] 0.0
  %1232 = vst [vmem:[%s1213 + $0x41] sm:$0x1] 0.0
  %1233 = vst [vmem:[%s1213 + $0x59] sm:$0x1] 0.0
  %1234 = vst [vmem:[%s1213 + $0x71] sm:$0x1] 0.0
  %1235 = vst [vmem:[%s1213 + $0x89] sm:$0x1] 0.0
  %1236 = vst [vmem:[%s1213 + $0xa1] sm:$0x1] 0.0
  %1237 = vst [vmem:[%s1213 + $0xb9] sm:$0x1] 0.0
  %1238 = vst [vmem:[%s1213 + $0xd1] sm:$0x1] 0.0
  %1239 = vst [vmem:[%s1213 + $0xe9] sm:$0x1] 0.0
  %1240 = vst [vmem:[%s1213 + $0x101] sm:$0x1] 0.0
  %1241 = vst [vmem:[%s1213 + $0x119] sm:$0x1] 0.0
  %1242 = vst [vmem:[%s1213 + $0x131] sm:$0x1] 0.0
  %1243 = vst [vmem:[%s1213 + $0x149] sm:$0x1] 0.0
  %1244 = vst [vmem:[%s1213 + $0x161] sm:$0x1] 0.0
  %1245 = vst [vmem:[%s1213 + $0x179] sm:$0x1] 0.0
  %1246 = vst [vmem:[%s1213 + $0x1] sm:$0xff] %v1120
  %1247 = vst [vmem:[%s1213 + $0x9] sm:$0xff] %v1121
  %1248 = vst [vmem:[%s1213 + $0x19] sm:$0xff] %v1122
  %1249 = vst [vmem:[%s1213 + $0x21] sm:$0xff] %v1123
  %1250 = vst [vmem:[%s1213 + $0x31] sm:$0xff] %v1124
  %1251 = vst [vmem:[%s1213 + $0x39] sm:$0xff] %v1125
  %1252 = vst [vmem:[%s1213 + $0x49] sm:$0xff] %v1126
  %1253 = vst [vmem:[%s1213 + $0x51] sm:$0xff] %v1127
  %1254 = vst [vmem:[%s1213 + $0x61] sm:$0xff] %v1128
  %1255 = vst [vmem:[%s1213 + $0x69] sm:$0xff] %v1129
  %1256 = vst [vmem:[%s1213 + $0x79] sm:$0xff] %v1130
  %1257 = vst [vmem:[%s1213 + $0x81] sm:$0xff] %v1131
  %1258 = vst [vmem:[%s1213 + $0x91] sm:$0xff] %v1132
  %1259 = vst [vmem:[%s1213 + $0x99] sm:$0xff] %v1133
  %1260 = vst [vmem:[%s1213 + $0xa9] sm:$0xff] %v1134
  %1261 = vst [vmem:[%s1213 + $0xb1] sm:$0xff] %v1135
  %1262 = vst [vmem:[%s1213 + $0xc1] sm:$0xff] %v1136
  %1263 = vst [vmem:[%s1213 + $0xc9] sm:$0xff] %v1137
  %1264 = vst [vmem:[%s1213 + $0xd9] sm:$0xff] %v1138
  %1265 = vst [vmem:[%s1213 + $0xe1] sm:$0xff] %v1139
  %1266 = vst [vmem:[%s1213 + $0xf1] sm:$0xff] %v1140
  %1267 = vst [vmem:[%s1213 + $0xf9] sm:$0xff] %v1141
  %1268 = vst [vmem:[%s1213 + $0x109] sm:$0xff] %v1142
  %1269 = vst [vmem:[%s1213 + $0x111] sm:$0xff] %v1143
  %1270 = vst [vmem:[%s1213 + $0x121] sm:$0xff] %v1144
  %1271 = vst [vmem:[%s1213 + $0x129] sm:$0xff] %v1145
  %1272 = vst [vmem:[%s1213 + $0x139] sm:$0xff] %v1146
  %1273 = vst [vmem:[%s1213 + $0x141] sm:$0xff] %v1147
  %1274 = vst [vmem:[%s1213 + $0x151] sm:$0xff] %v1148
  %1275 = vst [vmem:[%s1213 + $0x159] sm:$0xff] %v1149
  %1276 = vst [vmem:[%s1213 + $0x169] sm:$0xff] %v1150
  %1277 = vst [vmem:[%s1213 + $0x171] sm:$0xff] %v1151
  %v1278 = vld [vmem:[#allocation2] sm:$0xff]
  %v1279 = vld [vmem:[#allocation2 + $0x8] sm:$0xff]
  %v1280 = vld [vmem:[#allocation2 + $0x18] sm:$0xff]
  %v1281 = vld [vmem:[#allocation2 + $0x20] sm:$0xff]
  %v1282 = vld [vmem:[#allocation2 + $0x30] sm:$0xff]
  %v1283 = vld [vmem:[#allocation2 + $0x38] sm:$0xff]
  %v1284 = vld [vmem:[#allocation2 + $0x48] sm:$0xff]
  %v1285 = vld [vmem:[#allocation2 + $0x50] sm:$0xff]
  %v1286 = vld [vmem:[#allocation2 + $0x60] sm:$0xff]
  %v1287 = vld [vmem:[#allocation2 + $0x68] sm:$0xff]
  %v1288 = vld [vmem:[#allocation2 + $0x78] sm:$0xff]
  %v1289 = vld [vmem:[#allocation2 + $0x80] sm:$0xff]
  %v1290 = vld [vmem:[#allocation2 + $0x90] sm:$0xff]
  %v1291 = vld [vmem:[#allocation2 + $0x98] sm:$0xff]
  %v1292 = vld [vmem:[#allocation2 + $0xa8] sm:$0xff]
  %v1293 = vld [vmem:[#allocation2 + $0xb0] sm:$0xff]
  %v1294 = vld [vmem:[#allocation2 + $0xc0] sm:$0xff]
  %v1295 = vld [vmem:[#allocation2 + $0xc8] sm:$0xff]
  %v1296 = vld [vmem:[#allocation2 + $0xd8] sm:$0xff]
  %v1297 = vld [vmem:[#allocation2 + $0xe0] sm:$0xff]
  %v1298 = vld [vmem:[#allocation2 + $0xf0] sm:$0xff]
  %v1299 = vld [vmem:[#allocation2 + $0xf8] sm:$0xff]
  %v1300 = vld [vmem:[#allocation2 + $0x108] sm:$0xff]
  %v1301 = vld [vmem:[#allocation2 + $0x110] sm:$0xff]
  %v1302 = vld [vmem:[#allocation2 + $0x120] sm:$0xff]
  %v1303 = vld [vmem:[#allocation2 + $0x128] sm:$0xff]
  %v1304 = vld [vmem:[#allocation2 + $0x138] sm:$0xff]
  %v1305 = vld [vmem:[#allocation2 + $0x140] sm:$0xff]
  %v1306 = vld [vmem:[#allocation2 + $0x150] sm:$0xff]
  %v1307 = vld [vmem:[#allocation2 + $0x158] sm:$0xff]
  %v1308 = vld [vmem:[#allocation2 + $0x168] sm:$0xff]
  %v1309 = vld [vmem:[#allocation2 + $0x170] sm:$0xff]
  %v1310 = vlaneseq
  %v1311 = vshrl.u32 %v1310, 7
  %v1312 = vsub.s32 0, %v1311
  %v1313 = vrot.slane %v1184, %v1312
  %v1314 = vmul.f32 %v1278, %v1313
  %v1315 = vmul.f32 %v1279, %v1313
  %v1316 = vmul.f32 %v1280, %v1313
  %v1317 = vmul.f32 %v1281, %v1313
  %v1318 = vmul.f32 %v1282, %v1313
  %v1319 = vmul.f32 %v1283, %v1313
  %v1320 = vmul.f32 %v1284, %v1313
  %v1321 = vmul.f32 %v1285, %v1313
  %v1322 = vmul.f32 %v1286, %v1313
  %v1323 = vmul.f32 %v1287, %v1313
  %v1324 = vmul.f32 %v1288, %v1313
  %v1325 = vmul.f32 %v1289, %v1313
  %v1326 = vmul.f32 %v1290, %v1313
  %v1327 = vmul.f32 %v1291, %v1313
  %v1328 = vmul.f32 %v1292, %v1313
  %v1329 = vmul.f32 %v1293, %v1313
  %v1330 = vmul.f32 %v1294, %v1313
  %v1331 = vmul.f32 %v1295, %v1313
  %v1332 = vmul.f32 %v1296, %v1313
  %v1333 = vmul.f32 %v1297, %v1313
  %v1334 = vmul.f32 %v1298, %v1313
  %v1335 = vmul.f32 %v1299, %v1313
  %v1336 = vmul.f32 %v1300, %v1313
  %v1337 = vmul.f32 %v1301, %v1313
  %v1338 = vmul.f32 %v1302, %v1313
  %v1339 = vmul.f32 %v1303, %v1313
  %v1340 = vmul.f32 %v1304, %v1313
  %v1341 = vmul.f32 %v1305, %v1313
  %v1342 = vmul.f32 %v1306, %v1313
  %v1343 = vmul.f32 %v1307, %v1313
  %v1344 = vmul.f32 %v1308, %v1313
  %v1345 = vmul.f32 %v1309, %v1313
  %v1346 = vld [vmem:[#allocation2 + $0x1] sm:$0xff]
  %v1347 = vld [vmem:[#allocation2 + $0x9] sm:$0xff]
  %v1348 = vld [vmem:[#allocation2 + $0x19] sm:$0xff]
  %v1349 = vld [vmem:[#allocation2 + $0x21] sm:$0xff]
  %v1350 = vld [vmem:[#allocation2 + $0x31] sm:$0xff]
  %v1351 = vld [vmem:[#allocation2 + $0x39] sm:$0xff]
  %v1352 = vld [vmem:[#allocation2 + $0x49] sm:$0xff]
  %v1353 = vld [vmem:[#allocation2 + $0x51] sm:$0xff]
  %v1354 = vld [vmem:[#allocation2 + $0x61] sm:$0xff]
  %v1355 = vld [vmem:[#allocation2 + $0x69] sm:$0xff]
  %v1356 = vld [vmem:[#allocation2 + $0x79] sm:$0xff]
  %v1357 = vld [vmem:[#allocation2 + $0x81] sm:$0xff]
  %v1358 = vld [vmem:[#allocation2 + $0x91] sm:$0xff]
  %v1359 = vld [vmem:[#allocation2 + $0x99] sm:$0xff]
  %v1360 = vld [vmem:[#allocation2 + $0xa9] sm:$0xff]
  %v1361 = vld [vmem:[#allocation2 + $0xb1] sm:$0xff]
  %v1362 = vld [vmem:[#allocation2 + $0xc1] sm:$0xff]
  %v1363 = vld [vmem:[#allocation2 + $0xc9] sm:$0xff]
  %v1364 = vld [vmem:[#allocation2 + $0xd9] sm:$0xff]
  %v1365 = vld [vmem:[#allocation2 + $0xe1] sm:$0xff]
  %v1366 = vld [vmem:[#allocation2 + $0xf1] sm:$0xff]
  %v1367 = vld [vmem:[#allocation2 + $0xf9] sm:$0xff]
  %v1368 = vld [vmem:[#allocation2 + $0x109] sm:$0xff]
  %v1369 = vld [vmem:[#allocation2 + $0x111] sm:$0xff]
  %v1370 = vld [vmem:[#allocation2 + $0x121] sm:$0xff]
  %v1371 = vld [vmem:[#allocation2 + $0x129] sm:$0xff]
  %v1372 = vld [vmem:[#allocation2 + $0x139] sm:$0xff]
  %v1373 = vld [vmem:[#allocation2 + $0x141] sm:$0xff]
  %v1374 = vld [vmem:[#allocation2 + $0x151] sm:$0xff]
  %v1375 = vld [vmem:[#allocation2 + $0x159] sm:$0xff]
  %v1376 = vld [vmem:[#allocation2 + $0x169] sm:$0xff]
  %v1377 = vld [vmem:[#allocation2 + $0x171] sm:$0xff]
  %v1378 = vlaneseq
  %v1379 = vshrl.u32 %v1378, 7
  %v1380 = vsub.s32 1, %v1379
  %v1381 = vrot.slane %v1184, %v1380
  %v1382 = vmul.f32 %v1346, %v1381
  %v1383 = vmul.f32 %v1347, %v1381
  %v1384 = vmul.f32 %v1348, %v1381
  %v1385 = vmul.f32 %v1349, %v1381
  %v1386 = vmul.f32 %v1350, %v1381
  %v1387 = vmul.f32 %v1351, %v1381
  %v1388 = vmul.f32 %v1352, %v1381
  %v1389 = vmul.f32 %v1353, %v1381
  %v1390 = vmul.f32 %v1354, %v1381
  %v1391 = vmul.f32 %v1355, %v1381
  %v1392 = vmul.f32 %v1356, %v1381
  %v1393 = vmul.f32 %v1357, %v1381
  %v1394 = vmul.f32 %v1358, %v1381
  %v1395 = vmul.f32 %v1359, %v1381
  %v1396 = vmul.f32 %v1360, %v1381
  %v1397 = vmul.f32 %v1361, %v1381
  %v1398 = vmul.f32 %v1362, %v1381
  %v1399 = vmul.f32 %v1363, %v1381
  %v1400 = vmul.f32 %v1364, %v1381
  %v1401 = vmul.f32 %v1365, %v1381
  %v1402 = vmul.f32 %v1366, %v1381
  %v1403 = vmul.f32 %v1367, %v1381
  %v1404 = vmul.f32 %v1368, %v1381
  %v1405 = vmul.f32 %v1369, %v1381
  %v1406 = vmul.f32 %v1370, %v1381
  %v1407 = vmul.f32 %v1371, %v1381
  %v1408 = vmul.f32 %v1372, %v1381
  %v1409 = vmul.f32 %v1373, %v1381
  %v1410 = vmul.f32 %v1374, %v1381
  %v1411 = vmul.f32 %v1375, %v1381
  %v1412 = vmul.f32 %v1376, %v1381
  %v1413 = vmul.f32 %v1377, %v1381
  %v1414 = vadd.f32 %v1314, %v1382
  %v1415 = vadd.f32 %v1315, %v1383
  %v1416 = vadd.f32 %v1316, %v1384
  %v1417 = vadd.f32 %v1317, %v1385
  %v1418 = vadd.f32 %v1318, %v1386
  %v1419 = vadd.f32 %v1319, %v1387
  %v1420 = vadd.f32 %v1320, %v1388
  %v1421 = vadd.f32 %v1321, %v1389
  %v1422 = vadd.f32 %v1322, %v1390
  %v1423 = vadd.f32 %v1323, %v1391
  %v1424 = vadd.f32 %v1324, %v1392
  %v1425 = vadd.f32 %v1325, %v1393
  %v1426 = vadd.f32 %v1326, %v1394
  %v1427 = vadd.f32 %v1327, %v1395
  %v1428 = vadd.f32 %v1328, %v1396
  %v1429 = vadd.f32 %v1329, %v1397
  %v1430 = vadd.f32 %v1330, %v1398
  %v1431 = vadd.f32 %v1331, %v1399
  %v1432 = vadd.f32 %v1332, %v1400
  %v1433 = vadd.f32 %v1333, %v1401
  %v1434 = vadd.f32 %v1334, %v1402
  %v1435 = vadd.f32 %v1335, %v1403
  %v1436 = vadd.f32 %v1336, %v1404
  %v1437 = vadd.f32 %v1337, %v1405
  %v1438 = vadd.f32 %v1338, %v1406
  %v1439 = vadd.f32 %v1339, %v1407
  %v1440 = vadd.f32 %v1340, %v1408
  %v1441 = vadd.f32 %v1341, %v1409
  %v1442 = vadd.f32 %v1342, %v1410
  %v1443 = vadd.f32 %v1343, %v1411
  %v1444 = vadd.f32 %v1344, %v1412
  %v1445 = vadd.f32 %v1345, %v1413
  %v1446 = vld [vmem:[#allocation2 + $0x2] sm:$0xff]
  %v1447 = vld [vmem:[#allocation2 + $0xa] sm:$0xff]
  %v1448 = vld [vmem:[#allocation2 + $0x1a] sm:$0xff]
  %v1449 = vld [vmem:[#allocation2 + $0x22] sm:$0xff]
  %v1450 = vld [vmem:[#allocation2 + $0x32] sm:$0xff]
  %v1451 = vld [vmem:[#allocation2 + $0x3a] sm:$0xff]
  %v1452 = vld [vmem:[#allocation2 + $0x4a] sm:$0xff]
  %v1453 = vld [vmem:[#allocation2 + $0x52] sm:$0xff]
  %v1454 = vld [vmem:[#allocation2 + $0x62] sm:$0xff]
  %v1455 = vld [vmem:[#allocation2 + $0x6a] sm:$0xff]
  %v1456 = vld [vmem:[#allocation2 + $0x7a] sm:$0xff]
  %v1457 = vld [vmem:[#allocation2 + $0x82] sm:$0xff]
  %v1458 = vld [vmem:[#allocation2 + $0x92] sm:$0xff]
  %v1459 = vld [vmem:[#allocation2 + $0x9a] sm:$0xff]
  %v1460 = vld [vmem:[#allocation2 + $0xaa] sm:$0xff]
  %v1461 = vld [vmem:[#allocation2 + $0xb2] sm:$0xff]
  %v1462 = vld [vmem:[#allocation2 + $0xc2] sm:$0xff]
  %v1463 = vld [vmem:[#allocation2 + $0xca] sm:$0xff]
  %v1464 = vld [vmem:[#allocation2 + $0xda] sm:$0xff]
  %v1465 = vld [vmem:[#allocation2 + $0xe2] sm:$0xff]
  %v1466 = vld [vmem:[#allocation2 + $0xf2] sm:$0xff]
  %v1467 = vld [vmem:[#allocation2 + $0xfa] sm:$0xff]
  %v1468 = vld [vmem:[#allocation2 + $0x10a] sm:$0xff]
  %v1469 = vld [vmem:[#allocation2 + $0x112] sm:$0xff]
  %v1470 = vld [vmem:[#allocation2 + $0x122] sm:$0xff]
  %v1471 = vld [vmem:[#allocation2 + $0x12a] sm:$0xff]
  %v1472 = vld [vmem:[#allocation2 + $0x13a] sm:$0xff]
  %v1473 = vld [vmem:[#allocation2 + $0x142] sm:$0xff]
  %v1474 = vld [vmem:[#allocation2 + $0x152] sm:$0xff]
  %v1475 = vld [vmem:[#allocation2 + $0x15a] sm:$0xff]
  %v1476 = vld [vmem:[#allocation2 + $0x16a] sm:$0xff]
  %v1477 = vld [vmem:[#allocation2 + $0x172] sm:$0xff]
  %v1478 = vlaneseq
  %v1479 = vshrl.u32 %v1478, 7
  %v1480 = vsub.s32 2, %v1479
  %v1481 = vrot.slane %v1184, %v1480
  %v1482 = vmul.f32 %v1446, %v1481
  %v1483 = vmul.f32 %v1447, %v1481
  %v1484 = vmul.f32 %v1448, %v1481
  %v1485 = vmul.f32 %v1449, %v1481
  %v1486 = vmul.f32 %v1450, %v1481
  %v1487 = vmul.f32 %v1451, %v1481
  %v1488 = vmul.f32 %v1452, %v1481
  %v1489 = vmul.f32 %v1453, %v1481
  %v1490 = vmul.f32 %v1454, %v1481
  %v1491 = vmul.f32 %v1455, %v1481
  %v1492 = vmul.f32 %v1456, %v1481
  %v1493 = vmul.f32 %v1457, %v1481
  %v1494 = vmul.f32 %v1458, %v1481
  %v1495 = vmul.f32 %v1459, %v1481
  %v1496 = vmul.f32 %v1460, %v1481
  %v1497 = vmul.f32 %v1461, %v1481
  %v1498 = vmul.f32 %v1462, %v1481
  %v1499 = vmul.f32 %v1463, %v1481
  %v1500 = vmul.f32 %v1464, %v1481
  %v1501 = vmul.f32 %v1465, %v1481
  %v1502 = vmul.f32 %v1466, %v1481
  %v1503 = vmul.f32 %v1467, %v1481
  %v1504 = vmul.f32 %v1468, %v1481
  %v1505 = vmul.f32 %v1469, %v1481
  %v1506 = vmul.f32 %v1470, %v1481
  %v1507 = vmul.f32 %v1471, %v1481
  %v1508 = vmul.f32 %v1472, %v1481
  %v1509 = vmul.f32 %v1473, %v1481
  %v1510 = vmul.f32 %v1474, %v1481
  %v1511 = vmul.f32 %v1475, %v1481
  %v1512 = vmul.f32 %v1476, %v1481
  %v1513 = vmul.f32 %v1477, %v1481
  %v1514 = vadd.f32 %v1414, %v1482
  %v1515 = vadd.f32 %v1415, %v1483
  %v1516 = vadd.f32 %v1416, %v1484
  %v1517 = vadd.f32 %v1417, %v1485
  %v1518 = vadd.f32 %v1418, %v1486
  %v1519 = vadd.f32 %v1419, %v1487
  %v1520 = vadd.f32 %v1420, %v1488
  %v1521 = vadd.f32 %v1421, %v1489
  %v1522 = vadd.f32 %v1422, %v1490
  %v1523 = vadd.f32 %v1423, %v1491
  %v1524 = vadd.f32 %v1424, %v1492
  %v1525 = vadd.f32 %v1425, %v1493
  %v1526 = vadd.f32 %v1426, %v1494
  %v1527 = vadd.f32 %v1427, %v1495
  %v1528 = vadd.f32 %v1428, %v1496
  %v1529 = vadd.f32 %v1429, %v1497
  %v1530 = vadd.f32 %v1430, %v1498
  %v1531 = vadd.f32 %v1431, %v1499
  %v1532 = vadd.f32 %v1432, %v1500
  %v1533 = vadd.f32 %v1433, %v1501
  %v1534 = vadd.f32 %v1434, %v1502
  %v1535 = vadd.f32 %v1435, %v1503
  %v1536 = vadd.f32 %v1436, %v1504
  %v1537 = vadd.f32 %v1437, %v1505
  %v1538 = vadd.f32 %v1438, %v1506
  %v1539 = vadd.f32 %v1439, %v1507
  %v1540 = vadd.f32 %v1440, %v1508
  %v1541 = vadd.f32 %v1441, %v1509
  %v1542 = vadd.f32 %v1442, %v1510
  %v1543 = vadd.f32 %v1443, %v1511
  %v1544 = vadd.f32 %v1444, %v1512
  %v1545 = vadd.f32 %v1445, %v1513
  %v1546 = vld [vmem:[%s1213] sm:$0xff]
  %v1547 = vld [vmem:[%s1213 + $0x8] sm:$0xff]
  %v1548 = vld [vmem:[%s1213 + $0x18] sm:$0xff]
  %v1549 = vld [vmem:[%s1213 + $0x20] sm:$0xff]
  %v1550 = vld [vmem:[%s1213 + $0x30] sm:$0xff]
  %v1551 = vld [vmem:[%s1213 + $0x38] sm:$0xff]
  %v1552 = vld [vmem:[%s1213 + $0x48] sm:$0xff]
  %v1553 = vld [vmem:[%s1213 + $0x50] sm:$0xff]
  %v1554 = vld [vmem:[%s1213 + $0x60] sm:$0xff]
  %v1555 = vld [vmem:[%s1213 + $0x68] sm:$0xff]
  %v1556 = vld [vmem:[%s1213 + $0x78] sm:$0xff]
  %v1557 = vld [vmem:[%s1213 + $0x80] sm:$0xff]
  %v1558 = vld [vmem:[%s1213 + $0x90] sm:$0xff]
  %v1559 = vld [vmem:[%s1213 + $0x98] sm:$0xff]
  %v1560 = vld [vmem:[%s1213 + $0xa8] sm:$0xff]
  %v1561 = vld [vmem:[%s1213 + $0xb0] sm:$0xff]
  %v1562 = vld [vmem:[%s1213 + $0xc0] sm:$0xff]
  %v1563 = vld [vmem:[%s1213 + $0xc8] sm:$0xff]
  %v1564 = vld [vmem:[%s1213 + $0xd8] sm:$0xff]
  %v1565 = vld [vmem:[%s1213 + $0xe0] sm:$0xff]
  %v1566 = vld [vmem:[%s1213 + $0xf0] sm:$0xff]
  %v1567 = vld [vmem:[%s1213 + $0xf8] sm:$0xff]
  %v1568 = vld [vmem:[%s1213 + $0x108] sm:$0xff]
  %v1569 = vld [vmem:[%s1213 + $0x110] sm:$0xff]
  %v1570 = vld [vmem:[%s1213 + $0x120] sm:$0xff]
  %v1571 = vld [vmem:[%s1213 + $0x128] sm:$0xff]
  %v1572 = vld [vmem:[%s1213 + $0x138] sm:$0xff]
  %v1573 = vld [vmem:[%s1213 + $0x140] sm:$0xff]
  %v1574 = vld [vmem:[%s1213 + $0x150] sm:$0xff]
  %v1575 = vld [vmem:[%s1213 + $0x158] sm:$0xff]
  %v1576 = vld [vmem:[%s1213 + $0x168] sm:$0xff]
  %v1577 = vld [vmem:[%s1213 + $0x170] sm:$0xff]
  %v1578 = vlaneseq
  %v1579 = vshrl.u32 %v1578, 7
  %v1580 = vsub.s32 3, %v1579
  %v1581 = vrot.slane %v1184, %v1580
  %v1582 = vmul.f32 %v1546, %v1581
  %v1583 = vmul.f32 %v1547, %v1581
  %v1584 = vmul.f32 %v1548, %v1581
  %v1585 = vmul.f32 %v1549, %v1581
  %v1586 = vmul.f32 %v1550, %v1581
  %v1587 = vmul.f32 %v1551, %v1581
  %v1588 = vmul.f32 %v1552, %v1581
  %v1589 = vmul.f32 %v1553, %v1581
  %v1590 = vmul.f32 %v1554, %v1581
  %v1591 = vmul.f32 %v1555, %v1581
  %v1592 = vmul.f32 %v1556, %v1581
  %v1593 = vmul.f32 %v1557, %v1581
  %v1594 = vmul.f32 %v1558, %v1581
  %v1595 = vmul.f32 %v1559, %v1581
  %v1596 = vmul.f32 %v1560, %v1581
  %v1597 = vmul.f32 %v1561, %v1581
  %v1598 = vmul.f32 %v1562, %v1581
  %v1599 = vmul.f32 %v1563, %v1581
  %v1600 = vmul.f32 %v1564, %v1581
  %v1601 = vmul.f32 %v1565, %v1581
  %v1602 = vmul.f32 %v1566, %v1581
  %v1603 = vmul.f32 %v1567, %v1581
  %v1604 = vmul.f32 %v1568, %v1581
  %v1605 = vmul.f32 %v1569, %v1581
  %v1606 = vmul.f32 %v1570, %v1581
  %v1607 = vmul.f32 %v1571, %v1581
  %v1608 = vmul.f32 %v1572, %v1581
  %v1609 = vmul.f32 %v1573, %v1581
  %v1610 = vmul.f32 %v1574, %v1581
  %v1611 = vmul.f32 %v1575, %v1581
  %v1612 = vmul.f32 %v1576, %v1581
  %v1613 = vmul.f32 %v1577, %v1581
  %v1614 = vadd.f32 %v1514, %v1582
  %v1615 = vadd.f32 %v1515, %v1583
  %v1616 = vadd.f32 %v1516, %v1584
  %v1617 = vadd.f32 %v1517, %v1585
  %v1618 = vadd.f32 %v1518, %v1586
  %v1619 = vadd.f32 %v1519, %v1587
  %v1620 = vadd.f32 %v1520, %v1588
  %v1621 = vadd.f32 %v1521, %v1589
  %v1622 = vadd.f32 %v1522, %v1590
  %v1623 = vadd.f32 %v1523, %v1591
  %v1624 = vadd.f32 %v1524, %v1592
  %v1625 = vadd.f32 %v1525, %v1593
  %v1626 = vadd.f32 %v1526, %v1594
  %v1627 = vadd.f32 %v1527, %v1595
  %v1628 = vadd.f32 %v1528, %v1596
  %v1629 = vadd.f32 %v1529, %v1597
  %v1630 = vadd.f32 %v1530, %v1598
  %v1631 = vadd.f32 %v1531, %v1599
  %v1632 = vadd.f32 %v1532, %v1600
  %v1633 = vadd.f32 %v1533, %v1601
  %v1634 = vadd.f32 %v1534, %v1602
  %v1635 = vadd.f32 %v1535, %v1603
  %v1636 = vadd.f32 %v1536, %v1604
  %v1637 = vadd.f32 %v1537, %v1605
  %v1638 = vadd.f32 %v1538, %v1606
  %v1639 = vadd.f32 %v1539, %v1607
  %v1640 = vadd.f32 %v1540, %v1608
  %v1641 = vadd.f32 %v1541, %v1609
  %v1642 = vadd.f32 %v1542, %v1610
  %v1643 = vadd.f32 %v1543, %v1611
  %v1644 = vadd.f32 %v1544, %v1612
  %v1645 = vadd.f32 %v1545, %v1613
  %v1646 = vld [vmem:[%s1213 + $0x1] sm:$0xff]
  %v1647 = vld [vmem:[%s1213 + $0x9] sm:$0xff]
  %v1648 = vld [vmem:[%s1213 + $0x19] sm:$0xff]
  %v1649 = vld [vmem:[%s1213 + $0x21] sm:$0xff]
  %v1650 = vld [vmem:[%s1213 + $0x31] sm:$0xff]
  %v1651 = vld [vmem:[%s1213 + $0x39] sm:$0xff]
  %v1652 = vld [vmem:[%s1213 + $0x49] sm:$0xff]
  %v1653 = vld [vmem:[%s1213 + $0x51] sm:$0xff]
  %v1654 = vld [vmem:[%s1213 + $0x61] sm:$0xff]
  %v1655 = vld [vmem:[%s1213 + $0x69] sm:$0xff]
  %v1656 = vld [vmem:[%s1213 + $0x79] sm:$0xff]
  %v1657 = vld [vmem:[%s1213 + $0x81] sm:$0xff]
  %v1658 = vld [vmem:[%s1213 + $0x91] sm:$0xff]
  %v1659 = vld [vmem:[%s1213 + $0x99] sm:$0xff]
  %v1660 = vld [vmem:[%s1213 + $0xa9] sm:$0xff]
  %v1661 = vld [vmem:[%s1213 + $0xb1] sm:$0xff]
  %v1662 = vld [vmem:[%s1213 + $0xc1] sm:$0xff]
  %v1663 = vld [vmem:[%s1213 + $0xc9] sm:$0xff]
  %v1664 = vld [vmem:[%s1213 + $0xd9] sm:$0xff]
  %v1665 = vld [vmem:[%s1213 + $0xe1] sm:$0xff]
  %v1666 = vld [vmem:[%s1213 + $0xf1] sm:$0xff]
  %v1667 = vld [vmem:[%s1213 + $0xf9] sm:$0xff]
  %v1668 = vld [vmem:[%s1213 + $0x109] sm:$0xff]
  %v1669 = vld [vmem:[%s1213 + $0x111] sm:$0xff]
  %v1670 = vld [vmem:[%s1213 + $0x121] sm:$0xff]
  %v1671 = vld [vmem:[%s1213 + $0x129] sm:$0xff]
  %v1672 = vld [vmem:[%s1213 + $0x139] sm:$0xff]
  %v1673 = vld [vmem:[%s1213 + $0x141] sm:$0xff]
  %v1674 = vld [vmem:[%s1213 + $0x151] sm:$0xff]
  %v1675 = vld [vmem:[%s1213 + $0x159] sm:$0xff]
  %v1676 = vld [vmem:[%s1213 + $0x169] sm:$0xff]
  %v1677 = vld [vmem:[%s1213 + $0x171] sm:$0xff]
  %v1678 = vlaneseq
  %v1679 = vshrl.u32 %v1678, 7
  %v1680 = vsub.s32 4, %v1679
  %v1681 = vrot.slane %v1184, %v1680
  %v1682 = vmul.f32 %v1646, %v1681
  %v1683 = vmul.f32 %v1647, %v1681
  %v1684 = vmul.f32 %v1648, %v1681
  %v1685 = vmul.f32 %v1649, %v1681
  %v1686 = vmul.f32 %v1650, %v1681
  %v1687 = vmul.f32 %v1651, %v1681
  %v1688 = vmul.f32 %v1652, %v1681
  %v1689 = vmul.f32 %v1653, %v1681
  %v1690 = vmul.f32 %v1654, %v1681
  %v1691 = vmul.f32 %v1655, %v1681
  %v1692 = vmul.f32 %v1656, %v1681
  %v1693 = vmul.f32 %v1657, %v1681
  %v1694 = vmul.f32 %v1658, %v1681
  %v1695 = vmul.f32 %v1659, %v1681
  %v1696 = vmul.f32 %v1660, %v1681
  %v1697 = vmul.f32 %v1661, %v1681
  %v1698 = vmul.f32 %v1662, %v1681
  %v1699 = vmul.f32 %v1663, %v1681
  %v1700 = vmul.f32 %v1664, %v1681
  %v1701 = vmul.f32 %v1665, %v1681
  %v1702 = vmul.f32 %v1666, %v1681
  %v1703 = vmul.f32 %v1667, %v1681
  %v1704 = vmul.f32 %v1668, %v1681
  %v1705 = vmul.f32 %v1669, %v1681
  %v1706 = vmul.f32 %v1670, %v1681
  %v1707 = vmul.f32 %v1671, %v1681
  %v1708 = vmul.f32 %v1672, %v1681
  %v1709 = vmul.f32 %v1673, %v1681
  %v1710 = vmul.f32 %v1674, %v1681
  %v1711 = vmul.f32 %v1675, %v1681
  %v1712 = vmul.f32 %v1676, %v1681
  %v1713 = vmul.f32 %v1677, %v1681
  %v1714 = vadd.f32 %v1614, %v1682
  %v1715 = vadd.f32 %v1615, %v1683
  %v1716 = vadd.f32 %v1616, %v1684
  %v1717 = vadd.f32 %v1617, %v1685
  %v1718 = vadd.f32 %v1618, %v1686
  %v1719 = vadd.f32 %v1619, %v1687
  %v1720 = vadd.f32 %v1620, %v1688
  %v1721 = vadd.f32 %v1621, %v1689
  %v1722 = vadd.f32 %v1622, %v1690
  %v1723 = vadd.f32 %v1623, %v1691
  %v1724 = vadd.f32 %v1624, %v1692
  %v1725 = vadd.f32 %v1625, %v1693
  %v1726 = vadd.f32 %v1626, %v1694
  %v1727 = vadd.f32 %v1627, %v1695
  %v1728 = vadd.f32 %v1628, %v1696
  %v1729 = vadd.f32 %v1629, %v1697
  %v1730 = vadd.f32 %v1630, %v1698
  %v1731 = vadd.f32 %v1631, %v1699
  %v1732 = vadd.f32 %v1632, %v1700
  %v1733 = vadd.f32 %v1633, %v1701
  %v1734 = vadd.f32 %v1634, %v1702
  %v1735 = vadd.f32 %v1635, %v1703
  %v1736 = vadd.f32 %v1636, %v1704
  %v1737 = vadd.f32 %v1637, %v1705
  %v1738 = vadd.f32 %v1638, %v1706
  %v1739 = vadd.f32 %v1639, %v1707
  %v1740 = vadd.f32 %v1640, %v1708
  %v1741 = vadd.f32 %v1641, %v1709
  %v1742 = vadd.f32 %v1642, %v1710
  %v1743 = vadd.f32 %v1643, %v1711
  %v1744 = vadd.f32 %v1644, %v1712
  %v1745 = vadd.f32 %v1645, %v1713
  %v1746 = vld [vmem:[%s1213 + $0x2] sm:$0xff]
  %v1747 = vld [vmem:[%s1213 + $0xa] sm:$0xff]
  %v1748 = vld [vmem:[%s1213 + $0x1a] sm:$0xff]
  %v1749 = vld [vmem:[%s1213 + $0x22] sm:$0xff]
  %v1750 = vld [vmem:[%s1213 + $0x32] sm:$0xff]
  %v1751 = vld [vmem:[%s1213 + $0x3a] sm:$0xff]
  %v1752 = vld [vmem:[%s1213 + $0x4a] sm:$0xff]
  %v1753 = vld [vmem:[%s1213 + $0x52] sm:$0xff]
  %v1754 = vld [vmem:[%s1213 + $0x62] sm:$0xff]
  %v1755 = vld [vmem:[%s1213 + $0x6a] sm:$0xff]
  %v1756 = vld [vmem:[%s1213 + $0x7a] sm:$0xff]
  %v1757 = vld [vmem:[%s1213 + $0x82] sm:$0xff]
  %v1758 = vld [vmem:[%s1213 + $0x92] sm:$0xff]
  %v1759 = vld [vmem:[%s1213 + $0x9a] sm:$0xff]
  %v1760 = vld [vmem:[%s1213 + $0xaa] sm:$0xff]
  %v1761 = vld [vmem:[%s1213 + $0xb2] sm:$0xff]
  %v1762 = vld [vmem:[%s1213 + $0xc2] sm:$0xff]
  %v1763 = vld [vmem:[%s1213 + $0xca] sm:$0xff]
  %v1764 = vld [vmem:[%s1213 + $0xda] sm:$0xff]
  %v1765 = vld [vmem:[%s1213 + $0xe2] sm:$0xff]
  %v1766 = vld [vmem:[%s1213 + $0xf2] sm:$0xff]
  %v1767 = vld [vmem:[%s1213 + $0xfa] sm:$0xff]
  %v1768 = vld [vmem:[%s1213 + $0x10a] sm:$0xff]
  %v1769 = vld [vmem:[%s1213 + $0x112] sm:$0xff]
  %v1770 = vld [vmem:[%s1213 + $0x122] sm:$0xff]
  %v1771 = vld [vmem:[%s1213 + $0x12a] sm:$0xff]
  %v1772 = vld [vmem:[%s1213 + $0x13a] sm:$0xff]
  %v1773 = vld [vmem:[%s1213 + $0x142] sm:$0xff]
  %v1774 = vld [vmem:[%s1213 + $0x152] sm:$0xff]
  %v1775 = vld [vmem:[%s1213 + $0x15a] sm:$0xff]
  %v1776 = vld [vmem:[%s1213 + $0x16a] sm:$0xff]
  %v1777 = vld [vmem:[%s1213 + $0x172] sm:$0xff]
  %v1778 = vlaneseq
  %v1779 = vshrl.u32 %v1778, 7
  %v1780 = vsub.s32 5, %v1779
  %v1781 = vrot.slane %v1184, %v1780
  %v1782 = vmul.f32 %v1746, %v1781
  %v1783 = vmul.f32 %v1747, %v1781
  %v1784 = vmul.f32 %v1748, %v1781
  %v1785 = vmul.f32 %v1749, %v1781
  %v1786 = vmul.f32 %v1750, %v1781
  %v1787 = vmul.f32 %v1751, %v1781
  %v1788 = vmul.f32 %v1752, %v1781
  %v1789 = vmul.f32 %v1753, %v1781
  %v1790 = vmul.f32 %v1754, %v1781
  %v1791 = vmul.f32 %v1755, %v1781
  %v1792 = vmul.f32 %v1756, %v1781
  %v1793 = vmul.f32 %v1757, %v1781
  %v1794 = vmul.f32 %v1758, %v1781
  %v1795 = vmul.f32 %v1759, %v1781
  %v1796 = vmul.f32 %v1760, %v1781
  %v1797 = vmul.f32 %v1761, %v1781
  %v1798 = vmul.f32 %v1762, %v1781
  %v1799 = vmul.f32 %v1763, %v1781
  %v1800 = vmul.f32 %v1764, %v1781
  %v1801 = vmul.f32 %v1765, %v1781
  %v1802 = vmul.f32 %v1766, %v1781
  %v1803 = vmul.f32 %v1767, %v1781
  %v1804 = vmul.f32 %v1768, %v1781
  %v1805 = vmul.f32 %v1769, %v1781
  %v1806 = vmul.f32 %v1770, %v1781
  %v1807 = vmul.f32 %v1771, %v1781
  %v1808 = vmul.f32 %v1772, %v1781
  %v1809 = vmul.f32 %v1773, %v1781
  %v1810 = vmul.f32 %v1774, %v1781
  %v1811 = vmul.f32 %v1775, %v1781
  %v1812 = vmul.f32 %v1776, %v1781
  %v1813 = vmul.f32 %v1777, %v1781
  %v1814 = vadd.f32 %v1714, %v1782
  %v1815 = vadd.f32 %v1715, %v1783
  %v1816 = vadd.f32 %v1716, %v1784
  %v1817 = vadd.f32 %v1717, %v1785
  %v1818 = vadd.f32 %v1718, %v1786
  %v1819 = vadd.f32 %v1719, %v1787
  %v1820 = vadd.f32 %v1720, %v1788
  %v1821 = vadd.f32 %v1721, %v1789
  %v1822 = vadd.f32 %v1722, %v1790
  %v1823 = vadd.f32 %v1723, %v1791
  %v1824 = vadd.f32 %v1724, %v1792
  %v1825 = vadd.f32 %v1725, %v1793
  %v1826 = vadd.f32 %v1726, %v1794
  %v1827 = vadd.f32 %v1727, %v1795
  %v1828 = vadd.f32 %v1728, %v1796
  %v1829 = vadd.f32 %v1729, %v1797
  %v1830 = vadd.f32 %v1730, %v1798
  %v1831 = vadd.f32 %v1731, %v1799
  %v1832 = vadd.f32 %v1732, %v1800
  %v1833 = vadd.f32 %v1733, %v1801
  %v1834 = vadd.f32 %v1734, %v1802
  %v1835 = vadd.f32 %v1735, %v1803
  %v1836 = vadd.f32 %v1736, %v1804
  %v1837 = vadd.f32 %v1737, %v1805
  %v1838 = vadd.f32 %v1738, %v1806
  %v1839 = vadd.f32 %v1739, %v1807
  %v1840 = vadd.f32 %v1740, %v1808
  %v1841 = vadd.f32 %v1741, %v1809
  %v1842 = vadd.f32 %v1742, %v1810
  %v1843 = vadd.f32 %v1743, %v1811
  %v1844 = vadd.f32 %v1744, %v1812
  %v1845 = vadd.f32 %v1745, %v1813
  %s1846 = scalar_lea.vmem [#allocation2], 48
  %v1847 = vld [vmem:[%s1846] sm:$0xff]
  %v1848 = vld [vmem:[%s1846 + $0x8] sm:$0xff]
  %v1849 = vld [vmem:[%s1846 + $0x18] sm:$0xff]
  %v1850 = vld [vmem:[%s1846 + $0x20] sm:$0xff]
  %v1851 = vld [vmem:[%s1846 + $0x30] sm:$0xff]
  %v1852 = vld [vmem:[%s1846 + $0x38] sm:$0xff]
  %v1853 = vld [vmem:[%s1846 + $0x48] sm:$0xff]
  %v1854 = vld [vmem:[%s1846 + $0x50] sm:$0xff]
  %v1855 = vld [vmem:[%s1846 + $0x60] sm:$0xff]
  %v1856 = vld [vmem:[%s1846 + $0x68] sm:$0xff]
  %v1857 = vld [vmem:[%s1846 + $0x78] sm:$0xff]
  %v1858 = vld [vmem:[%s1846 + $0x80] sm:$0xff]
  %v1859 = vld [vmem:[%s1846 + $0x90] sm:$0xff]
  %v1860 = vld [vmem:[%s1846 + $0x98] sm:$0xff]
  %v1861 = vld [vmem:[%s1846 + $0xa8] sm:$0xff]
  %v1862 = vld [vmem:[%s1846 + $0xb0] sm:$0xff]
  %v1863 = vld [vmem:[%s1846 + $0xc0] sm:$0xff]
  %v1864 = vld [vmem:[%s1846 + $0xc8] sm:$0xff]
  %v1865 = vld [vmem:[%s1846 + $0xd8] sm:$0xff]
  %v1866 = vld [vmem:[%s1846 + $0xe0] sm:$0xff]
  %v1867 = vld [vmem:[%s1846 + $0xf0] sm:$0xff]
  %v1868 = vld [vmem:[%s1846 + $0xf8] sm:$0xff]
  %v1869 = vld [vmem:[%s1846 + $0x108] sm:$0xff]
  %v1870 = vld [vmem:[%s1846 + $0x110] sm:$0xff]
  %v1871 = vld [vmem:[%s1846 + $0x120] sm:$0xff]
  %v1872 = vld [vmem:[%s1846 + $0x128] sm:$0xff]
  %v1873 = vld [vmem:[%s1846 + $0x138] sm:$0xff]
  %v1874 = vld [vmem:[%s1846 + $0x140] sm:$0xff]
  %v1875 = vld [vmem:[%s1846 + $0x150] sm:$0xff]
  %v1876 = vld [vmem:[%s1846 + $0x158] sm:$0xff]
  %v1877 = vld [vmem:[%s1846 + $0x168] sm:$0xff]
  %v1878 = vld [vmem:[%s1846 + $0x170] sm:$0xff]
  %v1879 = vlaneseq
  %v1880 = vshrl.u32 %v1879, 7
  %v1881 = vsub.s32 6, %v1880
  %v1882 = vrot.slane %v1184, %v1881
  %v1883 = vmul.f32 %v1847, %v1882
  %v1884 = vmul.f32 %v1848, %v1882
  %v1885 = vmul.f32 %v1849, %v1882
  %v1886 = vmul.f32 %v1850, %v1882
  %v1887 = vmul.f32 %v1851, %v1882
  %v1888 = vmul.f32 %v1852, %v1882
  %v1889 = vmul.f32 %v1853, %v1882
  %v1890 = vmul.f32 %v1854, %v1882
  %v1891 = vmul.f32 %v1855, %v1882
  %v1892 = vmul.f32 %v1856, %v1882
  %v1893 = vmul.f32 %v1857, %v1882
  %v1894 = vmul.f32 %v1858, %v1882
  %v1895 = vmul.f32 %v1859, %v1882
  %v1896 = vmul.f32 %v1860, %v1882
  %v1897 = vmul.f32 %v1861, %v1882
  %v1898 = vmul.f32 %v1862, %v1882
  %v1899 = vmul.f32 %v1863, %v1882
  %v1900 = vmul.f32 %v1864, %v1882
  %v1901 = vmul.f32 %v1865, %v1882
  %v1902 = vmul.f32 %v1866, %v1882
  %v1903 = vmul.f32 %v1867, %v1882
  %v1904 = vmul.f32 %v1868, %v1882
  %v1905 = vmul.f32 %v1869, %v1882
  %v1906 = vmul.f32 %v1870, %v1882
  %v1907 = vmul.f32 %v1871, %v1882
  %v1908 = vmul.f32 %v1872, %v1882
  %v1909 = vmul.f32 %v1873, %v1882
  %v1910 = vmul.f32 %v1874, %v1882
  %v1911 = vmul.f32 %v1875, %v1882
  %v1912 = vmul.f32 %v1876, %v1882
  %v1913 = vmul.f32 %v1877, %v1882
  %v1914 = vmul.f32 %v1878, %v1882
  %v1915 = vadd.f32 %v1814, %v1883
  %v1916 = vadd.f32 %v1815, %v1884
  %v1917 = vadd.f32 %v1816, %v1885
  %v1918 = vadd.f32 %v1817, %v1886
  %v1919 = vadd.f32 %v1818, %v1887
  %v1920 = vadd.f32 %v1819, %v1888
  %v1921 = vadd.f32 %v1820, %v1889
  %v1922 = vadd.f32 %v1821, %v1890
  %v1923 = vadd.f32 %v1822, %v1891
  %v1924 = vadd.f32 %v1823, %v1892
  %v1925 = vadd.f32 %v1824, %v1893
  %v1926 = vadd.f32 %v1825, %v1894
  %v1927 = vadd.f32 %v1826, %v1895
  %v1928 = vadd.f32 %v1827, %v1896
  %v1929 = vadd.f32 %v1828, %v1897
  %v1930 = vadd.f32 %v1829, %v1898
  %v1931 = vadd.f32 %v1830, %v1899
  %v1932 = vadd.f32 %v1831, %v1900
  %v1933 = vadd.f32 %v1832, %v1901
  %v1934 = vadd.f32 %v1833, %v1902
  %v1935 = vadd.f32 %v1834, %v1903
  %v1936 = vadd.f32 %v1835, %v1904
  %v1937 = vadd.f32 %v1836, %v1905
  %v1938 = vadd.f32 %v1837, %v1906
  %v1939 = vadd.f32 %v1838, %v1907
  %v1940 = vadd.f32 %v1839, %v1908
  %v1941 = vadd.f32 %v1840, %v1909
  %v1942 = vadd.f32 %v1841, %v1910
  %v1943 = vadd.f32 %v1842, %v1911
  %v1944 = vadd.f32 %v1843, %v1912
  %v1945 = vadd.f32 %v1844, %v1913
  %v1946 = vadd.f32 %v1845, %v1914
  %v1947 = vld [vmem:[%s1846 + $0x1] sm:$0xff]
  %v1948 = vld [vmem:[%s1846 + $0x9] sm:$0xff]
  %v1949 = vld [vmem:[%s1846 + $0x19] sm:$0xff]
  %v1950 = vld [vmem:[%s1846 + $0x21] sm:$0xff]
  %v1951 = vld [vmem:[%s1846 + $0x31] sm:$0xff]
  %v1952 = vld [vmem:[%s1846 + $0x39] sm:$0xff]
  %v1953 = vld [vmem:[%s1846 + $0x49] sm:$0xff]
  %v1954 = vld [vmem:[%s1846 + $0x51] sm:$0xff]
  %v1955 = vld [vmem:[%s1846 + $0x61] sm:$0xff]
  %v1956 = vld [vmem:[%s1846 + $0x69] sm:$0xff]
  %v1957 = vld [vmem:[%s1846 + $0x79] sm:$0xff]
  %v1958 = vld [vmem:[%s1846 + $0x81] sm:$0xff]
  %v1959 = vld [vmem:[%s1846 + $0x91] sm:$0xff]
  %v1960 = vld [vmem:[%s1846 + $0x99] sm:$0xff]
  %v1961 = vld [vmem:[%s1846 + $0xa9] sm:$0xff]
  %v1962 = vld [vmem:[%s1846 + $0xb1] sm:$0xff]
  %v1963 = vld [vmem:[%s1846 + $0xc1] sm:$0xff]
  %v1964 = vld [vmem:[%s1846 + $0xc9] sm:$0xff]
  %v1965 = vld [vmem:[%s1846 + $0xd9] sm:$0xff]
  %v1966 = vld [vmem:[%s1846 + $0xe1] sm:$0xff]
  %v1967 = vld [vmem:[%s1846 + $0xf1] sm:$0xff]
  %v1968 = vld [vmem:[%s1846 + $0xf9] sm:$0xff]
  %v1969 = vld [vmem:[%s1846 + $0x109] sm:$0xff]
  %v1970 = vld [vmem:[%s1846 + $0x111] sm:$0xff]
  %v1971 = vld [vmem:[%s1846 + $0x121] sm:$0xff]
  %v1972 = vld [vmem:[%s1846 + $0x129] sm:$0xff]
  %v1973 = vld [vmem:[%s1846 + $0x139] sm:$0xff]
  %v1974 = vld [vmem:[%s1846 + $0x141] sm:$0xff]
  %v1975 = vld [vmem:[%s1846 + $0x151] sm:$0xff]
  %v1976 = vld [vmem:[%s1846 + $0x159] sm:$0xff]
  %v1977 = vld [vmem:[%s1846 + $0x169] sm:$0xff]
  %v1978 = vld [vmem:[%s1846 + $0x171] sm:$0xff]
  %v1979 = vlaneseq
  %v1980 = vshrl.u32 %v1979, 7
  %v1981 = vsub.s32 7, %v1980
  %v1982 = vrot.slane %v1184, %v1981
  %v1983 = vmul.f32 %v1947, %v1982
  %v1984 = vmul.f32 %v1948, %v1982
  %v1985 = vmul.f32 %v1949, %v1982
  %v1986 = vmul.f32 %v1950, %v1982
  %v1987 = vmul.f32 %v1951, %v1982
  %v1988 = vmul.f32 %v1952, %v1982
  %v1989 = vmul.f32 %v1953, %v1982
  %v1990 = vmul.f32 %v1954, %v1982
  %v1991 = vmul.f32 %v1955, %v1982
  %v1992 = vmul.f32 %v1956, %v1982
  %v1993 = vmul.f32 %v1957, %v1982
  %v1994 = vmul.f32 %v1958, %v1982
  %v1995 = vmul.f32 %v1959, %v1982
  %v1996 = vmul.f32 %v1960, %v1982
  %v1997 = vmul.f32 %v1961, %v1982
  %v1998 = vmul.f32 %v1962, %v1982
  %v1999 = vmul.f32 %v1963, %v1982
  %v2000 = vmul.f32 %v1964, %v1982
  %v2001 = vmul.f32 %v1965, %v1982
  %v2002 = vmul.f32 %v1966, %v1982
  %v2003 = vmul.f32 %v1967, %v1982
  %v2004 = vmul.f32 %v1968, %v1982
  %v2005 = vmul.f32 %v1969, %v1982
  %v2006 = vmul.f32 %v1970, %v1982
  %v2007 = vmul.f32 %v1971, %v1982
  %v2008 = vmul.f32 %v1972, %v1982
  %v2009 = vmul.f32 %v1973, %v1982
  %v2010 = vmul.f32 %v1974, %v1982
  %v2011 = vmul.f32 %v1975, %v1982
  %v2012 = vmul.f32 %v1976, %v1982
  %v2013 = vmul.f32 %v1977, %v1982
  %v2014 = vmul.f32 %v1978, %v1982
  %v2015 = vadd.f32 %v1915, %v1983
  %v2016 = vadd.f32 %v1916, %v1984
  %v2017 = vadd.f32 %v1917, %v1985
  %v2018 = vadd.f32 %v1918, %v1986
  %v2019 = vadd.f32 %v1919, %v1987
  %v2020 = vadd.f32 %v1920, %v1988
  %v2021 = vadd.f32 %v1921, %v1989
  %v2022 = vadd.f32 %v1922, %v1990
  %v2023 = vadd.f32 %v1923, %v1991
  %v2024 = vadd.f32 %v1924, %v1992
  %v2025 = vadd.f32 %v1925, %v1993
  %v2026 = vadd.f32 %v1926, %v1994
  %v2027 = vadd.f32 %v1927, %v1995
  %v2028 = vadd.f32 %v1928, %v1996
  %v2029 = vadd.f32 %v1929, %v1997
  %v2030 = vadd.f32 %v1930, %v1998
  %v2031 = vadd.f32 %v1931, %v1999
  %v2032 = vadd.f32 %v1932, %v2000
  %v2033 = vadd.f32 %v1933, %v2001
  %v2034 = vadd.f32 %v1934, %v2002
  %v2035 = vadd.f32 %v1935, %v2003
  %v2036 = vadd.f32 %v1936, %v2004
  %v2037 = vadd.f32 %v1937, %v2005
  %v2038 = vadd.f32 %v1938, %v2006
  %v2039 = vadd.f32 %v1939, %v2007
  %v2040 = vadd.f32 %v1940, %v2008
  %v2041 = vadd.f32 %v1941, %v2009
  %v2042 = vadd.f32 %v1942, %v2010
  %v2043 = vadd.f32 %v1943, %v2011
  %v2044 = vadd.f32 %v1944, %v2012
  %v2045 = vadd.f32 %v1945, %v2013
  %v2046 = vadd.f32 %v1946, %v2014
  %v2047 = vld [vmem:[%s1846 + $0x2] sm:$0xff]
  %v2048 = vld [vmem:[%s1846 + $0xa] sm:$0xff]
  %v2049 = vld [vmem:[%s1846 + $0x1a] sm:$0xff]
  %v2050 = vld [vmem:[%s1846 + $0x22] sm:$0xff]
  %v2051 = vld [vmem:[%s1846 + $0x32] sm:$0xff]
  %v2052 = vld [vmem:[%s1846 + $0x3a] sm:$0xff]
  %v2053 = vld [vmem:[%s1846 + $0x4a] sm:$0xff]
  %v2054 = vld [vmem:[%s1846 + $0x52] sm:$0xff]
  %v2055 = vld [vmem:[%s1846 + $0x62] sm:$0xff]
  %v2056 = vld [vmem:[%s1846 + $0x6a] sm:$0xff]
  %v2057 = vld [vmem:[%s1846 + $0x7a] sm:$0xff]
  %v2058 = vld [vmem:[%s1846 + $0x82] sm:$0xff]
  %v2059 = vld [vmem:[%s1846 + $0x92] sm:$0xff]
  %v2060 = vld [vmem:[%s1846 + $0x9a] sm:$0xff]
  %v2061 = vld [vmem:[%s1846 + $0xaa] sm:$0xff]
  %v2062 = vld [vmem:[%s1846 + $0xb2] sm:$0xff]
  %v2063 = vld [vmem:[%s1846 + $0xc2] sm:$0xff]
  %v2064 = vld [vmem:[%s1846 + $0xca] sm:$0xff]
  %v2065 = vld [vmem:[%s1846 + $0xda] sm:$0xff]
  %v2066 = vld [vmem:[%s1846 + $0xe2] sm:$0xff]
  %v2067 = vld [vmem:[%s1846 + $0xf2] sm:$0xff]
  %v2068 = vld [vmem:[%s1846 + $0xfa] sm:$0xff]
  %v2069 = vld [vmem:[%s1846 + $0x10a] sm:$0xff]
  %v2070 = vld [vmem:[%s1846 + $0x112] sm:$0xff]
  %v2071 = vld [vmem:[%s1846 + $0x122] sm:$0xff]
  %v2072 = vld [vmem:[%s1846 + $0x12a] sm:$0xff]
  %v2073 = vld [vmem:[%s1846 + $0x13a] sm:$0xff]
  %v2074 = vld [vmem:[%s1846 + $0x142] sm:$0xff]
  %v2075 = vld [vmem:[%s1846 + $0x152] sm:$0xff]
  %v2076 = vld [vmem:[%s1846 + $0x15a] sm:$0xff]
  %v2077 = vld [vmem:[%s1846 + $0x16a] sm:$0xff]
  %v2078 = vld [vmem:[%s1846 + $0x172] sm:$0xff]
  %v2079 = vlaneseq
  %v2080 = vshrl.u32 %v2079, 7
  %v2081 = vsub.s32 0, %v2080
  %v2082 = vrot.slane %v1185, %v2081
  %v2083 = vmul.f32 %v2047, %v2082
  %v2084 = vmul.f32 %v2048, %v2082
  %v2085 = vmul.f32 %v2049, %v2082
  %v2086 = vmul.f32 %v2050, %v2082
  %v2087 = vmul.f32 %v2051, %v2082
  %v2088 = vmul.f32 %v2052, %v2082
  %v2089 = vmul.f32 %v2053, %v2082
  %v2090 = vmul.f32 %v2054, %v2082
  %v2091 = vmul.f32 %v2055, %v2082
  %v2092 = vmul.f32 %v2056, %v2082
  %v2093 = vmul.f32 %v2057, %v2082
  %v2094 = vmul.f32 %v2058, %v2082
  %v2095 = vmul.f32 %v2059, %v2082
  %v2096 = vmul.f32 %v2060, %v2082
  %v2097 = vmul.f32 %v2061, %v2082
  %v2098 = vmul.f32 %v2062, %v2082
  %v2099 = vmul.f32 %v2063, %v2082
  %v2100 = vmul.f32 %v2064, %v2082
  %v2101 = vmul.f32 %v2065, %v2082
  %v2102 = vmul.f32 %v2066, %v2082
  %v2103 = vmul.f32 %v2067, %v2082
  %v2104 = vmul.f32 %v2068, %v2082
  %v2105 = vmul.f32 %v2069, %v2082
  %v2106 = vmul.f32 %v2070, %v2082
  %v2107 = vmul.f32 %v2071, %v2082
  %v2108 = vmul.f32 %v2072, %v2082
  %v2109 = vmul.f32 %v2073, %v2082
  %v2110 = vmul.f32 %v2074, %v2082
  %v2111 = vmul.f32 %v2075, %v2082
  %v2112 = vmul.f32 %v2076, %v2082
  %v2113 = vmul.f32 %v2077, %v2082
  %v2114 = vmul.f32 %v2078, %v2082
  %v2115 = vadd.f32 %v2015, %v2083
  %v2116 = vadd.f32 %v2016, %v2084
  %v2117 = vadd.f32 %v2017, %v2085
  %v2118 = vadd.f32 %v2018, %v2086
  %v2119 = vadd.f32 %v2019, %v2087
  %v2120 = vadd.f32 %v2020, %v2088
  %v2121 = vadd.f32 %v2021, %v2089
  %v2122 = vadd.f32 %v2022, %v2090
  %v2123 = vadd.f32 %v2023, %v2091
  %v2124 = vadd.f32 %v2024, %v2092
  %v2125 = vadd.f32 %v2025, %v2093
  %v2126 = vadd.f32 %v2026, %v2094
  %v2127 = vadd.f32 %v2027, %v2095
  %v2128 = vadd.f32 %v2028, %v2096
  %v2129 = vadd.f32 %v2029, %v2097
  %v2130 = vadd.f32 %v2030, %v2098
  %v2131 = vadd.f32 %v2031, %v2099
  %v2132 = vadd.f32 %v2032, %v2100
  %v2133 = vadd.f32 %v2033, %v2101
  %v2134 = vadd.f32 %v2034, %v2102
  %v2135 = vadd.f32 %v2035, %v2103
  %v2136 = vadd.f32 %v2036, %v2104
  %v2137 = vadd.f32 %v2037, %v2105
  %v2138 = vadd.f32 %v2038, %v2106
  %v2139 = vadd.f32 %v2039, %v2107
  %v2140 = vadd.f32 %v2040, %v2108
  %v2141 = vadd.f32 %v2041, %v2109
  %v2142 = vadd.f32 %v2042, %v2110
  %v2143 = vadd.f32 %v2043, %v2111
  %v2144 = vadd.f32 %v2044, %v2112
  %v2145 = vadd.f32 %v2045, %v2113
  %v2146 = vadd.f32 %v2046, %v2114
  %v2148 = vlaneseq
  %v2149 = vshrl.u32 %v2148, 7
  %v2150 = vsub.s32 0, %v2149
  %v2151 = vrot.slane %v1186, %v2150
  %v2153 = vadd.f32 %v2115, %v2151
  %v2154 = vadd.f32 %v2116, %v2151
  %v2155 = vadd.f32 %v2117, %v2151
  %v2156 = vadd.f32 %v2118, %v2151
  %v2157 = vadd.f32 %v2119, %v2151
  %v2158 = vadd.f32 %v2120, %v2151
  %v2159 = vadd.f32 %v2121, %v2151
  %v2160 = vadd.f32 %v2122, %v2151
  %v2161 = vadd.f32 %v2123, %v2151
  %v2162 = vadd.f32 %v2124, %v2151
  %v2163 = vadd.f32 %v2125, %v2151
  %v2164 = vadd.f32 %v2126, %v2151
  %v2165 = vadd.f32 %v2127, %v2151
  %v2166 = vadd.f32 %v2128, %v2151
  %v2167 = vadd.f32 %v2129, %v2151
  %v2168 = vadd.f32 %v2130, %v2151
  %v2169 = vadd.f32 %v2131, %v2151
  %v2170 = vadd.f32 %v2132, %v2151
  %v2171 = vadd.f32 %v2133, %v2151
  %v2172 = vadd.f32 %v2134, %v2151
  %v2173 = vadd.f32 %v2135, %v2151
  %v2174 = vadd.f32 %v2136, %v2151
  %v2175 = vadd.f32 %v2137, %v2151
  %v2176 = vadd.f32 %v2138, %v2151
  %v2177 = vadd.f32 %v2139, %v2151
  %v2178 = vadd.f32 %v2140, %v2151
  %v2179 = vadd.f32 %v2141, %v2151
  %v2180 = vadd.f32 %v2142, %v2151
  %v2181 = vadd.f32 %v2143, %v2151
  %v2182 = vadd.f32 %v2144, %v2151
  %v2183 = vadd.f32 %v2145, %v2151
  %v2184 = vadd.f32 %v2146, %v2151
  %v2185 = vand.u32 2147483647, %v2153
  %v2186 = vand.u32 2147483647, %v2154
  %v2187 = vand.u32 2147483647, %v2155
  %v2188 = vand.u32 2147483647, %v2156
  %v2189 = vand.u32 2147483647, %v2157
  %v2190 = vand.u32 2147483647, %v2158
  %v2191 = vand.u32 2147483647, %v2159
  %v2192 = vand.u32 2147483647, %v2160
  %v2193 = vand.u32 2147483647, %v2161
  %v2194 = vand.u32 2147483647, %v2162
  %v2195 = vand.u32 2147483647, %v2163
  %v2196 = vand.u32 2147483647, %v2164
  %v2197 = vand.u32 2147483647, %v2165
  %v2198 = vand.u32 2147483647, %v2166
  %v2199 = vand.u32 2147483647, %v2167
  %v2200 = vand.u32 2147483647, %v2168
  %v2201 = vand.u32 2147483647, %v2169
  %v2202 = vand.u32 2147483647, %v2170
  %v2203 = vand.u32 2147483647, %v2171
  %v2204 = vand.u32 2147483647, %v2172
  %v2205 = vand.u32 2147483647, %v2173
  %v2206 = vand.u32 2147483647, %v2174
  %v2207 = vand.u32 2147483647, %v2175
  %v2208 = vand.u32 2147483647, %v2176
  %v2209 = vand.u32 2147483647, %v2177
  %v2210 = vand.u32 2147483647, %v2178
  %v2211 = vand.u32 2147483647, %v2179
  %v2212 = vand.u32 2147483647, %v2180
  %v2213 = vand.u32 2147483647, %v2181
  %v2214 = vand.u32 2147483647, %v2182
  %v2215 = vand.u32 2147483647, %v2183
  %v2216 = vand.u32 2147483647, %v2184
  %v2217 = vsub.f32 0.0, %v2185
  %v2218 = vsub.f32 0.0, %v2186
  %v2219 = vsub.f32 0.0, %v2187
  %v2220 = vsub.f32 0.0, %v2188
  %v2221 = vsub.f32 0.0, %v2189
  %v2222 = vsub.f32 0.0, %v2190
  %v2223 = vsub.f32 0.0, %v2191
  %v2224 = vsub.f32 0.0, %v2192
  %v2225 = vsub.f32 0.0, %v2193
  %v2226 = vsub.f32 0.0, %v2194
  %v2227 = vsub.f32 0.0, %v2195
  %v2228 = vsub.f32 0.0, %v2196
  %v2229 = vsub.f32 0.0, %v2197
  %v2230 = vsub.f32 0.0, %v2198
  %v2231 = vsub.f32 0.0, %v2199
  %v2232 = vsub.f32 0.0, %v2200
  %v2233 = vsub.f32 0.0, %v2201
  %v2234 = vsub.f32 0.0, %v2202
  %v2235 = vsub.f32 0.0, %v2203
  %v2236 = vsub.f32 0.0, %v2204
  %v2237 = vsub.f32 0.0, %v2205
  %v2238 = vsub.f32 0.0, %v2206
  %v2239 = vsub.f32 0.0, %v2207
  %v2240 = vsub.f32 0.0, %v2208
  %v2241 = vsub.f32 0.0, %v2209
  %v2242 = vsub.f32 0.0, %v2210
  %v2243 = vsub.f32 0.0, %v2211
  %v2244 = vsub.f32 0.0, %v2212
  %v2245 = vsub.f32 0.0, %v2213
  %v2246 = vsub.f32 0.0, %v2214
  %v2247 = vsub.f32 0.0, %v2215
  %v2248 = vsub.f32 0.0, %v2216
  %v2249 = vmul.f32 %v2217, 1.442695
  %v2250 = vpow.pop %v2249
  %v2251 = vmul.f32 %v2218, 1.442695
  %v2252 = vpow.pop %v2251
  %v2253 = vmul.f32 %v2219, 1.442695
  %v2254 = vpow.pop %v2253
  %v2255 = vmul.f32 %v2220, 1.442695
  %v2256 = vpow.pop %v2255
  %v2257 = vmul.f32 %v2221, 1.442695
  %v2258 = vpow.pop %v2257
  %v2259 = vmul.f32 %v2222, 1.442695
  %v2260 = vpow.pop %v2259
  %v2261 = vmul.f32 %v2223, 1.442695
  %v2262 = vpow.pop %v2261
  %v2263 = vmul.f32 %v2224, 1.442695
  %v2264 = vpow.pop %v2263
  %v2265 = vmul.f32 %v2225, 1.442695
  %v2266 = vpow.pop %v2265
  %v2267 = vmul.f32 %v2226, 1.442695
  %v2268 = vpow.pop %v2267
  %v2269 = vmul.f32 %v2227, 1.442695
  %v2270 = vpow.pop %v2269
  %v2271 = vmul.f32 %v2228, 1.442695
  %v2272 = vpow.pop %v2271
  %v2273 = vmul.f32 %v2229, 1.442695
  %v2274 = vpow.pop %v2273
  %v2275 = vmul.f32 %v2230, 1.442695
  %v2276 = vpow.pop %v2275
  %v2277 = vmul.f32 %v2231, 1.442695
  %v2278 = vpow.pop %v2277
  %v2279 = vmul.f32 %v2232, 1.442695
  %v2280 = vpow.pop %v2279
  %v2281 = vmul.f32 %v2233, 1.442695
  %v2282 = vpow.pop %v2281
  %v2283 = vmul.f32 %v2234, 1.442695
  %v2284 = vpow.pop %v2283
  %v2285 = vmul.f32 %v2235, 1.442695
  %v2286 = vpow.pop %v2285
  %v2287 = vmul.f32 %v2236, 1.442695
  %v2288 = vpow.pop %v2287
  %v2289 = vmul.f32 %v2237, 1.442695
  %v2290 = vpow.pop %v2289
  %v2291 = vmul.f32 %v2238, 1.442695
  %v2292 = vpow.pop %v2291
  %v2293 = vmul.f32 %v2239, 1.442695
  %v2294 = vpow.pop %v2293
  %v2295 = vmul.f32 %v2240, 1.442695
  %v2296 = vpow.pop %v2295
  %v2297 = vmul.f32 %v2241, 1.442695
  %v2298 = vpow.pop %v2297
  %v2299 = vmul.f32 %v2242, 1.442695
  %v2300 = vpow.pop %v2299
  %v2301 = vmul.f32 %v2243, 1.442695
  %v2302 = vpow.pop %v2301
  %v2303 = vmul.f32 %v2244, 1.442695
  %v2304 = vpow.pop %v2303
  %v2305 = vmul.f32 %v2245, 1.442695
  %v2306 = vpow.pop %v2305
  %v2307 = vmul.f32 %v2246, 1.442695
  %v2308 = vpow.pop %v2307
  %v2309 = vmul.f32 %v2247, 1.442695
  %v2310 = vpow.pop %v2309
  %v2311 = vmul.f32 %v2248, 1.442695
  %v2312 = vpow.pop %v2311
  %v2313 = vadd.f32 %v2250, 1.0
  %v2314 = vadd.f32 %v2252, 1.0
  %v2315 = vadd.f32 %v2254, 1.0
  %v2316 = vadd.f32 %v2256, 1.0
  %v2317 = vadd.f32 %v2258, 1.0
  %v2318 = vadd.f32 %v2260, 1.0
  %v2319 = vadd.f32 %v2262, 1.0
  %v2320 = vadd.f32 %v2264, 1.0
  %v2321 = vadd.f32 %v2266, 1.0
  %v2322 = vadd.f32 %v2268, 1.0
  %v2323 = vadd.f32 %v2270, 1.0
  %v2324 = vadd.f32 %v2272, 1.0
  %v2325 = vadd.f32 %v2274, 1.0
  %v2326 = vadd.f32 %v2276, 1.0
  %v2327 = vadd.f32 %v2278, 1.0
  %v2328 = vadd.f32 %v2280, 1.0
  %v2329 = vadd.f32 %v2282, 1.0
  %v2330 = vadd.f32 %v2284, 1.0
  %v2331 = vadd.f32 %v2286, 1.0
  %v2332 = vadd.f32 %v2288, 1.0
  %v2333 = vadd.f32 %v2290, 1.0
  %v2334 = vadd.f32 %v2292, 1.0
  %v2335 = vadd.f32 %v2294, 1.0
  %v2336 = vadd.f32 %v2296, 1.0
  %v2337 = vadd.f32 %v2298, 1.0
  %v2338 = vadd.f32 %v2300, 1.0
  %v2339 = vadd.f32 %v2302, 1.0
  %v2340 = vadd.f32 %v2304, 1.0
  %v2341 = vadd.f32 %v2306, 1.0
  %v2342 = vadd.f32 %v2308, 1.0
  %v2343 = vadd.f32 %v2310, 1.0
  %v2344 = vadd.f32 %v2312, 1.0
  %v2345 = vrcp.pop %v2313
  %v2346 = vrcp.pop %v2314
  %v2347 = vrcp.pop %v2315
  %v2348 = vrcp.pop %v2316
  %v2349 = vrcp.pop %v2317
  %v2350 = vrcp.pop %v2318
  %v2351 = vrcp.pop %v2319
  %v2352 = vrcp.pop %v2320
  %v2353 = vrcp.pop %v2321
  %v2354 = vrcp.pop %v2322
  %v2355 = vrcp.pop %v2323
  %v2356 = vrcp.pop %v2324
  %v2357 = vrcp.pop %v2325
  %v2358 = vrcp.pop %v2326
  %v2359 = vrcp.pop %v2327
  %v2360 = vrcp.pop %v2328
  %v2361 = vrcp.pop %v2329
  %v2362 = vrcp.pop %v2330
  %v2363 = vrcp.pop %v2331
  %v2364 = vrcp.pop %v2332
  %v2365 = vrcp.pop %v2333
  %v2366 = vrcp.pop %v2334
  %v2367 = vrcp.pop %v2335
  %v2368 = vrcp.pop %v2336
  %v2369 = vrcp.pop %v2337
  %v2370 = vrcp.pop %v2338
  %v2371 = vrcp.pop %v2339
  %v2372 = vrcp.pop %v2340
  %v2373 = vrcp.pop %v2341
  %v2374 = vrcp.pop %v2342
  %v2375 = vrcp.pop %v2343
  %v2376 = vrcp.pop %v2344
  %vm2377 = vcmp.ge.f32.partialorder %v2153, 0.0
  %vm2378 = vcmp.ge.f32.partialorder %v2154, 0.0
  %vm2379 = vcmp.ge.f32.partialorder %v2155, 0.0
  %vm2380 = vcmp.ge.f32.partialorder %v2156, 0.0
  %vm2381 = vcmp.ge.f32.partialorder %v2157, 0.0
  %vm2382 = vcmp.ge.f32.partialorder %v2158, 0.0
  %vm2383 = vcmp.ge.f32.partialorder %v2159, 0.0
  %vm2384 = vcmp.ge.f32.partialorder %v2160, 0.0
  %vm2385 = vcmp.ge.f32.partialorder %v2161, 0.0
  %vm2386 = vcmp.ge.f32.partialorder %v2162, 0.0
  %vm2387 = vcmp.ge.f32.partialorder %v2163, 0.0
  %vm2388 = vcmp.ge.f32.partialorder %v2164, 0.0
  %vm2389 = vcmp.ge.f32.partialorder %v2165, 0.0
  %vm2390 = vcmp.ge.f32.partialorder %v2166, 0.0
  %vm2391 = vcmp.ge.f32.partialorder %v2167, 0.0
  %vm2392 = vcmp.ge.f32.partialorder %v2168, 0.0
  %vm2393 = vcmp.ge.f32.partialorder %v2169, 0.0
  %vm2394 = vcmp.ge.f32.partialorder %v2170, 0.0
  %vm2395 = vcmp.ge.f32.partialorder %v2171, 0.0
  %vm2396 = vcmp.ge.f32.partialorder %v2172, 0.0
  %vm2397 = vcmp.ge.f32.partialorder %v2173, 0.0
  %vm2398 = vcmp.ge.f32.partialorder %v2174, 0.0
  %vm2399 = vcmp.ge.f32.partialorder %v2175, 0.0
  %vm2400 = vcmp.ge.f32.partialorder %v2176, 0.0
  %vm2401 = vcmp.ge.f32.partialorder %v2177, 0.0
  %vm2402 = vcmp.ge.f32.partialorder %v2178, 0.0
  %vm2403 = vcmp.ge.f32.partialorder %v2179, 0.0
  %vm2404 = vcmp.ge.f32.partialorder %v2180, 0.0
  %vm2405 = vcmp.ge.f32.partialorder %v2181, 0.0
  %vm2406 = vcmp.ge.f32.partialorder %v2182, 0.0
  %vm2407 = vcmp.ge.f32.partialorder %v2183, 0.0
  %vm2408 = vcmp.ge.f32.partialorder %v2184, 0.0
  %v2409 = vmul.f32 %v2250, %v2345
  %v2410 = vmul.f32 %v2252, %v2346
  %v2411 = vmul.f32 %v2254, %v2347
  %v2412 = vmul.f32 %v2256, %v2348
  %v2413 = vmul.f32 %v2258, %v2349
  %v2414 = vmul.f32 %v2260, %v2350
  %v2415 = vmul.f32 %v2262, %v2351
  %v2416 = vmul.f32 %v2264, %v2352
  %v2417 = vmul.f32 %v2266, %v2353
  %v2418 = vmul.f32 %v2268, %v2354
  %v2419 = vmul.f32 %v2270, %v2355
  %v2420 = vmul.f32 %v2272, %v2356
  %v2421 = vmul.f32 %v2274, %v2357
  %v2422 = vmul.f32 %v2276, %v2358
  %v2423 = vmul.f32 %v2278, %v2359
  %v2424 = vmul.f32 %v2280, %v2360
  %v2425 = vmul.f32 %v2282, %v2361
  %v2426 = vmul.f32 %v2284, %v2362
  %v2427 = vmul.f32 %v2286, %v2363
  %v2428 = vmul.f32 %v2288, %v2364
  %v2429 = vmul.f32 %v2290, %v2365
  %v2430 = vmul.f32 %v2292, %v2366
  %v2431 = vmul.f32 %v2294, %v2367
  %v2432 = vmul.f32 %v2296, %v2368
  %v2433 = vmul.f32 %v2298, %v2369
  %v2434 = vmul.f32 %v2300, %v2370
  %v2435 = vmul.f32 %v2302, %v2371
  %v2436 = vmul.f32 %v2304, %v2372
  %v2437 = vmul.f32 %v2306, %v2373
  %v2438 = vmul.f32 %v2308, %v2374
  %v2439 = vmul.f32 %v2310, %v2375
  %v2440 = vmul.f32 %v2312, %v2376
  %v2441 = vsel %vm2377, %v2345, %v2409
  %v2442 = vsel %vm2378, %v2346, %v2410
  %v2443 = vsel %vm2379, %v2347, %v2411
  %v2444 = vsel %vm2380, %v2348, %v2412
  %v2445 = vsel %vm2381, %v2349, %v2413
  %v2446 = vsel %vm2382, %v2350, %v2414
  %v2447 = vsel %vm2383, %v2351, %v2415
  %v2448 = vsel %vm2384, %v2352, %v2416
  %v2449 = vsel %vm2385, %v2353, %v2417
  %v2450 = vsel %vm2386, %v2354, %v2418
  %v2451 = vsel %vm2387, %v2355, %v2419
  %v2452 = vsel %vm2388, %v2356, %v2420
  %v2453 = vsel %vm2389, %v2357, %v2421
  %v2454 = vsel %vm2390, %v2358, %v2422
  %v2455 = vsel %vm2391, %v2359, %v2423
  %v2456 = vsel %vm2392, %v2360, %v2424
  %v2457 = vsel %vm2393, %v2361, %v2425
  %v2458 = vsel %vm2394, %v2362, %v2426
  %v2459 = vsel %vm2395, %v2363, %v2427
  %v2460 = vsel %vm2396, %v2364, %v2428
  %v2461 = vsel %vm2397, %v2365, %v2429
  %v2462 = vsel %vm2398, %v2366, %v2430
  %v2463 = vsel %vm2399, %v2367, %v2431
  %v2464 = vsel %vm2400, %v2368, %v2432
  %v2465 = vsel %vm2401, %v2369, %v2433
  %v2466 = vsel %vm2402, %v2370, %v2434
  %v2467 = vsel %vm2403, %v2371, %v2435
  %v2468 = vsel %vm2404, %v2372, %v2436
  %v2469 = vsel %vm2405, %v2373, %v2437
  %v2470 = vsel %vm2406, %v2374, %v2438
  %v2471 = vsel %vm2407, %v2375, %v2439
  %v2472 = vsel %vm2408, %v2376, %v2440
  %v2473 = vmul.f32 %v2153, %v2441
  %v2474 = vmul.f32 %v2154, %v2442
  %v2475 = vmul.f32 %v2155, %v2443
  %v2476 = vmul.f32 %v2156, %v2444
  %v2477 = vmul.f32 %v2157, %v2445
  %v2478 = vmul.f32 %v2158, %v2446
  %v2479 = vmul.f32 %v2159, %v2447
  %v2480 = vmul.f32 %v2160, %v2448
  %v2481 = vmul.f32 %v2161, %v2449
  %v2482 = vmul.f32 %v2162, %v2450
  %v2483 = vmul.f32 %v2163, %v2451
  %v2484 = vmul.f32 %v2164, %v2452
  %v2485 = vmul.f32 %v2165, %v2453
  %v2486 = vmul.f32 %v2166, %v2454
  %v2487 = vmul.f32 %v2167, %v2455
  %v2488 = vmul.f32 %v2168, %v2456
  %v2489 = vmul.f32 %v2169, %v2457
  %v2490 = vmul.f32 %v2170, %v2458
  %v2491 = vmul.f32 %v2171, %v2459
  %v2492 = vmul.f32 %v2172, %v2460
  %v2493 = vmul.f32 %v2173, %v2461
  %v2494 = vmul.f32 %v2174, %v2462
  %v2495 = vmul.f32 %v2175, %v2463
  %v2496 = vmul.f32 %v2176, %v2464
  %v2497 = vmul.f32 %v2177, %v2465
  %v2498 = vmul.f32 %v2178, %v2466
  %v2499 = vmul.f32 %v2179, %v2467
  %v2500 = vmul.f32 %v2180, %v2468
  %v2501 = vmul.f32 %v2181, %v2469
  %v2502 = vmul.f32 %v2182, %v2470
  %v2503 = vmul.f32 %v2183, %v2471
  %v2504 = vmul.f32 %v2184, %v2472
  %v2505 = vadd.f32 %v2473, %v2474
  %v2506 = vadd.f32 %v2505, %v2475
  %v2507 = vadd.f32 %v2506, %v2476
  %v2508 = vadd.f32 %v2507, %v2477
  %v2509 = vadd.f32 %v2508, %v2478
  %v2510 = vadd.f32 %v2509, %v2479
  %v2511 = vadd.f32 %v2510, %v2480
  %v2512 = vadd.f32 %v2511, %v2481
  %v2513 = vadd.f32 %v2512, %v2482
  %v2514 = vadd.f32 %v2513, %v2483
  %v2515 = vadd.f32 %v2514, %v2484
  %v2516 = vadd.f32 %v2515, %v2485
  %v2517 = vadd.f32 %v2516, %v2486
  %v2518 = vadd.f32 %v2517, %v2487
  %v2519 = vadd.f32 %v2518, %v2488
  %v2520 = vadd.f32 %v2519, %v2489
  %v2521 = vadd.f32 %v2520, %v2490
  %v2522 = vadd.f32 %v2521, %v2491
  %v2523 = vadd.f32 %v2522, %v2492
  %v2524 = vadd.f32 %v2523, %v2493
  %v2525 = vadd.f32 %v2524, %v2494
  %v2526 = vadd.f32 %v2525, %v2495
  %v2527 = vadd.f32 %v2526, %v2496
  %v2528 = vadd.f32 %v2527, %v2497
  %v2529 = vadd.f32 %v2528, %v2498
  %v2530 = vadd.f32 %v2529, %v2499
  %v2531 = vadd.f32 %v2530, %v2500
  %v2532 = vadd.f32 %v2531, %v2501
  %v2533 = vadd.f32 %v2532, %v2502
  %v2534 = vadd.f32 %v2533, %v2503
  %v2535 = vadd.f32 %v2534, %v2504
  %v2536 = vrot.slane %v2535, 4
  %v2537 = vadd.f32 %v2535, %v2536
  %v2538 = vrot.slane %v2537, 2
  %v2539 = vadd.f32 %v2537, %v2538
  %v2540 = vrot.slane %v2539, 1
  %v2541 = vadd.f32 %v2539, %v2540
  %v2542 = vmul.f32 %v2541, 0.00390625
  %2543 = vmatprep.subr.mxu0 0.0
  %2544 = vmatpush1.msra.mxu0 %v1187
  %2545 = vmatprep.subr.mxu0 0.0
  %2546 = vmatpush1.msra.mxu0 %v1188
  %2547 = vmatprep.subr.mxu0 0.0
  %2548 = vmatpush1.msra.mxu0 %v1189
  %2549 = vmatprep.subr.mxu0 0.0
  %2550 = vmatpush1.msra.mxu0 %v1190
  %2551 = vmatprep.subr.mxu0 0.0
  %2552 = vmatpush1.msra.mxu0 %v1191
  %2553 = vmatprep.subr.mxu0 0.0
  %2554 = vmatpush1.msra.mxu0 %v1192
  %2555 = vmatprep.subr.mxu0 0.0
  %2556 = vmatpush1.msra.mxu0 %v1193
  %2557 = vmatprep.subr.mxu0 0.0
  %2558 = vmatpush1.msra.mxu0 %v1194
  %2559 = vmatprep.subr.mxu0 0.0
  %2560 = vmatpush1.msra.mxu0 %v1195
  %2561 = vmatprep.subr.mxu0 0.0
  %2562 = vmatpush1.msra.mxu0 %v1196
  %2563 = vmatprep.subr.mxu0 0.0
  %2564 = vmatpush1.msra.mxu0 %v1197
  %2565 = vmatprep.subr.mxu0 0.0
  %2566 = vmatpush1.msra.mxu0 %v1198
  %2567 = vmatprep.subr.mxu0 0.0
  %2568 = vmatpush1.msra.mxu0 %v1199
  %2569 = vmatprep.subr.mxu0 0.0
  %2570 = vmatpush1.msra.mxu0 %v1200
  %2571 = vmatprep.subr.mxu0 0.0
  %2572 = vmatpush1.msra.mxu0 %v1201
  %2573 = vmatprep.subr.mxu0 0.0
  %2574 = vmatpush1.msra.mxu0 %v1202
  %2575 = vmatprep.subr.mxu0 0.0
  %2576 = vmatpush1.msra.mxu0 0.0
  %2577 = vmatprep.subr.mxu0 0.0
  %2578 = vmatpush1.msra.mxu0 0.0
  %2579 = vmatprep.subr.mxu0 0.0
  %2580 = vmatpush1.msra.mxu0 0.0
  %2581 = vmatprep.subr.mxu0 0.0
  %2582 = vmatpush1.msra.mxu0 0.0
  %2583 = vmatprep.subr.mxu0 0.0
  %2584 = vmatpush1.msra.mxu0 0.0
  %2585 = vmatprep.subr.mxu0 0.0
  %2586 = vmatpush1.msra.mxu0 0.0
  %2587 = vmatprep.subr.mxu0 0.0
  %2588 = vmatpush1.msra.mxu0 0.0
  %2589 = vmatprep.subr.mxu0 0.0
  %2590 = vmatpush1.msra.mxu0 0.0
  %2591 = vmatprep.subr.mxu0 0.0
  %2592 = vmatpush1.msra.mxu0 0.0
  %2593 = vmatprep.subr.mxu0 0.0
  %2594 = vmatpush1.msra.mxu0 0.0
  %2595 = vmatprep.subr.mxu0 0.0
  %2596 = vmatpush1.msra.mxu0 0.0
  %2597 = vmatprep.subr.mxu0 0.0
  %2598 = vmatpush1.msra.mxu0 0.0
  %2599 = vmatprep.subr.mxu0 0.0
  %2600 = vmatpush1.msra.mxu0 0.0
  %2601 = vmatprep.subr.mxu0 0.0
  %2602 = vmatpush1.msra.mxu0 0.0
  %2603 = vmatprep.subr.mxu0 0.0
  %2604 = vmatpush1.msra.mxu0 0.0
  %2605 = vmatprep.subr.mxu0 0.0
  %2606 = vmatpush1.msra.mxu0 0.0
  %2607 = vmatprep.mubr.f32.mxu0 0.0
  %2608 = vmatmul.mubr.f32.gmra.mrb[0].mxu0 %v2542
  %v2609 = vpop.f32.mrb[0].mxu0
  %v2610 = vadd.f32 %v1203, %v2609
  %v2611 = vpop.f32.mrb[0].mxu0
  %2612 = vdwg.mxu0
  %v2613 = vand.u32 2147483647, %v2610
  %v2614 = vsub.f32 0.0, %v2613
  %v2615 = vmul.f32 %v2614, 1.442695
  %v2616 = vpow.pop %v2615
  %v2617 = vadd.f32 %v2616, 1.0
  %v2618 = vrcp.pop %v2617
  %vm2619 = vcmp.ge.f32.partialorder %v2610, 0.0
  %v2620 = vmul.f32 %v2616, %v2618
  %v2621 = vsel %vm2619, %v2618, %v2620
  %v2622 = vmul.f32 %v2610, %v2621
  %vm2623 = vcmask 64512
  %v2625 = vsel %vm2623, %v2622, 0
  %2627 = vmatprep.subr.mxu0 0.0
  %2628 = vmatpush1.msra.mxu0 %v1204
  %2629 = vmatprep.subr.mxu0 0.0
  %2630 = vmatpush1.msra.mxu0 0.0
  %2631 = vmatprep.subr.mxu0 0.0
  %2632 = vmatpush1.msra.mxu0 0.0
  %2633 = vmatprep.subr.mxu0 0.0
  %2634 = vmatpush1.msra.mxu0 0.0
  %2635 = vmatprep.subr.mxu0 0.0
  %2636 = vmatpush1.msra.mxu0 0.0
  %2637 = vmatprep.subr.mxu0 0.0
  %2638 = vmatpush1.msra.mxu0 0.0
  %2639 = vmatprep.subr.mxu0 0.0
  %2640 = vmatpush1.msra.mxu0 0.0
  %2641 = vmatprep.subr.mxu0 0.0
  %2642 = vmatpush1.msra.mxu0 0.0
  %2643 = vmatprep.subr.mxu0 0.0
  %2644 = vmatpush1.msra.mxu0 0.0
  %2645 = vmatprep.subr.mxu0 0.0
  %2646 = vmatpush1.msra.mxu0 0.0
  %2647 = vmatprep.subr.mxu0 0.0
  %2648 = vmatpush1.msra.mxu0 0.0
  %2649 = vmatprep.subr.mxu0 0.0
  %2650 = vmatpush1.msra.mxu0 0.0
  %2651 = vmatprep.subr.mxu0 0.0
  %2652 = vmatpush1.msra.mxu0 0.0
  %2653 = vmatprep.subr.mxu0 0.0
  %2654 = vmatpush1.msra.mxu0 0.0
  %2655 = vmatprep.subr.mxu0 0.0
  %2656 = vmatpush1.msra.mxu0 0.0
  %2657 = vmatprep.subr.mxu0 0.0
  %2658 = vmatpush1.msra.mxu0 0.0
  %2659 = vmatprep.subr.mxu0 0.0
  %2660 = vmatpush1.msra.mxu0 0.0
  %2661 = vmatprep.subr.mxu0 0.0
  %2662 = vmatpush1.msra.mxu0 0.0
  %2663 = vmatprep.subr.mxu0 0.0
  %2664 = vmatpush1.msra.mxu0 0.0
  %2665 = vmatprep.subr.mxu0 0.0
  %2666 = vmatpush1.msra.mxu0 0.0
  %2667 = vmatprep.subr.mxu0 0.0
  %2668 = vmatpush1.msra.mxu0 0.0
  %2669 = vmatprep.subr.mxu0 0.0
  %2670 = vmatpush1.msra.mxu0 0.0
  %2671 = vmatprep.subr.mxu0 0.0
  %2672 = vmatpush1.msra.mxu0 0.0
  %2673 = vmatprep.subr.mxu0 0.0
  %2674 = vmatpush1.msra.mxu0 0.0
  %2675 = vmatprep.subr.mxu0 0.0
  %2676 = vmatpush1.msra.mxu0 0.0
  %2677 = vmatprep.subr.mxu0 0.0
  %2678 = vmatpush1.msra.mxu0 0.0
  %2679 = vmatprep.subr.mxu0 0.0
  %2680 = vmatpush1.msra.mxu0 0.0
  %2681 = vmatprep.subr.mxu0 0.0
  %2682 = vmatpush1.msra.mxu0 0.0
  %2683 = vmatprep.subr.mxu0 0.0
  %2684 = vmatpush1.msra.mxu0 0.0
  %2685 = vmatprep.subr.mxu0 0.0
  %2686 = vmatpush1.msra.mxu0 0.0
  %2687 = vmatprep.subr.mxu0 0.0
  %2688 = vmatpush1.msra.mxu0 0.0
  %2689 = vmatprep.subr.mxu0 0.0
  %2690 = vmatpush1.msra.mxu0 0.0
  %2691 = vmatprep.mubr.f32.mxu0 0.0
  %2692 = vmatmul.mubr.f32.gmra.mrb[0].mxu0 %v2625
  %v2693 = vpop.f32.mrb[0].mxu0
  %v2694 = vadd.f32 %v1205, %v2693
  %v2695 = vpop.f32.mrb[0].mxu0
  %2696 = vdwg.mxu0
  %v2697 = vand.u32 2147483647, %v2694
  %v2698 = vsub.f32 0.0, %v2697
  %v2699 = vmul.f32 %v2698, 1.442695
  %v2700 = vpow.pop %v2699
  %v2701 = vadd.f32 %v2700, 1.0
  %v2702 = vrcp.pop %v2701
  %vm2703 = vcmp.ge.f32.partialorder %v2694, 0.0
  %v2704 = vmul.f32 %v2700, %v2702
  %v2705 = vsel %vm2703, %v2702, %v2704
  %v2706 = vlaneseq
  %v2707 = vshrl.u32 %v2706, 7
  %v2708 = vsub.s32 0, %v2707
  %v2709 = vrot.slane %v2705, %v2708
  %v2710 = vmul.f32 %v2473, %v2709
  %v2711 = vmul.f32 %v2474, %v2709
  %v2712 = vmul.f32 %v2475, %v2709
  %v2713 = vmul.f32 %v2476, %v2709
  %v2714 = vmul.f32 %v2477, %v2709
  %v2715 = vmul.f32 %v2478, %v2709
  %v2716 = vmul.f32 %v2479, %v2709
  %v2717 = vmul.f32 %v2480, %v2709
  %v2718 = vmul.f32 %v2481, %v2709
  %v2719 = vmul.f32 %v2482, %v2709
  %v2720 = vmul.f32 %v2483, %v2709
  %v2721 = vmul.f32 %v2484, %v2709
  %v2722 = vmul.f32 %v2485, %v2709
  %v2723 = vmul.f32 %v2486, %v2709
  %v2724 = vmul.f32 %v2487, %v2709
  %v2725 = vmul.f32 %v2488, %v2709
  %v2726 = vmul.f32 %v2489, %v2709
  %v2727 = vmul.f32 %v2490, %v2709
  %v2728 = vmul.f32 %v2491, %v2709
  %v2729 = vmul.f32 %v2492, %v2709
  %v2730 = vmul.f32 %v2493, %v2709
  %v2731 = vmul.f32 %v2494, %v2709
  %v2732 = vmul.f32 %v2495, %v2709
  %v2733 = vmul.f32 %v2496, %v2709
  %v2734 = vmul.f32 %v2497, %v2709
  %v2735 = vmul.f32 %v2498, %v2709
  %v2736 = vmul.f32 %v2499, %v2709
  %v2737 = vmul.f32 %v2500, %v2709
  %v2738 = vmul.f32 %v2501, %v2709
  %v2739 = vmul.f32 %v2502, %v2709
  %v2740 = vmul.f32 %v2503, %v2709
  %v2741 = vmul.f32 %v2504, %v2709
  %v2742 = vpack.c.bf16 %v2711, %v2710
  %v2743 = vpack.c.bf16 %v2713, %v2712
  %v2744 = vpack.c.bf16 %v2715, %v2714
  %v2745 = vpack.c.bf16 %v2717, %v2716
  %v2746 = vpack.c.bf16 %v2719, %v2718
  %v2747 = vpack.c.bf16 %v2721, %v2720
  %v2748 = vpack.c.bf16 %v2723, %v2722
  %v2749 = vpack.c.bf16 %v2725, %v2724
  %v2750 = vpack.c.bf16 %v2727, %v2726
  %v2751 = vpack.c.bf16 %v2729, %v2728
  %v2752 = vpack.c.bf16 %v2731, %v2730
  %v2753 = vpack.c.bf16 %v2733, %v2732
  %v2754 = vpack.c.bf16 %v2735, %v2734
  %v2755 = vpack.c.bf16 %v2737, %v2736
  %v2756 = vpack.c.bf16 %v2739, %v2738
  %v2757 = vpack.c.bf16 %v2741, %v2740
  %2758 = vst [vmem:[#allocation3] sm:$0xff] %v2742
  %2759 = vst [vmem:[#allocation3 + $0x8] sm:$0xff] %v2743
  %2760 = vst [vmem:[#allocation3 + $0x10] sm:$0xff] %v2744
  %2761 = vst [vmem:[#allocation3 + $0x18] sm:$0xff] %v2745
  %2762 = vst [vmem:[#allocation3 + $0x20] sm:$0xff] %v2746
  %2763 = vst [vmem:[#allocation3 + $0x28] sm:$0xff] %v2747
  %2764 = vst [vmem:[#allocation3 + $0x30] sm:$0xff] %v2748
  %2765 = vst [vmem:[#allocation3 + $0x38] sm:$0xff] %v2749
  %2766 = vst [vmem:[#allocation3 + $0x40] sm:$0xff] %v2750
  %2767 = vst [vmem:[#allocation3 + $0x48] sm:$0xff] %v2751
  %2768 = vst [vmem:[#allocation3 + $0x50] sm:$0xff] %v2752
  %2769 = vst [vmem:[#allocation3 + $0x58] sm:$0xff] %v2753
  %2770 = vst [vmem:[#allocation3 + $0x60] sm:$0xff] %v2754
  %2771 = vst [vmem:[#allocation3 + $0x68] sm:$0xff] %v2755
  %2772 = vst [vmem:[#allocation3 + $0x70] sm:$0xff] %v2756
  %2773 = vst [vmem:[#allocation3 + $0x78] sm:$0xff] %v2757
  %2774 = vst [vmem:[%s1213 + $0x1] sm:$0xff] %v1152
  %2775 = vst [vmem:[%s1213 + $0x9] sm:$0xff] %v1153
  %2776 = vst [vmem:[%s1213 + $0x19] sm:$0xff] %v1154
  %2777 = vst [vmem:[%s1213 + $0x21] sm:$0xff] %v1155
  %2778 = vst [vmem:[%s1213 + $0x31] sm:$0xff] %v1156
  %2779 = vst [vmem:[%s1213 + $0x39] sm:$0xff] %v1157
  %2780 = vst [vmem:[%s1213 + $0x49] sm:$0xff] %v1158
  %2781 = vst [vmem:[%s1213 + $0x51] sm:$0xff] %v1159
  %2782 = vst [vmem:[%s1213 + $0x61] sm:$0xff] %v1160
  %2783 = vst [vmem:[%s1213 + $0x69] sm:$0xff] %v1161
  %2784 = vst [vmem:[%s1213 + $0x79] sm:$0xff] %v1162
  %2785 = vst [vmem:[%s1213 + $0x81] sm:$0xff] %v1163
  %2786 = vst [vmem:[%s1213 + $0x91] sm:$0xff] %v1164
  %2787 = vst [vmem:[%s1213 + $0x99] sm:$0xff] %v1165
  %2788 = vst [vmem:[%s1213 + $0xa9] sm:$0xff] %v1166
  %2789 = vst [vmem:[%s1213 + $0xb1] sm:$0xff] %v1167
  %2790 = vst [vmem:[%s1213 + $0xc1] sm:$0xff] %v1168
  %2791 = vst [vmem:[%s1213 + $0xc9] sm:$0xff] %v1169
  %2792 = vst [vmem:[%s1213 + $0xd9] sm:$0xff] %v1170
  %2793 = vst [vmem:[%s1213 + $0xe1] sm:$0xff] %v1171
  %2794 = vst [vmem:[%s1213 + $0xf1] sm:$0xff] %v1172
  %2795 = vst [vmem:[%s1213 + $0xf9] sm:$0xff] %v1173
  %2796 = vst [vmem:[%s1213 + $0x109] sm:$0xff] %v1174
  %2797 = vst [vmem:[%s1213 + $0x111] sm:$0xff] %v1175
  %2798 = vst [vmem:[%s1213 + $0x121] sm:$0xff] %v1176
  %2799 = vst [vmem:[%s1213 + $0x129] sm:$0xff] %v1177
  %2800 = vst [vmem:[%s1213 + $0x139] sm:$0xff] %v1178
  %2801 = vst [vmem:[%s1213 + $0x141] sm:$0xff] %v1179
  %2802 = vst [vmem:[%s1213 + $0x151] sm:$0xff] %v1180
  %2803 = vst [vmem:[%s1213 + $0x159] sm:$0xff] %v1181
  %2804 = vst [vmem:[%s1213 + $0x169] sm:$0xff] %v1182
  %2805 = vst [vmem:[%s1213 + $0x171] sm:$0xff] %v1183
  %v2806 = vld [vmem:[#allocation2] sm:$0xff]
  %v2807 = vld [vmem:[#allocation2 + $0x8] sm:$0xff]
  %v2808 = vld [vmem:[#allocation2 + $0x18] sm:$0xff]
  %v2809 = vld [vmem:[#allocation2 + $0x20] sm:$0xff]
  %v2810 = vld [vmem:[#allocation2 + $0x30] sm:$0xff]
  %v2811 = vld [vmem:[#allocation2 + $0x38] sm:$0xff]
  %v2812 = vld [vmem:[#allocation2 + $0x48] sm:$0xff]
  %v2813 = vld [vmem:[#allocation2 + $0x50] sm:$0xff]
  %v2814 = vld [vmem:[#allocation2 + $0x60] sm:$0xff]
  %v2815 = vld [vmem:[#allocation2 + $0x68] sm:$0xff]
  %v2816 = vld [vmem:[#allocation2 + $0x78] sm:$0xff]
  %v2817 = vld [vmem:[#allocation2 + $0x80] sm:$0xff]
  %v2818 = vld [vmem:[#allocation2 + $0x90] sm:$0xff]
  %v2819 = vld [vmem:[#allocation2 + $0x98] sm:$0xff]
  %v2820 = vld [vmem:[#allocation2 + $0xa8] sm:$0xff]
  %v2821 = vld [vmem:[#allocation2 + $0xb0] sm:$0xff]
  %v2822 = vld [vmem:[#allocation2 + $0xc0] sm:$0xff]
  %v2823 = vld [vmem:[#allocation2 + $0xc8] sm:$0xff]
  %v2824 = vld [vmem:[#allocation2 + $0xd8] sm:$0xff]
  %v2825 = vld [vmem:[#allocation2 + $0xe0] sm:$0xff]
  %v2826 = vld [vmem:[#allocation2 + $0xf0] sm:$0xff]
  %v2827 = vld [vmem:[#allocation2 + $0xf8] sm:$0xff]
  %v2828 = vld [vmem:[#allocation2 + $0x108] sm:$0xff]
  %v2829 = vld [vmem:[#allocation2 + $0x110] sm:$0xff]
  %v2830 = vld [vmem:[#allocation2 + $0x120] sm:$0xff]
  %v2831 = vld [vmem:[#allocation2 + $0x128] sm:$0xff]
  %v2832 = vld [vmem:[#allocation2 + $0x138] sm:$0xff]
  %v2833 = vld [vmem:[#allocation2 + $0x140] sm:$0xff]
  %v2834 = vld [vmem:[#allocation2 + $0x150] sm:$0xff]
  %v2835 = vld [vmem:[#allocation2 + $0x158] sm:$0xff]
  %v2836 = vld [vmem:[#allocation2 + $0x168] sm:$0xff]
  %v2837 = vld [vmem:[#allocation2 + $0x170] sm:$0xff]
  %v2838 = vmul.f32 %v2806, %v1313
  %v2839 = vmul.f32 %v2807, %v1313
  %v2840 = vmul.f32 %v2808, %v1313
  %v2841 = vmul.f32 %v2809, %v1313
  %v2842 = vmul.f32 %v2810, %v1313
  %v2843 = vmul.f32 %v2811, %v1313
  %v2844 = vmul.f32 %v2812, %v1313
  %v2845 = vmul.f32 %v2813, %v1313
  %v2846 = vmul.f32 %v2814, %v1313
  %v2847 = vmul.f32 %v2815, %v1313
  %v2848 = vmul.f32 %v2816, %v1313
  %v2849 = vmul.f32 %v2817, %v1313
  %v2850 = vmul.f32 %v2818, %v1313
  %v2851 = vmul.f32 %v2819, %v1313
  %v2852 = vmul.f32 %v2820, %v1313
  %v2853 = vmul.f32 %v2821, %v1313
  %v2854 = vmul.f32 %v2822, %v1313
  %v2855 = vmul.f32 %v2823, %v1313
  %v2856 = vmul.f32 %v2824, %v1313
  %v2857 = vmul.f32 %v2825, %v1313
  %v2858 = vmul.f32 %v2826, %v1313
  %v2859 = vmul.f32 %v2827, %v1313
  %v2860 = vmul.f32 %v2828, %v1313
  %v2861 = vmul.f32 %v2829, %v1313
  %v2862 = vmul.f32 %v2830, %v1313
  %v2863 = vmul.f32 %v2831, %v1313
  %v2864 = vmul.f32 %v2832, %v1313
  %v2865 = vmul.f32 %v2833, %v1313
  %v2866 = vmul.f32 %v2834, %v1313
  %v2867 = vmul.f32 %v2835, %v1313
  %v2868 = vmul.f32 %v2836, %v1313
  %v2869 = vmul.f32 %v2837, %v1313
  %v2870 = vld [vmem:[#allocation2 + $0x1] sm:$0xff]
  %v2871 = vld [vmem:[#allocation2 + $0x9] sm:$0xff]
  %v2872 = vld [vmem:[#allocation2 + $0x19] sm:$0xff]
  %v2873 = vld [vmem:[#allocation2 + $0x21] sm:$0xff]
  %v2874 = vld [vmem:[#allocation2 + $0x31] sm:$0xff]
  %v2875 = vld [vmem:[#allocation2 + $0x39] sm:$0xff]
  %v2876 = vld [vmem:[#allocation2 + $0x49] sm:$0xff]
  %v2877 = vld [vmem:[#allocation2 + $0x51] sm:$0xff]
  %v2878 = vld [vmem:[#allocation2 + $0x61] sm:$0xff]
  %v2879 = vld [vmem:[#allocation2 + $0x69] sm:$0xff]
  %v2880 = vld [vmem:[#allocation2 + $0x79] sm:$0xff]
  %v2881 = vld [vmem:[#allocation2 + $0x81] sm:$0xff]
  %v2882 = vld [vmem:[#allocation2 + $0x91] sm:$0xff]
  %v2883 = vld [vmem:[#allocation2 + $0x99] sm:$0xff]
  %v2884 = vld [vmem:[#allocation2 + $0xa9] sm:$0xff]
  %v2885 = vld [vmem:[#allocation2 + $0xb1] sm:$0xff]
  %v2886 = vld [vmem:[#allocation2 + $0xc1] sm:$0xff]
  %v2887 = vld [vmem:[#allocation2 + $0xc9] sm:$0xff]
  %v2888 = vld [vmem:[#allocation2 + $0xd9] sm:$0xff]
  %v2889 = vld [vmem:[#allocation2 + $0xe1] sm:$0xff]
  %v2890 = vld [vmem:[#allocation2 + $0xf1] sm:$0xff]
  %v2891 = vld [vmem:[#allocation2 + $0xf9] sm:$0xff]
  %v2892 = vld [vmem:[#allocation2 + $0x109] sm:$0xff]
  %v2893 = vld [vmem:[#allocation2 + $0x111] sm:$0xff]
  %v2894 = vld [vmem:[#allocation2 + $0x121] sm:$0xff]
  %v2895 = vld [vmem:[#allocation2 + $0x129] sm:$0xff]
  %v2896 = vld [vmem:[#allocation2 + $0x139] sm:$0xff]
  %v2897 = vld [vmem:[#allocation2 + $0x141] sm:$0xff]
  %v2898 = vld [vmem:[#allocation2 + $0x151] sm:$0xff]
  %v2899 = vld [vmem:[#allocation2 + $0x159] sm:$0xff]
  %v2900 = vld [vmem:[#allocation2 + $0x169] sm:$0xff]
  %v2901 = vld [vmem:[#allocation2 + $0x171] sm:$0xff]
  %v2902 = vmul.f32 %v2870, %v1381
  %v2903 = vmul.f32 %v2871, %v1381
  %v2904 = vmul.f32 %v2872, %v1381
  %v2905 = vmul.f32 %v2873, %v1381
  %v2906 = vmul.f32 %v2874, %v1381
  %v2907 = vmul.f32 %v2875, %v1381
  %v2908 = vmul.f32 %v2876, %v1381
  %v2909 = vmul.f32 %v2877, %v1381
  %v2910 = vmul.f32 %v2878, %v1381
  %v2911 = vmul.f32 %v2879, %v1381
  %v2912 = vmul.f32 %v2880, %v1381
  %v2913 = vmul.f32 %v2881, %v1381
  %v2914 = vmul.f32 %v2882, %v1381
  %v2915 = vmul.f32 %v2883, %v1381
  %v2916 = vmul.f32 %v2884, %v1381
  %v2917 = vmul.f32 %v2885, %v1381
  %v2918 = vmul.f32 %v2886, %v1381
  %v2919 = vmul.f32 %v2887, %v1381
  %v2920 = vmul.f32 %v2888, %v1381
  %v2921 = vmul.f32 %v2889, %v1381
  %v2922 = vmul.f32 %v2890, %v1381
  %v2923 = vmul.f32 %v2891, %v1381
  %v2924 = vmul.f32 %v2892, %v1381
  %v2925 = vmul.f32 %v2893, %v1381
  %v2926 = vmul.f32 %v2894, %v1381
  %v2927 = vmul.f32 %v2895, %v1381
  %v2928 = vmul.f32 %v2896, %v1381
  %v2929 = vmul.f32 %v2897, %v1381
  %v2930 = vmul.f32 %v2898, %v1381
  %v2931 = vmul.f32 %v2899, %v1381
  %v2932 = vmul.f32 %v2900, %v1381
  %v2933 = vmul.f32 %v2901, %v1381
  %v2934 = vadd.f32 %v2838, %v2902
  %v2935 = vadd.f32 %v2839, %v2903
  %v2936 = vadd.f32 %v2840, %v2904
  %v2937 = vadd.f32 %v2841, %v2905
  %v2938 = vadd.f32 %v2842, %v2906
  %v2939 = vadd.f32 %v2843, %v2907
  %v2940 = vadd.f32 %v2844, %v2908
  %v2941 = vadd.f32 %v2845, %v2909
  %v2942 = vadd.f32 %v2846, %v2910
  %v2943 = vadd.f32 %v2847, %v2911
  %v2944 = vadd.f32 %v2848, %v2912
  %v2945 = vadd.f32 %v2849, %v2913
  %v2946 = vadd.f32 %v2850, %v2914
  %v2947 = vadd.f32 %v2851, %v2915
  %v2948 = vadd.f32 %v2852, %v2916
  %v2949 = vadd.f32 %v2853, %v2917
  %v2950 = vadd.f32 %v2854, %v2918
  %v2951 = vadd.f32 %v2855, %v2919
  %v2952 = vadd.f32 %v2856, %v2920
  %v2953 = vadd.f32 %v2857, %v2921
  %v2954 = vadd.f32 %v2858, %v2922
  %v2955 = vadd.f32 %v2859, %v2923
  %v2956 = vadd.f32 %v2860, %v2924
  %v2957 = vadd.f32 %v2861, %v2925
  %v2958 = vadd.f32 %v2862, %v2926
  %v2959 = vadd.f32 %v2863, %v2927
  %v2960 = vadd.f32 %v2864, %v2928
  %v2961 = vadd.f32 %v2865, %v2929
  %v2962 = vadd.f32 %v2866, %v2930
  %v2963 = vadd.f32 %v2867, %v2931
  %v2964 = vadd.f32 %v2868, %v2932
  %v2965 = vadd.f32 %v2869, %v2933
  %v2966 = vld [vmem:[#allocation2 + $0x2] sm:$0xff]
  %v2967 = vld [vmem:[#allocation2 + $0xa] sm:$0xff]
  %v2968 = vld [vmem:[#allocation2 + $0x1a] sm:$0xff]
  %v2969 = vld [vmem:[#allocation2 + $0x22] sm:$0xff]
  %v2970 = vld [vmem:[#allocation2 + $0x32] sm:$0xff]
  %v2971 = vld [vmem:[#allocation2 + $0x3a] sm:$0xff]
  %v2972 = vld [vmem:[#allocation2 + $0x4a] sm:$0xff]
  %v2973 = vld [vmem:[#allocation2 + $0x52] sm:$0xff]
  %v2974 = vld [vmem:[#allocation2 + $0x62] sm:$0xff]
  %v2975 = vld [vmem:[#allocation2 + $0x6a] sm:$0xff]
  %v2976 = vld [vmem:[#allocation2 + $0x7a] sm:$0xff]
  %v2977 = vld [vmem:[#allocation2 + $0x82] sm:$0xff]
  %v2978 = vld [vmem:[#allocation2 + $0x92] sm:$0xff]
  %v2979 = vld [vmem:[#allocation2 + $0x9a] sm:$0xff]
  %v2980 = vld [vmem:[#allocation2 + $0xaa] sm:$0xff]
  %v2981 = vld [vmem:[#allocation2 + $0xb2] sm:$0xff]
  %v2982 = vld [vmem:[#allocation2 + $0xc2] sm:$0xff]
  %v2983 = vld [vmem:[#allocation2 + $0xca] sm:$0xff]
  %v2984 = vld [vmem:[#allocation2 + $0xda] sm:$0xff]
  %v2985 = vld [vmem:[#allocation2 + $0xe2] sm:$0xff]
  %v2986 = vld [vmem:[#allocation2 + $0xf2] sm:$0xff]
  %v2987 = vld [vmem:[#allocation2 + $0xfa] sm:$0xff]
  %v2988 = vld [vmem:[#allocation2 + $0x10a] sm:$0xff]
  %v2989 = vld [vmem:[#allocation2 + $0x112] sm:$0xff]
  %v2990 = vld [vmem:[#allocation2 + $0x122] sm:$0xff]
  %v2991 = vld [vmem:[#allocation2 + $0x12a] sm:$0xff]
  %v2992 = vld [vmem:[#allocation2 + $0x13a] sm:$0xff]
  %v2993 = vld [vmem:[#allocation2 + $0x142] sm:$0xff]
  %v2994 = vld [vmem:[#allocation2 + $0x152] sm:$0xff]
  %v2995 = vld [vmem:[#allocation2 + $0x15a] sm:$0xff]
  %v2996 = vld [vmem:[#allocation2 + $0x16a] sm:$0xff]
  %v2997 = vld [vmem:[#allocation2 + $0x172] sm:$0xff]
  %v2998 = vmul.f32 %v2966, %v1481
  %v2999 = vmul.f32 %v2967, %v1481
  %v3000 = vmul.f32 %v2968, %v1481
  %v3001 = vmul.f32 %v2969, %v1481
  %v3002 = vmul.f32 %v2970, %v1481
  %v3003 = vmul.f32 %v2971, %v1481
  %v3004 = vmul.f32 %v2972, %v1481
  %v3005 = vmul.f32 %v2973, %v1481
  %v3006 = vmul.f32 %v2974, %v1481
  %v3007 = vmul.f32 %v2975, %v1481
  %v3008 = vmul.f32 %v2976, %v1481
  %v3009 = vmul.f32 %v2977, %v1481
  %v3010 = vmul.f32 %v2978, %v1481
  %v3011 = vmul.f32 %v2979, %v1481
  %v3012 = vmul.f32 %v2980, %v1481
  %v3013 = vmul.f32 %v2981, %v1481
  %v3014 = vmul.f32 %v2982, %v1481
  %v3015 = vmul.f32 %v2983, %v1481
  %v3016 = vmul.f32 %v2984, %v1481
  %v3017 = vmul.f32 %v2985, %v1481
  %v3018 = vmul.f32 %v2986, %v1481
  %v3019 = vmul.f32 %v2987, %v1481
  %v3020 = vmul.f32 %v2988, %v1481
  %v3021 = vmul.f32 %v2989, %v1481
  %v3022 = vmul.f32 %v2990, %v1481
  %v3023 = vmul.f32 %v2991, %v1481
  %v3024 = vmul.f32 %v2992, %v1481
  %v3025 = vmul.f32 %v2993, %v1481
  %v3026 = vmul.f32 %v2994, %v1481
  %v3027 = vmul.f32 %v2995, %v1481
  %v3028 = vmul.f32 %v2996, %v1481
  %v3029 = vmul.f32 %v2997, %v1481
  %v3030 = vadd.f32 %v2934, %v2998
  %v3031 = vadd.f32 %v2935, %v2999
  %v3032 = vadd.f32 %v2936, %v3000
  %v3033 = vadd.f32 %v2937, %v3001
  %v3034 = vadd.f32 %v2938, %v3002
  %v3035 = vadd.f32 %v2939, %v3003
  %v3036 = vadd.f32 %v2940, %v3004
  %v3037 = vadd.f32 %v2941, %v3005
  %v3038 = vadd.f32 %v2942, %v3006
  %v3039 = vadd.f32 %v2943, %v3007
  %v3040 = vadd.f32 %v2944, %v3008
  %v3041 = vadd.f32 %v2945, %v3009
  %v3042 = vadd.f32 %v2946, %v3010
  %v3043 = vadd.f32 %v2947, %v3011
  %v3044 = vadd.f32 %v2948, %v3012
  %v3045 = vadd.f32 %v2949, %v3013
  %v3046 = vadd.f32 %v2950, %v3014
  %v3047 = vadd.f32 %v2951, %v3015
  %v3048 = vadd.f32 %v2952, %v3016
  %v3049 = vadd.f32 %v2953, %v3017
  %v3050 = vadd.f32 %v2954, %v3018
  %v3051 = vadd.f32 %v2955, %v3019
  %v3052 = vadd.f32 %v2956, %v3020
  %v3053 = vadd.f32 %v2957, %v3021
  %v3054 = vadd.f32 %v2958, %v3022
  %v3055 = vadd.f32 %v2959, %v3023
  %v3056 = vadd.f32 %v2960, %v3024
  %v3057 = vadd.f32 %v2961, %v3025
  %v3058 = vadd.f32 %v2962, %v3026
  %v3059 = vadd.f32 %v2963, %v3027
  %v3060 = vadd.f32 %v2964, %v3028
  %v3061 = vadd.f32 %v2965, %v3029
  %v3062 = vld [vmem:[%s1213] sm:$0xff]
  %v3063 = vld [vmem:[%s1213 + $0x8] sm:$0xff]
  %v3064 = vld [vmem:[%s1213 + $0x18] sm:$0xff]
  %v3065 = vld [vmem:[%s1213 + $0x20] sm:$0xff]
  %v3066 = vld [vmem:[%s1213 + $0x30] sm:$0xff]
  %v3067 = vld [vmem:[%s1213 + $0x38] sm:$0xff]
  %v3068 = vld [vmem:[%s1213 + $0x48] sm:$0xff]
  %v3069 = vld [vmem:[%s1213 + $0x50] sm:$0xff]
  %v3070 = vld [vmem:[%s1213 + $0x60] sm:$0xff]
  %v3071 = vld [vmem:[%s1213 + $0x68] sm:$0xff]
  %v3072 = vld [vmem:[%s1213 + $0x78] sm:$0xff]
  %v3073 = vld [vmem:[%s1213 + $0x80] sm:$0xff]
  %v3074 = vld [vmem:[%s1213 + $0x90] sm:$0xff]
  %v3075 = vld [vmem:[%s1213 + $0x98] sm:$0xff]
  %v3076 = vld [vmem:[%s1213 + $0xa8] sm:$0xff]
  %v3077 = vld [vmem:[%s1213 + $0xb0] sm:$0xff]
  %v3078 = vld [vmem:[%s1213 + $0xc0] sm:$0xff]
  %v3079 = vld [vmem:[%s1213 + $0xc8] sm:$0xff]
  %v3080 = vld [vmem:[%s1213 + $0xd8] sm:$0xff]
  %v3081 = vld [vmem:[%s1213 + $0xe0] sm:$0xff]
  %v3082 = vld [vmem:[%s1213 + $0xf0] sm:$0xff]
  %v3083 = vld [vmem:[%s1213 + $0xf8] sm:$0xff]
  %v3084 = vld [vmem:[%s1213 + $0x108] sm:$0xff]
  %v3085 = vld [vmem:[%s1213 + $0x110] sm:$0xff]
  %v3086 = vld [vmem:[%s1213 + $0x120] sm:$0xff]
  %v3087 = vld [vmem:[%s1213 + $0x128] sm:$0xff]
  %v3088 = vld [vmem:[%s1213 + $0x138] sm:$0xff]
  %v3089 = vld [vmem:[%s1213 + $0x140] sm:$0xff]
  %v3090 = vld [vmem:[%s1213 + $0x150] sm:$0xff]
  %v3091 = vld [vmem:[%s1213 + $0x158] sm:$0xff]
  %v3092 = vld [vmem:[%s1213 + $0x168] sm:$0xff]
  %v3093 = vld [vmem:[%s1213 + $0x170] sm:$0xff]
  %v3094 = vmul.f32 %v3062, %v1581
  %v3095 = vmul.f32 %v3063, %v1581
  %v3096 = vmul.f32 %v3064, %v1581
  %v3097 = vmul.f32 %v3065, %v1581
  %v3098 = vmul.f32 %v3066, %v1581
  %v3099 = vmul.f32 %v3067, %v1581
  %v3100 = vmul.f32 %v3068, %v1581
  %v3101 = vmul.f32 %v3069, %v1581
  %v3102 = vmul.f32 %v3070, %v1581
  %v3103 = vmul.f32 %v3071, %v1581
  %v3104 = vmul.f32 %v3072, %v1581
  %v3105 = vmul.f32 %v3073, %v1581
  %v3106 = vmul.f32 %v3074, %v1581
  %v3107 = vmul.f32 %v3075, %v1581
  %v3108 = vmul.f32 %v3076, %v1581
  %v3109 = vmul.f32 %v3077, %v1581
  %v3110 = vmul.f32 %v3078, %v1581
  %v3111 = vmul.f32 %v3079, %v1581
  %v3112 = vmul.f32 %v3080, %v1581
  %v3113 = vmul.f32 %v3081, %v1581
  %v3114 = vmul.f32 %v3082, %v1581
  %v3115 = vmul.f32 %v3083, %v1581
  %v3116 = vmul.f32 %v3084, %v1581
  %v3117 = vmul.f32 %v3085, %v1581
  %v3118 = vmul.f32 %v3086, %v1581
  %v3119 = vmul.f32 %v3087, %v1581
  %v3120 = vmul.f32 %v3088, %v1581
  %v3121 = vmul.f32 %v3089, %v1581
  %v3122 = vmul.f32 %v3090, %v1581
  %v3123 = vmul.f32 %v3091, %v1581
  %v3124 = vmul.f32 %v3092, %v1581
  %v3125 = vmul.f32 %v3093, %v1581
  %v3126 = vadd.f32 %v3030, %v3094
  %v3127 = vadd.f32 %v3031, %v3095
  %v3128 = vadd.f32 %v3032, %v3096
  %v3129 = vadd.f32 %v3033, %v3097
  %v3130 = vadd.f32 %v3034, %v3098
  %v3131 = vadd.f32 %v3035, %v3099
  %v3132 = vadd.f32 %v3036, %v3100
  %v3133 = vadd.f32 %v3037, %v3101
  %v3134 = vadd.f32 %v3038, %v3102
  %v3135 = vadd.f32 %v3039, %v3103
  %v3136 = vadd.f32 %v3040, %v3104
  %v3137 = vadd.f32 %v3041, %v3105
  %v3138 = vadd.f32 %v3042, %v3106
  %v3139 = vadd.f32 %v3043, %v3107
  %v3140 = vadd.f32 %v3044, %v3108
  %v3141 = vadd.f32 %v3045, %v3109
  %v3142 = vadd.f32 %v3046, %v3110
  %v3143 = vadd.f32 %v3047, %v3111
  %v3144 = vadd.f32 %v3048, %v3112
  %v3145 = vadd.f32 %v3049, %v3113
  %v3146 = vadd.f32 %v3050, %v3114
  %v3147 = vadd.f32 %v3051, %v3115
  %v3148 = vadd.f32 %v3052, %v3116
  %v3149 = vadd.f32 %v3053, %v3117
  %v3150 = vadd.f32 %v3054, %v3118
  %v3151 = vadd.f32 %v3055, %v3119
  %v3152 = vadd.f32 %v3056, %v3120
  %v3153 = vadd.f32 %v3057, %v3121
  %v3154 = vadd.f32 %v3058, %v3122
  %v3155 = vadd.f32 %v3059, %v3123
  %v3156 = vadd.f32 %v3060, %v3124
  %v3157 = vadd.f32 %v3061, %v3125
  %v3158 = vld [vmem:[%s1213 + $0x1] sm:$0xff]
  %v3159 = vld [vmem:[%s1213 + $0x9] sm:$0xff]
  %v3160 = vld [vmem:[%s1213 + $0x19] sm:$0xff]
  %v3161 = vld [vmem:[%s1213 + $0x21] sm:$0xff]
  %v3162 = vld [vmem:[%s1213 + $0x31] sm:$0xff]
  %v3163 = vld [vmem:[%s1213 + $0x39] sm:$0xff]
  %v3164 = vld [vmem:[%s1213 + $0x49] sm:$0xff]
  %v3165 = vld [vmem:[%s1213 + $0x51] sm:$0xff]
  %v3166 = vld [vmem:[%s1213 + $0x61] sm:$0xff]
  %v3167 = vld [vmem:[%s1213 + $0x69] sm:$0xff]
  %v3168 = vld [vmem:[%s1213 + $0x79] sm:$0xff]
  %v3169 = vld [vmem:[%s1213 + $0x81] sm:$0xff]
  %v3170 = vld [vmem:[%s1213 + $0x91] sm:$0xff]
  %v3171 = vld [vmem:[%s1213 + $0x99] sm:$0xff]
  %v3172 = vld [vmem:[%s1213 + $0xa9] sm:$0xff]
  %v3173 = vld [vmem:[%s1213 + $0xb1] sm:$0xff]
  %v3174 = vld [vmem:[%s1213 + $0xc1] sm:$0xff]
  %v3175 = vld [vmem:[%s1213 + $0xc9] sm:$0xff]
  %v3176 = vld [vmem:[%s1213 + $0xd9] sm:$0xff]
  %v3177 = vld [vmem:[%s1213 + $0xe1] sm:$0xff]
  %v3178 = vld [vmem:[%s1213 + $0xf1] sm:$0xff]
  %v3179 = vld [vmem:[%s1213 + $0xf9] sm:$0xff]
  %v3180 = vld [vmem:[%s1213 + $0x109] sm:$0xff]
  %v3181 = vld [vmem:[%s1213 + $0x111] sm:$0xff]
  %v3182 = vld [vmem:[%s1213 + $0x121] sm:$0xff]
  %v3183 = vld [vmem:[%s1213 + $0x129] sm:$0xff]
  %v3184 = vld [vmem:[%s1213 + $0x139] sm:$0xff]
  %v3185 = vld [vmem:[%s1213 + $0x141] sm:$0xff]
  %v3186 = vld [vmem:[%s1213 + $0x151] sm:$0xff]
  %v3187 = vld [vmem:[%s1213 + $0x159] sm:$0xff]
  %v3188 = vld [vmem:[%s1213 + $0x169] sm:$0xff]
  %v3189 = vld [vmem:[%s1213 + $0x171] sm:$0xff]
  %v3190 = vmul.f32 %v3158, %v1681
  %v3191 = vmul.f32 %v3159, %v1681
  %v3192 = vmul.f32 %v3160, %v1681
  %v3193 = vmul.f32 %v3161, %v1681
  %v3194 = vmul.f32 %v3162, %v1681
  %v3195 = vmul.f32 %v3163, %v1681
  %v3196 = vmul.f32 %v3164, %v1681
  %v3197 = vmul.f32 %v3165, %v1681
  %v3198 = vmul.f32 %v3166, %v1681
  %v3199 = vmul.f32 %v3167, %v1681
  %v3200 = vmul.f32 %v3168, %v1681
  %v3201 = vmul.f32 %v3169, %v1681
  %v3202 = vmul.f32 %v3170, %v1681
  %v3203 = vmul.f32 %v3171, %v1681
  %v3204 = vmul.f32 %v3172, %v1681
  %v3205 = vmul.f32 %v3173, %v1681
  %v3206 = vmul.f32 %v3174, %v1681
  %v3207 = vmul.f32 %v3175, %v1681
  %v3208 = vmul.f32 %v3176, %v1681
  %v3209 = vmul.f32 %v3177, %v1681
  %v3210 = vmul.f32 %v3178, %v1681
  %v3211 = vmul.f32 %v3179, %v1681
  %v3212 = vmul.f32 %v3180, %v1681
  %v3213 = vmul.f32 %v3181, %v1681
  %v3214 = vmul.f32 %v3182, %v1681
  %v3215 = vmul.f32 %v3183, %v1681
  %v3216 = vmul.f32 %v3184, %v1681
  %v3217 = vmul.f32 %v3185, %v1681
  %v3218 = vmul.f32 %v3186, %v1681
  %v3219 = vmul.f32 %v3187, %v1681
  %v3220 = vmul.f32 %v3188, %v1681
  %v3221 = vmul.f32 %v3189, %v1681
  %v3222 = vadd.f32 %v3126, %v3190
  %v3223 = vadd.f32 %v3127, %v3191
  %v3224 = vadd.f32 %v3128, %v3192
  %v3225 = vadd.f32 %v3129, %v3193
  %v3226 = vadd.f32 %v3130, %v3194
  %v3227 = vadd.f32 %v3131, %v3195
  %v3228 = vadd.f32 %v3132, %v3196
  %v3229 = vadd.f32 %v3133, %v3197
  %v3230 = vadd.f32 %v3134, %v3198
  %v3231 = vadd.f32 %v3135, %v3199
  %v3232 = vadd.f32 %v3136, %v3200
  %v3233 = vadd.f32 %v3137, %v3201
  %v3234 = vadd.f32 %v3138, %v3202
  %v3235 = vadd.f32 %v3139, %v3203
  %v3236 = vadd.f32 %v3140, %v3204
  %v3237 = vadd.f32 %v3141, %v3205
  %v3238 = vadd.f32 %v3142, %v3206
  %v3239 = vadd.f32 %v3143, %v3207
  %v3240 = vadd.f32 %v3144, %v3208
  %v3241 = vadd.f32 %v3145, %v3209
  %v3242 = vadd.f32 %v3146, %v3210
  %v3243 = vadd.f32 %v3147, %v3211
  %v3244 = vadd.f32 %v3148, %v3212
  %v3245 = vadd.f32 %v3149, %v3213
  %v3246 = vadd.f32 %v3150, %v3214
  %v3247 = vadd.f32 %v3151, %v3215
  %v3248 = vadd.f32 %v3152, %v3216
  %v3249 = vadd.f32 %v3153, %v3217
  %v3250 = vadd.f32 %v3154, %v3218
  %v3251 = vadd.f32 %v3155, %v3219
  %v3252 = vadd.f32 %v3156, %v3220
  %v3253 = vadd.f32 %v3157, %v3221
  %v3254 = vld [vmem:[%s1213 + $0x2] sm:$0xff]
  %v3255 = vld [vmem:[%s1213 + $0xa] sm:$0xff]
  %v3256 = vld [vmem:[%s1213 + $0x1a] sm:$0xff]
  %v3257 = vld [vmem:[%s1213 + $0x22] sm:$0xff]
  %v3258 = vld [vmem:[%s1213 + $0x32] sm:$0xff]
  %v3259 = vld [vmem:[%s1213 + $0x3a] sm:$0xff]
  %v3260 = vld [vmem:[%s1213 + $0x4a] sm:$0xff]
  %v3261 = vld [vmem:[%s1213 + $0x52] sm:$0xff]
  %v3262 = vld [vmem:[%s1213 + $0x62] sm:$0xff]
  %v3263 = vld [vmem:[%s1213 + $0x6a] sm:$0xff]
  %v3264 = vld [vmem:[%s1213 + $0x7a] sm:$0xff]
  %v3265 = vld [vmem:[%s1213 + $0x82] sm:$0xff]
  %v3266 = vld [vmem:[%s1213 + $0x92] sm:$0xff]
  %v3267 = vld [vmem:[%s1213 + $0x9a] sm:$0xff]
  %v3268 = vld [vmem:[%s1213 + $0xaa] sm:$0xff]
  %v3269 = vld [vmem:[%s1213 + $0xb2] sm:$0xff]
  %v3270 = vld [vmem:[%s1213 + $0xc2] sm:$0xff]
  %v3271 = vld [vmem:[%s1213 + $0xca] sm:$0xff]
  %v3272 = vld [vmem:[%s1213 + $0xda] sm:$0xff]
  %v3273 = vld [vmem:[%s1213 + $0xe2] sm:$0xff]
  %v3274 = vld [vmem:[%s1213 + $0xf2] sm:$0xff]
  %v3275 = vld [vmem:[%s1213 + $0xfa] sm:$0xff]
  %v3276 = vld [vmem:[%s1213 + $0x10a] sm:$0xff]
  %v3277 = vld [vmem:[%s1213 + $0x112] sm:$0xff]
  %v3278 = vld [vmem:[%s1213 + $0x122] sm:$0xff]
  %v3279 = vld [vmem:[%s1213 + $0x12a] sm:$0xff]
  %v3280 = vld [vmem:[%s1213 + $0x13a] sm:$0xff]
  %v3281 = vld [vmem:[%s1213 + $0x142] sm:$0xff]
  %v3282 = vld [vmem:[%s1213 + $0x152] sm:$0xff]
  %v3283 = vld [vmem:[%s1213 + $0x15a] sm:$0xff]
  %v3284 = vld [vmem:[%s1213 + $0x16a] sm:$0xff]
  %v3285 = vld [vmem:[%s1213 + $0x172] sm:$0xff]
  %v3286 = vmul.f32 %v3254, %v1781
  %v3287 = vmul.f32 %v3255, %v1781
  %v3288 = vmul.f32 %v3256, %v1781
  %v3289 = vmul.f32 %v3257, %v1781
  %v3290 = vmul.f32 %v3258, %v1781
  %v3291 = vmul.f32 %v3259, %v1781
  %v3292 = vmul.f32 %v3260, %v1781
  %v3293 = vmul.f32 %v3261, %v1781
  %v3294 = vmul.f32 %v3262, %v1781
  %v3295 = vmul.f32 %v3263, %v1781
  %v3296 = vmul.f32 %v3264, %v1781
  %v3297 = vmul.f32 %v3265, %v1781
  %v3298 = vmul.f32 %v3266, %v1781
  %v3299 = vmul.f32 %v3267, %v1781
  %v3300 = vmul.f32 %v3268, %v1781
  %v3301 = vmul.f32 %v3269, %v1781
  %v3302 = vmul.f32 %v3270, %v1781
  %v3303 = vmul.f32 %v3271, %v1781
  %v3304 = vmul.f32 %v3272, %v1781
  %v3305 = vmul.f32 %v3273, %v1781
  %v3306 = vmul.f32 %v3274, %v1781
  %v3307 = vmul.f32 %v3275, %v1781
  %v3308 = vmul.f32 %v3276, %v1781
  %v3309 = vmul.f32 %v3277, %v1781
  %v3310 = vmul.f32 %v3278, %v1781
  %v3311 = vmul.f32 %v3279, %v1781
  %v3312 = vmul.f32 %v3280, %v1781
  %v3313 = vmul.f32 %v3281, %v1781
  %v3314 = vmul.f32 %v3282, %v1781
  %v3315 = vmul.f32 %v3283, %v1781
  %v3316 = vmul.f32 %v3284, %v1781
  %v3317 = vmul.f32 %v3285, %v1781
  %v3318 = vadd.f32 %v3222, %v3286
  %v3319 = vadd.f32 %v3223, %v3287
  %v3320 = vadd.f32 %v3224, %v3288
  %v3321 = vadd.f32 %v3225, %v3289
  %v3322 = vadd.f32 %v3226, %v3290
  %v3323 = vadd.f32 %v3227, %v3291
  %v3324 = vadd.f32 %v3228, %v3292
  %v3325 = vadd.f32 %v3229, %v3293
  %v3326 = vadd.f32 %v3230, %v3294
  %v3327 = vadd.f32 %v3231, %v3295
  %v3328 = vadd.f32 %v3232, %v3296
  %v3329 = vadd.f32 %v3233, %v3297
  %v3330 = vadd.f32 %v3234, %v3298
  %v3331 = vadd.f32 %v3235, %v3299
  %v3332 = vadd.f32 %v3236, %v3300
  %v3333 = vadd.f32 %v3237, %v3301
  %v3334 = vadd.f32 %v3238, %v3302
  %v3335 = vadd.f32 %v3239, %v3303
  %v3336 = vadd.f32 %v3240, %v3304
  %v3337 = vadd.f32 %v3241, %v3305
  %v3338 = vadd.f32 %v3242, %v3306
  %v3339 = vadd.f32 %v3243, %v3307
  %v3340 = vadd.f32 %v3244, %v3308
  %v3341 = vadd.f32 %v3245, %v3309
  %v3342 = vadd.f32 %v3246, %v3310
  %v3343 = vadd.f32 %v3247, %v3311
  %v3344 = vadd.f32 %v3248, %v3312
  %v3345 = vadd.f32 %v3249, %v3313
  %v3346 = vadd.f32 %v3250, %v3314
  %v3347 = vadd.f32 %v3251, %v3315
  %v3348 = vadd.f32 %v3252, %v3316
  %v3349 = vadd.f32 %v3253, %v3317
  %v3350 = vld [vmem:[%s1846] sm:$0xff]
  %v3351 = vld [vmem:[%s1846 + $0x8] sm:$0xff]
  %v3352 = vld [vmem:[%s1846 + $0x18] sm:$0xff]
  %v3353 = vld [vmem:[%s1846 + $0x20] sm:$0xff]
  %v3354 = vld [vmem:[%s1846 + $0x30] sm:$0xff]
  %v3355 = vld [vmem:[%s1846 + $0x38] sm:$0xff]
  %v3356 = vld [vmem:[%s1846 + $0x48] sm:$0xff]
  %v3357 = vld [vmem:[%s1846 + $0x50] sm:$0xff]
  %v3358 = vld [vmem:[%s1846 + $0x60] sm:$0xff]
  %v3359 = vld [vmem:[%s1846 + $0x68] sm:$0xff]
  %v3360 = vld [vmem:[%s1846 + $0x78] sm:$0xff]
  %v3361 = vld [vmem:[%s1846 + $0x80] sm:$0xff]
  %v3362 = vld [vmem:[%s1846 + $0x90] sm:$0xff]
  %v3363 = vld [vmem:[%s1846 + $0x98] sm:$0xff]
  %v3364 = vld [vmem:[%s1846 + $0xa8] sm:$0xff]
  %v3365 = vld [vmem:[%s1846 + $0xb0] sm:$0xff]
  %v3366 = vld [vmem:[%s1846 + $0xc0] sm:$0xff]
  %v3367 = vld [vmem:[%s1846 + $0xc8] sm:$0xff]
  %v3368 = vld [vmem:[%s1846 + $0xd8] sm:$0xff]
  %v3369 = vld [vmem:[%s1846 + $0xe0] sm:$0xff]
  %v3370 = vld [vmem:[%s1846 + $0xf0] sm:$0xff]
  %v3371 = vld [vmem:[%s1846 + $0xf8] sm:$0xff]
  %v3372 = vld [vmem:[%s1846 + $0x108] sm:$0xff]
  %v3373 = vld [vmem:[%s1846 + $0x110] sm:$0xff]
  %v3374 = vld [vmem:[%s1846 + $0x120] sm:$0xff]
  %v3375 = vld [vmem:[%s1846 + $0x128] sm:$0xff]
  %v3376 = vld [vmem:[%s1846 + $0x138] sm:$0xff]
  %v3377 = vld [vmem:[%s1846 + $0x140] sm:$0xff]
  %v3378 = vld [vmem:[%s1846 + $0x150] sm:$0xff]
  %v3379 = vld [vmem:[%s1846 + $0x158] sm:$0xff]
  %v3380 = vld [vmem:[%s1846 + $0x168] sm:$0xff]
  %v3381 = vld [vmem:[%s1846 + $0x170] sm:$0xff]
  %v3382 = vmul.f32 %v3350, %v1882
  %v3383 = vmul.f32 %v3351, %v1882
  %v3384 = vmul.f32 %v3352, %v1882
  %v3385 = vmul.f32 %v3353, %v1882
  %v3386 = vmul.f32 %v3354, %v1882
  %v3387 = vmul.f32 %v3355, %v1882
  %v3388 = vmul.f32 %v3356, %v1882
  %v3389 = vmul.f32 %v3357, %v1882
  %v3390 = vmul.f32 %v3358, %v1882
  %v3391 = vmul.f32 %v3359, %v1882
  %v3392 = vmul.f32 %v3360, %v1882
  %v3393 = vmul.f32 %v3361, %v1882
  %v3394 = vmul.f32 %v3362, %v1882
  %v3395 = vmul.f32 %v3363, %v1882
  %v3396 = vmul.f32 %v3364, %v1882
  %v3397 = vmul.f32 %v3365, %v1882
  %v3398 = vmul.f32 %v3366, %v1882
  %v3399 = vmul.f32 %v3367, %v1882
  %v3400 = vmul.f32 %v3368, %v1882
  %v3401 = vmul.f32 %v3369, %v1882
  %v3402 = vmul.f32 %v3370, %v1882
  %v3403 = vmul.f32 %v3371, %v1882
  %v3404 = vmul.f32 %v3372, %v1882
  %v3405 = vmul.f32 %v3373, %v1882
  %v3406 = vmul.f32 %v3374, %v1882
  %v3407 = vmul.f32 %v3375, %v1882
  %v3408 = vmul.f32 %v3376, %v1882
  %v3409 = vmul.f32 %v3377, %v1882
  %v3410 = vmul.f32 %v3378, %v1882
  %v3411 = vmul.f32 %v3379, %v1882
  %v3412 = vmul.f32 %v3380, %v1882
  %v3413 = vmul.f32 %v3381, %v1882
  %v3414 = vadd.f32 %v3318, %v3382
  %v3415 = vadd.f32 %v3319, %v3383
  %v3416 = vadd.f32 %v3320, %v3384
  %v3417 = vadd.f32 %v3321, %v3385
  %v3418 = vadd.f32 %v3322, %v3386
  %v3419 = vadd.f32 %v3323, %v3387
  %v3420 = vadd.f32 %v3324, %v3388
  %v3421 = vadd.f32 %v3325, %v3389
  %v3422 = vadd.f32 %v3326, %v3390
  %v3423 = vadd.f32 %v3327, %v3391
  %v3424 = vadd.f32 %v3328, %v3392
  %v3425 = vadd.f32 %v3329, %v3393
  %v3426 = vadd.f32 %v3330, %v3394
  %v3427 = vadd.f32 %v3331, %v3395
  %v3428 = vadd.f32 %v3332, %v3396
  %v3429 = vadd.f32 %v3333, %v3397
  %v3430 = vadd.f32 %v3334, %v3398
  %v3431 = vadd.f32 %v3335, %v3399
  %v3432 = vadd.f32 %v3336, %v3400
  %v3433 = vadd.f32 %v3337, %v3401
  %v3434 = vadd.f32 %v3338, %v3402
  %v3435 = vadd.f32 %v3339, %v3403
  %v3436 = vadd.f32 %v3340, %v3404
  %v3437 = vadd.f32 %v3341, %v3405
  %v3438 = vadd.f32 %v3342, %v3406
  %v3439 = vadd.f32 %v3343, %v3407
  %v3440 = vadd.f32 %v3344, %v3408
  %v3441 = vadd.f32 %v3345, %v3409
  %v3442 = vadd.f32 %v3346, %v3410
  %v3443 = vadd.f32 %v3347, %v3411
  %v3444 = vadd.f32 %v3348, %v3412
  %v3445 = vadd.f32 %v3349, %v3413
  %v3446 = vld [vmem:[%s1846 + $0x1] sm:$0xff]
  %v3447 = vld [vmem:[%s1846 + $0x9] sm:$0xff]
  %v3448 = vld [vmem:[%s1846 + $0x19] sm:$0xff]
  %v3449 = vld [vmem:[%s1846 + $0x21] sm:$0xff]
  %v3450 = vld [vmem:[%s1846 + $0x31] sm:$0xff]
  %v3451 = vld [vmem:[%s1846 + $0x39] sm:$0xff]
  %v3452 = vld [vmem:[%s1846 + $0x49] sm:$0xff]
  %v3453 = vld [vmem:[%s1846 + $0x51] sm:$0xff]
  %v3454 = vld [vmem:[%s1846 + $0x61] sm:$0xff]
  %v3455 = vld [vmem:[%s1846 + $0x69] sm:$0xff]
  %v3456 = vld [vmem:[%s1846 + $0x79] sm:$0xff]
  %v3457 = vld [vmem:[%s1846 + $0x81] sm:$0xff]
  %v3458 = vld [vmem:[%s1846 + $0x91] sm:$0xff]
  %v3459 = vld [vmem:[%s1846 + $0x99] sm:$0xff]
  %v3460 = vld [vmem:[%s1846 + $0xa9] sm:$0xff]
  %v3461 = vld [vmem:[%s1846 + $0xb1] sm:$0xff]
  %v3462 = vld [vmem:[%s1846 + $0xc1] sm:$0xff]
  %v3463 = vld [vmem:[%s1846 + $0xc9] sm:$0xff]
  %v3464 = vld [vmem:[%s1846 + $0xd9] sm:$0xff]
  %v3465 = vld [vmem:[%s1846 + $0xe1] sm:$0xff]
  %v3466 = vld [vmem:[%s1846 + $0xf1] sm:$0xff]
  %v3467 = vld [vmem:[%s1846 + $0xf9] sm:$0xff]
  %v3468 = vld [vmem:[%s1846 + $0x109] sm:$0xff]
  %v3469 = vld [vmem:[%s1846 + $0x111] sm:$0xff]
  %v3470 = vld [vmem:[%s1846 + $0x121] sm:$0xff]
  %v3471 = vld [vmem:[%s1846 + $0x129] sm:$0xff]
  %v3472 = vld [vmem:[%s1846 + $0x139] sm:$0xff]
  %v3473 = vld [vmem:[%s1846 + $0x141] sm:$0xff]
  %v3474 = vld [vmem:[%s1846 + $0x151] sm:$0xff]
  %v3475 = vld [vmem:[%s1846 + $0x159] sm:$0xff]
  %v3476 = vld [vmem:[%s1846 + $0x169] sm:$0xff]
  %v3477 = vld [vmem:[%s1846 + $0x171] sm:$0xff]
  %v3478 = vmul.f32 %v3446, %v1982
  %v3479 = vmul.f32 %v3447, %v1982
  %v3480 = vmul.f32 %v3448, %v1982
  %v3481 = vmul.f32 %v3449, %v1982
  %v3482 = vmul.f32 %v3450, %v1982
  %v3483 = vmul.f32 %v3451, %v1982
  %v3484 = vmul.f32 %v3452, %v1982
  %v3485 = vmul.f32 %v3453, %v1982
  %v3486 = vmul.f32 %v3454, %v1982
  %v3487 = vmul.f32 %v3455, %v1982
  %v3488 = vmul.f32 %v3456, %v1982
  %v3489 = vmul.f32 %v3457, %v1982
  %v3490 = vmul.f32 %v3458, %v1982
  %v3491 = vmul.f32 %v3459, %v1982
  %v3492 = vmul.f32 %v3460, %v1982
  %v3493 = vmul.f32 %v3461, %v1982
  %v3494 = vmul.f32 %v3462, %v1982
  %v3495 = vmul.f32 %v3463, %v1982
  %v3496 = vmul.f32 %v3464, %v1982
  %v3497 = vmul.f32 %v3465, %v1982
  %v3498 = vmul.f32 %v3466, %v1982
  %v3499 = vmul.f32 %v3467, %v1982
  %v3500 = vmul.f32 %v3468, %v1982
  %v3501 = vmul.f32 %v3469, %v1982
  %v3502 = vmul.f32 %v3470, %v1982
  %v3503 = vmul.f32 %v3471, %v1982
  %v3504 = vmul.f32 %v3472, %v1982
  %v3505 = vmul.f32 %v3473, %v1982
  %v3506 = vmul.f32 %v3474, %v1982
  %v3507 = vmul.f32 %v3475, %v1982
  %v3508 = vmul.f32 %v3476, %v1982
  %v3509 = vmul.f32 %v3477, %v1982
  %v3510 = vadd.f32 %v3414, %v3478
  %v3511 = vadd.f32 %v3415, %v3479
  %v3512 = vadd.f32 %v3416, %v3480
  %v3513 = vadd.f32 %v3417, %v3481
  %v3514 = vadd.f32 %v3418, %v3482
  %v3515 = vadd.f32 %v3419, %v3483
  %v3516 = vadd.f32 %v3420, %v3484
  %v3517 = vadd.f32 %v3421, %v3485
  %v3518 = vadd.f32 %v3422, %v3486
  %v3519 = vadd.f32 %v3423, %v3487
  %v3520 = vadd.f32 %v3424, %v3488
  %v3521 = vadd.f32 %v3425, %v3489
  %v3522 = vadd.f32 %v3426, %v3490
  %v3523 = vadd.f32 %v3427, %v3491
  %v3524 = vadd.f32 %v3428, %v3492
  %v3525 = vadd.f32 %v3429, %v3493
  %v3526 = vadd.f32 %v3430, %v3494
  %v3527 = vadd.f32 %v3431, %v3495
  %v3528 = vadd.f32 %v3432, %v3496
  %v3529 = vadd.f32 %v3433, %v3497
  %v3530 = vadd.f32 %v3434, %v3498
  %v3531 = vadd.f32 %v3435, %v3499
  %v3532 = vadd.f32 %v3436, %v3500
  %v3533 = vadd.f32 %v3437, %v3501
  %v3534 = vadd.f32 %v3438, %v3502
  %v3535 = vadd.f32 %v3439, %v3503
  %v3536 = vadd.f32 %v3440, %v3504
  %v3537 = vadd.f32 %v3441, %v3505
  %v3538 = vadd.f32 %v3442, %v3506
  %v3539 = vadd.f32 %v3443, %v3507
  %v3540 = vadd.f32 %v3444, %v3508
  %v3541 = vadd.f32 %v3445, %v3509
  %v3542 = vld [vmem:[%s1846 + $0x2] sm:$0xff]
  %v3543 = vld [vmem:[%s1846 + $0xa] sm:$0xff]
  %v3544 = vld [vmem:[%s1846 + $0x1a] sm:$0xff]
  %v3545 = vld [vmem:[%s1846 + $0x22] sm:$0xff]
  %v3546 = vld [vmem:[%s1846 + $0x32] sm:$0xff]
  %v3547 = vld [vmem:[%s1846 + $0x3a] sm:$0xff]
  %v3548 = vld [vmem:[%s1846 + $0x4a] sm:$0xff]
  %v3549 = vld [vmem:[%s1846 + $0x52] sm:$0xff]
  %v3550 = vld [vmem:[%s1846 + $0x62] sm:$0xff]
  %v3551 = vld [vmem:[%s1846 + $0x6a] sm:$0xff]
  %v3552 = vld [vmem:[%s1846 + $0x7a] sm:$0xff]
  %v3553 = vld [vmem:[%s1846 + $0x82] sm:$0xff]
  %v3554 = vld [vmem:[%s1846 + $0x92] sm:$0xff]
  %v3555 = vld [vmem:[%s1846 + $0x9a] sm:$0xff]
  %v3556 = vld [vmem:[%s1846 + $0xaa] sm:$0xff]
  %v3557 = vld [vmem:[%s1846 + $0xb2] sm:$0xff]
  %v3558 = vld [vmem:[%s1846 + $0xc2] sm:$0xff]
  %v3559 = vld [vmem:[%s1846 + $0xca] sm:$0xff]
  %v3560 = vld [vmem:[%s1846 + $0xda] sm:$0xff]
  %v3561 = vld [vmem:[%s1846 + $0xe2] sm:$0xff]
  %v3562 = vld [vmem:[%s1846 + $0xf2] sm:$0xff]
  %v3563 = vld [vmem:[%s1846 + $0xfa] sm:$0xff]
  %v3564 = vld [vmem:[%s1846 + $0x10a] sm:$0xff]
  %v3565 = vld [vmem:[%s1846 + $0x112] sm:$0xff]
  %v3566 = vld [vmem:[%s1846 + $0x122] sm:$0xff]
  %v3567 = vld [vmem:[%s1846 + $0x12a] sm:$0xff]
  %v3568 = vld [vmem:[%s1846 + $0x13a] sm:$0xff]
  %v3569 = vld [vmem:[%s1846 + $0x142] sm:$0xff]
  %v3570 = vld [vmem:[%s1846 + $0x152] sm:$0xff]
  %v3571 = vld [vmem:[%s1846 + $0x15a] sm:$0xff]
  %v3572 = vld [vmem:[%s1846 + $0x16a] sm:$0xff]
  %v3573 = vld [vmem:[%s1846 + $0x172] sm:$0xff]
  %v3574 = vmul.f32 %v3542, %v2082
  %v3575 = vmul.f32 %v3543, %v2082
  %v3576 = vmul.f32 %v3544, %v2082
  %v3577 = vmul.f32 %v3545, %v2082
  %v3578 = vmul.f32 %v3546, %v2082
  %v3579 = vmul.f32 %v3547, %v2082
  %v3580 = vmul.f32 %v3548, %v2082
  %v3581 = vmul.f32 %v3549, %v2082
  %v3582 = vmul.f32 %v3550, %v2082
  %v3583 = vmul.f32 %v3551, %v2082
  %v3584 = vmul.f32 %v3552, %v2082
  %v3585 = vmul.f32 %v3553, %v2082
  %v3586 = vmul.f32 %v3554, %v2082
  %v3587 = vmul.f32 %v3555, %v2082
  %v3588 = vmul.f32 %v3556, %v2082
  %v3589 = vmul.f32 %v3557, %v2082
  %v3590 = vmul.f32 %v3558, %v2082
  %v3591 = vmul.f32 %v3559, %v2082
  %v3592 = vmul.f32 %v3560, %v2082
  %v3593 = vmul.f32 %v3561, %v2082
  %v3594 = vmul.f32 %v3562, %v2082
  %v3595 = vmul.f32 %v3563, %v2082
  %v3596 = vmul.f32 %v3564, %v2082
  %v3597 = vmul.f32 %v3565, %v2082
  %v3598 = vmul.f32 %v3566, %v2082
  %v3599 = vmul.f32 %v3567, %v2082
  %v3600 = vmul.f32 %v3568, %v2082
  %v3601 = vmul.f32 %v3569, %v2082
  %v3602 = vmul.f32 %v3570, %v2082
  %v3603 = vmul.f32 %v3571, %v2082
  %v3604 = vmul.f32 %v3572, %v2082
  %v3605 = vmul.f32 %v3573, %v2082
  %v3606 = vadd.f32 %v3510, %v3574
  %v3607 = vadd.f32 %v3511, %v3575
  %v3608 = vadd.f32 %v3512, %v3576
  %v3609 = vadd.f32 %v3513, %v3577
  %v3610 = vadd.f32 %v3514, %v3578
  %v3611 = vadd.f32 %v3515, %v3579
  %v3612 = vadd.f32 %v3516, %v3580
  %v3613 = vadd.f32 %v3517, %v3581
  %v3614 = vadd.f32 %v3518, %v3582
  %v3615 = vadd.f32 %v3519, %v3583
  %v3616 = vadd.f32 %v3520, %v3584
  %v3617 = vadd.f32 %v3521, %v3585
  %v3618 = vadd.f32 %v3522, %v3586
  %v3619 = vadd.f32 %v3523, %v3587
  %v3620 = vadd.f32 %v3524, %v3588
  %v3621 = vadd.f32 %v3525, %v3589
  %v3622 = vadd.f32 %v3526, %v3590
  %v3623 = vadd.f32 %v3527, %v3591
  %v3624 = vadd.f32 %v3528, %v3592
  %v3625 = vadd.f32 %v3529, %v3593
  %v3626 = vadd.f32 %v3530, %v3594
  %v3627 = vadd.f32 %v3531, %v3595
  %v3628 = vadd.f32 %v3532, %v3596
  %v3629 = vadd.f32 %v3533, %v3597
  %v3630 = vadd.f32 %v3534, %v3598
  %v3631 = vadd.f32 %v3535, %v3599
  %v3632 = vadd.f32 %v3536, %v3600
  %v3633 = vadd.f32 %v3537, %v3601
  %v3634 = vadd.f32 %v3538, %v3602
  %v3635 = vadd.f32 %v3539, %v3603
  %v3636 = vadd.f32 %v3540, %v3604
  %v3637 = vadd.f32 %v3541, %v3605
  %v3638 = vadd.f32 %v3606, %v2151
  %v3639 = vadd.f32 %v3607, %v2151
  %v3640 = vadd.f32 %v3608, %v2151
  %v3641 = vadd.f32 %v3609, %v2151
  %v3642 = vadd.f32 %v3610, %v2151
  %v3643 = vadd.f32 %v3611, %v2151
  %v3644 = vadd.f32 %v3612, %v2151
  %v3645 = vadd.f32 %v3613, %v2151
  %v3646 = vadd.f32 %v3614, %v2151
  %v3647 = vadd.f32 %v3615, %v2151
  %v3648 = vadd.f32 %v3616, %v2151
  %v3649 = vadd.f32 %v3617, %v2151
  %v3650 = vadd.f32 %v3618, %v2151
  %v3651 = vadd.f32 %v3619, %v2151
  %v3652 = vadd.f32 %v3620, %v2151
  %v3653 = vadd.f32 %v3621, %v2151
  %v3654 = vadd.f32 %v3622, %v2151
  %v3655 = vadd.f32 %v3623, %v2151
  %v3656 = vadd.f32 %v3624, %v2151
  %v3657 = vadd.f32 %v3625, %v2151
  %v3658 = vadd.f32 %v3626, %v2151
  %v3659 = vadd.f32 %v3627, %v2151
  %v3660 = vadd.f32 %v3628, %v2151
  %v3661 = vadd.f32 %v3629, %v2151
  %v3662 = vadd.f32 %v3630, %v2151
  %v3663 = vadd.f32 %v3631, %v2151
  %v3664 = vadd.f32 %v3632, %v2151
  %v3665 = vadd.f32 %v3633, %v2151
  %v3666 = vadd.f32 %v3634, %v2151
  %v3667 = vadd.f32 %v3635, %v2151
  %v3668 = vadd.f32 %v3636, %v2151
  %v3669 = vadd.f32 %v3637, %v2151
  %v3670 = vand.u32 2147483647, %v3638
  %v3671 = vand.u32 2147483647, %v3639
  %v3672 = vand.u32 2147483647, %v3640
  %v3673 = vand.u32 2147483647, %v3641
  %v3674 = vand.u32 2147483647, %v3642
  %v3675 = vand.u32 2147483647, %v3643
  %v3676 = vand.u32 2147483647, %v3644
  %v3677 = vand.u32 2147483647, %v3645
  %v3678 = vand.u32 2147483647, %v3646
  %v3679 = vand.u32 2147483647, %v3647
  %v3680 = vand.u32 2147483647, %v3648
  %v3681 = vand.u32 2147483647, %v3649
  %v3682 = vand.u32 2147483647, %v3650
  %v3683 = vand.u32 2147483647, %v3651
  %v3684 = vand.u32 2147483647, %v3652
  %v3685 = vand.u32 2147483647, %v3653
  %v3686 = vand.u32 2147483647, %v3654
  %v3687 = vand.u32 2147483647, %v3655
  %v3688 = vand.u32 2147483647, %v3656
  %v3689 = vand.u32 2147483647, %v3657
  %v3690 = vand.u32 2147483647, %v3658
  %v3691 = vand.u32 2147483647, %v3659
  %v3692 = vand.u32 2147483647, %v3660
  %v3693 = vand.u32 2147483647, %v3661
  %v3694 = vand.u32 2147483647, %v3662
  %v3695 = vand.u32 2147483647, %v3663
  %v3696 = vand.u32 2147483647, %v3664
  %v3697 = vand.u32 2147483647, %v3665
  %v3698 = vand.u32 2147483647, %v3666
  %v3699 = vand.u32 2147483647, %v3667
  %v3700 = vand.u32 2147483647, %v3668
  %v3701 = vand.u32 2147483647, %v3669
  %v3702 = vsub.f32 0.0, %v3670
  %v3703 = vsub.f32 0.0, %v3671
  %v3704 = vsub.f32 0.0, %v3672
  %v3705 = vsub.f32 0.0, %v3673
  %v3706 = vsub.f32 0.0, %v3674
  %v3707 = vsub.f32 0.0, %v3675
  %v3708 = vsub.f32 0.0, %v3676
  %v3709 = vsub.f32 0.0, %v3677
  %v3710 = vsub.f32 0.0, %v3678
  %v3711 = vsub.f32 0.0, %v3679
  %v3712 = vsub.f32 0.0, %v3680
  %v3713 = vsub.f32 0.0, %v3681
  %v3714 = vsub.f32 0.0, %v3682
  %v3715 = vsub.f32 0.0, %v3683
  %v3716 = vsub.f32 0.0, %v3684
  %v3717 = vsub.f32 0.0, %v3685
  %v3718 = vsub.f32 0.0, %v3686
  %v3719 = vsub.f32 0.0, %v3687
  %v3720 = vsub.f32 0.0, %v3688
  %v3721 = vsub.f32 0.0, %v3689
  %v3722 = vsub.f32 0.0, %v3690
  %v3723 = vsub.f32 0.0, %v3691
  %v3724 = vsub.f32 0.0, %v3692
  %v3725 = vsub.f32 0.0, %v3693
  %v3726 = vsub.f32 0.0, %v3694
  %v3727 = vsub.f32 0.0, %v3695
  %v3728 = vsub.f32 0.0, %v3696
  %v3729 = vsub.f32 0.0, %v3697
  %v3730 = vsub.f32 0.0, %v3698
  %v3731 = vsub.f32 0.0, %v3699
  %v3732 = vsub.f32 0.0, %v3700
  %v3733 = vsub.f32 0.0, %v3701
  %v3734 = vmul.f32 %v3702, 1.442695
  %v3735 = vpow.pop %v3734
  %v3736 = vmul.f32 %v3703, 1.442695
  %v3737 = vpow.pop %v3736
  %v3738 = vmul.f32 %v3704, 1.442695
  %v3739 = vpow.pop %v3738
  %v3740 = vmul.f32 %v3705, 1.442695
  %v3741 = vpow.pop %v3740
  %v3742 = vmul.f32 %v3706, 1.442695
  %v3743 = vpow.pop %v3742
  %v3744 = vmul.f32 %v3707, 1.442695
  %v3745 = vpow.pop %v3744
  %v3746 = vmul.f32 %v3708, 1.442695
  %v3747 = vpow.pop %v3746
  %v3748 = vmul.f32 %v3709, 1.442695
  %v3749 = vpow.pop %v3748
  %v3750 = vmul.f32 %v3710, 1.442695
  %v3751 = vpow.pop %v3750
  %v3752 = vmul.f32 %v3711, 1.442695
  %v3753 = vpow.pop %v3752
  %v3754 = vmul.f32 %v3712, 1.442695
  %v3755 = vpow.pop %v3754
  %v3756 = vmul.f32 %v3713, 1.442695
  %v3757 = vpow.pop %v3756
  %v3758 = vmul.f32 %v3714, 1.442695
  %v3759 = vpow.pop %v3758
  %v3760 = vmul.f32 %v3715, 1.442695
  %v3761 = vpow.pop %v3760
  %v3762 = vmul.f32 %v3716, 1.442695
  %v3763 = vpow.pop %v3762
  %v3764 = vmul.f32 %v3717, 1.442695
  %v3765 = vpow.pop %v3764
  %v3766 = vmul.f32 %v3718, 1.442695
  %v3767 = vpow.pop %v3766
  %v3768 = vmul.f32 %v3719, 1.442695
  %v3769 = vpow.pop %v3768
  %v3770 = vmul.f32 %v3720, 1.442695
  %v3771 = vpow.pop %v3770
  %v3772 = vmul.f32 %v3721, 1.442695
  %v3773 = vpow.pop %v3772
  %v3774 = vmul.f32 %v3722, 1.442695
  %v3775 = vpow.pop %v3774
  %v3776 = vmul.f32 %v3723, 1.442695
  %v3777 = vpow.pop %v3776
  %v3778 = vmul.f32 %v3724, 1.442695
  %v3779 = vpow.pop %v3778
  %v3780 = vmul.f32 %v3725, 1.442695
  %v3781 = vpow.pop %v3780
  %v3782 = vmul.f32 %v3726, 1.442695
  %v3783 = vpow.pop %v3782
  %v3784 = vmul.f32 %v3727, 1.442695
  %v3785 = vpow.pop %v3784
  %v3786 = vmul.f32 %v3728, 1.442695
  %v3787 = vpow.pop %v3786
  %v3788 = vmul.f32 %v3729, 1.442695
  %v3789 = vpow.pop %v3788
  %v3790 = vmul.f32 %v3730, 1.442695
  %v3791 = vpow.pop %v3790
  %v3792 = vmul.f32 %v3731, 1.442695
  %v3793 = vpow.pop %v3792
  %v3794 = vmul.f32 %v3732, 1.442695
  %v3795 = vpow.pop %v3794
  %v3796 = vmul.f32 %v3733, 1.442695
  %v3797 = vpow.pop %v3796
  %v3798 = vadd.f32 %v3735, 1.0
  %v3799 = vadd.f32 %v3737, 1.0
  %v3800 = vadd.f32 %v3739, 1.0
  %v3801 = vadd.f32 %v3741, 1.0
  %v3802 = vadd.f32 %v3743, 1.0
  %v3803 = vadd.f32 %v3745, 1.0
  %v3804 = vadd.f32 %v3747, 1.0
  %v3805 = vadd.f32 %v3749, 1.0
  %v3806 = vadd.f32 %v3751, 1.0
  %v3807 = vadd.f32 %v3753, 1.0
  %v3808 = vadd.f32 %v3755, 1.0
  %v3809 = vadd.f32 %v3757, 1.0
  %v3810 = vadd.f32 %v3759, 1.0
  %v3811 = vadd.f32 %v3761, 1.0
  %v3812 = vadd.f32 %v3763, 1.0
  %v3813 = vadd.f32 %v3765, 1.0
  %v3814 = vadd.f32 %v3767, 1.0
  %v3815 = vadd.f32 %v3769, 1.0
  %v3816 = vadd.f32 %v3771, 1.0
  %v3817 = vadd.f32 %v3773, 1.0
  %v3818 = vadd.f32 %v3775, 1.0
  %v3819 = vadd.f32 %v3777, 1.0
  %v3820 = vadd.f32 %v3779, 1.0
  %v3821 = vadd.f32 %v3781, 1.0
  %v3822 = vadd.f32 %v3783, 1.0
  %v3823 = vadd.f32 %v3785, 1.0
  %v3824 = vadd.f32 %v3787, 1.0
  %v3825 = vadd.f32 %v3789, 1.0
  %v3826 = vadd.f32 %v3791, 1.0
  %v3827 = vadd.f32 %v3793, 1.0
  %v3828 = vadd.f32 %v3795, 1.0
  %v3829 = vadd.f32 %v3797, 1.0
  %v3830 = vrcp.pop %v3798
  %v3831 = vrcp.pop %v3799
  %v3832 = vrcp.pop %v3800
  %v3833 = vrcp.pop %v3801
  %v3834 = vrcp.pop %v3802
  %v3835 = vrcp.pop %v3803
  %v3836 = vrcp.pop %v3804
  %v3837 = vrcp.pop %v3805
  %v3838 = vrcp.pop %v3806
  %v3839 = vrcp.pop %v3807
  %v3840 = vrcp.pop %v3808
  %v3841 = vrcp.pop %v3809
  %v3842 = vrcp.pop %v3810
  %v3843 = vrcp.pop %v3811
  %v3844 = vrcp.pop %v3812
  %v3845 = vrcp.pop %v3813
  %v3846 = vrcp.pop %v3814
  %v3847 = vrcp.pop %v3815
  %v3848 = vrcp.pop %v3816
  %v3849 = vrcp.pop %v3817
  %v3850 = vrcp.pop %v3818
  %v3851 = vrcp.pop %v3819
  %v3852 = vrcp.pop %v3820
  %v3853 = vrcp.pop %v3821
  %v3854 = vrcp.pop %v3822
  %v3855 = vrcp.pop %v3823
  %v3856 = vrcp.pop %v3824
  %v3857 = vrcp.pop %v3825
  %v3858 = vrcp.pop %v3826
  %v3859 = vrcp.pop %v3827
  %v3860 = vrcp.pop %v3828
  %v3861 = vrcp.pop %v3829
  %vm3862 = vcmp.ge.f32.partialorder %v3638, 0.0
  %vm3863 = vcmp.ge.f32.partialorder %v3639, 0.0
  %vm3864 = vcmp.ge.f32.partialorder %v3640, 0.0
  %vm3865 = vcmp.ge.f32.partialorder %v3641, 0.0
  %vm3866 = vcmp.ge.f32.partialorder %v3642, 0.0
  %vm3867 = vcmp.ge.f32.partialorder %v3643, 0.0
  %vm3868 = vcmp.ge.f32.partialorder %v3644, 0.0
  %vm3869 = vcmp.ge.f32.partialorder %v3645, 0.0
  %vm3870 = vcmp.ge.f32.partialorder %v3646, 0.0
  %vm3871 = vcmp.ge.f32.partialorder %v3647, 0.0
  %vm3872 = vcmp.ge.f32.partialorder %v3648, 0.0
  %vm3873 = vcmp.ge.f32.partialorder %v3649, 0.0
  %vm3874 = vcmp.ge.f32.partialorder %v3650, 0.0
  %vm3875 = vcmp.ge.f32.partialorder %v3651, 0.0
  %vm3876 = vcmp.ge.f32.partialorder %v3652, 0.0
  %vm3877 = vcmp.ge.f32.partialorder %v3653, 0.0
  %vm3878 = vcmp.ge.f32.partialorder %v3654, 0.0
  %vm3879 = vcmp.ge.f32.partialorder %v3655, 0.0
  %vm3880 = vcmp.ge.f32.partialorder %v3656, 0.0
  %vm3881 = vcmp.ge.f32.partialorder %v3657, 0.0
  %vm3882 = vcmp.ge.f32.partialorder %v3658, 0.0
  %vm3883 = vcmp.ge.f32.partialorder %v3659, 0.0
  %vm3884 = vcmp.ge.f32.partialorder %v3660, 0.0
  %vm3885 = vcmp.ge.f32.partialorder %v3661, 0.0
  %vm3886 = vcmp.ge.f32.partialorder %v3662, 0.0
  %vm3887 = vcmp.ge.f32.partialorder %v3663, 0.0
  %vm3888 = vcmp.ge.f32.partialorder %v3664, 0.0
  %vm3889 = vcmp.ge.f32.partialorder %v3665, 0.0
  %vm3890 = vcmp.ge.f32.partialorder %v3666, 0.0
  %vm3891 = vcmp.ge.f32.partialorder %v3667, 0.0
  %vm3892 = vcmp.ge.f32.partialorder %v3668, 0.0
  %vm3893 = vcmp.ge.f32.partialorder %v3669, 0.0
  %v3894 = vmul.f32 %v3735, %v3830
  %v3895 = vmul.f32 %v3737, %v3831
  %v3896 = vmul.f32 %v3739, %v3832
  %v3897 = vmul.f32 %v3741, %v3833
  %v3898 = vmul.f32 %v3743, %v3834
  %v3899 = vmul.f32 %v3745, %v3835
  %v3900 = vmul.f32 %v3747, %v3836
  %v3901 = vmul.f32 %v3749, %v3837
  %v3902 = vmul.f32 %v3751, %v3838
  %v3903 = vmul.f32 %v3753, %v3839
  %v3904 = vmul.f32 %v3755, %v3840
  %v3905 = vmul.f32 %v3757, %v3841
  %v3906 = vmul.f32 %v3759, %v3842
  %v3907 = vmul.f32 %v3761, %v3843
  %v3908 = vmul.f32 %v3763, %v3844
  %v3909 = vmul.f32 %v3765, %v3845
  %v3910 = vmul.f32 %v3767, %v3846
  %v3911 = vmul.f32 %v3769, %v3847
  %v3912 = vmul.f32 %v3771, %v3848
  %v3913 = vmul.f32 %v3773, %v3849
  %v3914 = vmul.f32 %v3775, %v3850
  %v3915 = vmul.f32 %v3777, %v3851
  %v3916 = vmul.f32 %v3779, %v3852
  %v3917 = vmul.f32 %v3781, %v3853
  %v3918 = vmul.f32 %v3783, %v3854
  %v3919 = vmul.f32 %v3785, %v3855
  %v3920 = vmul.f32 %v3787, %v3856
  %v3921 = vmul.f32 %v3789, %v3857
  %v3922 = vmul.f32 %v3791, %v3858
  %v3923 = vmul.f32 %v3793, %v3859
  %v3924 = vmul.f32 %v3795, %v3860
  %v3925 = vmul.f32 %v3797, %v3861
  %v3926 = vsel %vm3862, %v3830, %v3894
  %v3927 = vsel %vm3863, %v3831, %v3895
  %v3928 = vsel %vm3864, %v3832, %v3896
  %v3929 = vsel %vm3865, %v3833, %v3897
  %v3930 = vsel %vm3866, %v3834, %v3898
  %v3931 = vsel %vm3867, %v3835, %v3899
  %v3932 = vsel %vm3868, %v3836, %v3900
  %v3933 = vsel %vm3869, %v3837, %v3901
  %v3934 = vsel %vm3870, %v3838, %v3902
  %v3935 = vsel %vm3871, %v3839, %v3903
  %v3936 = vsel %vm3872, %v3840, %v3904
  %v3937 = vsel %vm3873, %v3841, %v3905
  %v3938 = vsel %vm3874, %v3842, %v3906
  %v3939 = vsel %vm3875, %v3843, %v3907
  %v3940 = vsel %vm3876, %v3844, %v3908
  %v3941 = vsel %vm3877, %v3845, %v3909
  %v3942 = vsel %vm3878, %v3846, %v3910
  %v3943 = vsel %vm3879, %v3847, %v3911
  %v3944 = vsel %vm3880, %v3848, %v3912
  %v3945 = vsel %vm3881, %v3849, %v3913
  %v3946 = vsel %vm3882, %v3850, %v3914
  %v3947 = vsel %vm3883, %v3851, %v3915
  %v3948 = vsel %vm3884, %v3852, %v3916
  %v3949 = vsel %vm3885, %v3853, %v3917
  %v3950 = vsel %vm3886, %v3854, %v3918
  %v3951 = vsel %vm3887, %v3855, %v3919
  %v3952 = vsel %vm3888, %v3856, %v3920
  %v3953 = vsel %vm3889, %v3857, %v3921
  %v3954 = vsel %vm3890, %v3858, %v3922
  %v3955 = vsel %vm3891, %v3859, %v3923
  %v3956 = vsel %vm3892, %v3860, %v3924
  %v3957 = vsel %vm3893, %v3861, %v3925
  %v3958 = vmul.f32 %v3638, %v3926
  %v3959 = vmul.f32 %v3639, %v3927
  %v3960 = vmul.f32 %v3640, %v3928
  %v3961 = vmul.f32 %v3641, %v3929
  %v3962 = vmul.f32 %v3642, %v3930
  %v3963 = vmul.f32 %v3643, %v3931
  %v3964 = vmul.f32 %v3644, %v3932
  %v3965 = vmul.f32 %v3645, %v3933
  %v3966 = vmul.f32 %v3646, %v3934
  %v3967 = vmul.f32 %v3647, %v3935
  %v3968 = vmul.f32 %v3648, %v3936
  %v3969 = vmul.f32 %v3649, %v3937
  %v3970 = vmul.f32 %v3650, %v3938
  %v3971 = vmul.f32 %v3651, %v3939
  %v3972 = vmul.f32 %v3652, %v3940
  %v3973 = vmul.f32 %v3653, %v3941
  %v3974 = vmul.f32 %v3654, %v3942
  %v3975 = vmul.f32 %v3655, %v3943
  %v3976 = vmul.f32 %v3656, %v3944
  %v3977 = vmul.f32 %v3657, %v3945
  %v3978 = vmul.f32 %v3658, %v3946
  %v3979 = vmul.f32 %v3659, %v3947
  %v3980 = vmul.f32 %v3660, %v3948
  %v3981 = vmul.f32 %v3661, %v3949
  %v3982 = vmul.f32 %v3662, %v3950
  %v3983 = vmul.f32 %v3663, %v3951
  %v3984 = vmul.f32 %v3664, %v3952
  %v3985 = vmul.f32 %v3665, %v3953
  %v3986 = vmul.f32 %v3666, %v3954
  %v3987 = vmul.f32 %v3667, %v3955
  %v3988 = vmul.f32 %v3668, %v3956
  %v3989 = vmul.f32 %v3669, %v3957
  %v3990 = vadd.f32 %v3958, %v3959
  %v3991 = vadd.f32 %v3990, %v3960
  %v3992 = vadd.f32 %v3991, %v3961
  %v3993 = vadd.f32 %v3992, %v3962
  %v3994 = vadd.f32 %v3993, %v3963
  %v3995 = vadd.f32 %v3994, %v3964
  %v3996 = vadd.f32 %v3995, %v3965
  %v3997 = vadd.f32 %v3996, %v3966
  %v3998 = vadd.f32 %v3997, %v3967
  %v3999 = vadd.f32 %v3998, %v3968
  %v4000 = vadd.f32 %v3999, %v3969
  %v4001 = vadd.f32 %v4000, %v3970
  %v4002 = vadd.f32 %v4001, %v3971
  %v4003 = vadd.f32 %v4002, %v3972
  %v4004 = vadd.f32 %v4003, %v3973
  %v4005 = vadd.f32 %v4004, %v3974
  %v4006 = vadd.f32 %v4005, %v3975
  %v4007 = vadd.f32 %v4006, %v3976
  %v4008 = vadd.f32 %v4007, %v3977
  %v4009 = vadd.f32 %v4008, %v3978
  %v4010 = vadd.f32 %v4009, %v3979
  %v4011 = vadd.f32 %v4010, %v3980
  %v4012 = vadd.f32 %v4011, %v3981
  %v4013 = vadd.f32 %v4012, %v3982
  %v4014 = vadd.f32 %v4013, %v3983
  %v4015 = vadd.f32 %v4014, %v3984
  %v4016 = vadd.f32 %v4015, %v3985
  %v4017 = vadd.f32 %v4016, %v3986
  %v4018 = vadd.f32 %v4017, %v3987
  %v4019 = vadd.f32 %v4018, %v3988
  %v4020 = vadd.f32 %v4019, %v3989
  %v4021 = vrot.slane %v4020, 4
  %v4022 = vadd.f32 %v4020, %v4021
  %v4023 = vrot.slane %v4022, 2
  %v4024 = vadd.f32 %v4022, %v4023
  %v4025 = vrot.slane %v4024, 1
  %v4026 = vadd.f32 %v4024, %v4025
  %v4027 = vmul.f32 %v4026, 0.00390625
  %4028 = vmatprep.subr.mxu0 0.0
  %4029 = vmatpush1.msra.mxu0 %v1187
  %4030 = vmatprep.subr.mxu0 0.0
  %4031 = vmatpush1.msra.mxu0 %v1188
  %4032 = vmatprep.subr.mxu0 0.0
  %4033 = vmatpush1.msra.mxu0 %v1189
  %4034 = vmatprep.subr.mxu0 0.0
  %4035 = vmatpush1.msra.mxu0 %v1190
  %4036 = vmatprep.subr.mxu0 0.0
  %4037 = vmatpush1.msra.mxu0 %v1191
  %4038 = vmatprep.subr.mxu0 0.0
  %4039 = vmatpush1.msra.mxu0 %v1192
  %4040 = vmatprep.subr.mxu0 0.0
  %4041 = vmatpush1.msra.mxu0 %v1193
  %4042 = vmatprep.subr.mxu0 0.0
  %4043 = vmatpush1.msra.mxu0 %v1194
  %4044 = vmatprep.subr.mxu0 0.0
  %4045 = vmatpush1.msra.mxu0 %v1195
  %4046 = vmatprep.subr.mxu0 0.0
  %4047 = vmatpush1.msra.mxu0 %v1196
  %4048 = vmatprep.subr.mxu0 0.0
  %4049 = vmatpush1.msra.mxu0 %v1197
  %4050 = vmatprep.subr.mxu0 0.0
  %4051 = vmatpush1.msra.mxu0 %v1198
  %4052 = vmatprep.subr.mxu0 0.0
  %4053 = vmatpush1.msra.mxu0 %v1199
  %4054 = vmatprep.subr.mxu0 0.0
  %4055 = vmatpush1.msra.mxu0 %v1200
  %4056 = vmatprep.subr.mxu0 0.0
  %4057 = vmatpush1.msra.mxu0 %v1201
  %4058 = vmatprep.subr.mxu0 0.0
  %4059 = vmatpush1.msra.mxu0 %v1202
  %4060 = vmatprep.subr.mxu0 0.0
  %4061 = vmatpush1.msra.mxu0 0.0
  %4062 = vmatprep.subr.mxu0 0.0
  %4063 = vmatpush1.msra.mxu0 0.0
  %4064 = vmatprep.subr.mxu0 0.0
  %4065 = vmatpush1.msra.mxu0 0.0
  %4066 = vmatprep.subr.mxu0 0.0
  %4067 = vmatpush1.msra.mxu0 0.0
  %4068 = vmatprep.subr.mxu0 0.0
  %4069 = vmatpush1.msra.mxu0 0.0
  %4070 = vmatprep.subr.mxu0 0.0
  %4071 = vmatpush1.msra.mxu0 0.0
  %4072 = vmatprep.subr.mxu0 0.0
  %4073 = vmatpush1.msra.mxu0 0.0
  %4074 = vmatprep.subr.mxu0 0.0
  %4075 = vmatpush1.msra.mxu0 0.0
  %4076 = vmatprep.subr.mxu0 0.0
  %4077 = vmatpush1.msra.mxu0 0.0
  %4078 = vmatprep.subr.mxu0 0.0
  %4079 = vmatpush1.msra.mxu0 0.0
  %4080 = vmatprep.subr.mxu0 0.0
  %4081 = vmatpush1.msra.mxu0 0.0
  %4082 = vmatprep.subr.mxu0 0.0
  %4083 = vmatpush1.msra.mxu0 0.0
  %4084 = vmatprep.subr.mxu0 0.0
  %4085 = vmatpush1.msra.mxu0 0.0
  %4086 = vmatprep.subr.mxu0 0.0
  %4087 = vmatpush1.msra.mxu0 0.0
  %4088 = vmatprep.subr.mxu0 0.0
  %4089 = vmatpush1.msra.mxu0 0.0
  %4090 = vmatprep.subr.mxu0 0.0
  %4091 = vmatpush1.msra.mxu0 0.0
  %4092 = vmatprep.mubr.f32.mxu0 0.0
  %4093 = vmatmul.mubr.f32.gmra.mrb[0].mxu0 %v4027
  %v4094 = vpop.f32.mrb[0].mxu0
  %v4095 = vadd.f32 %v1203, %v4094
  %v4096 = vpop.f32.mrb[0].mxu0
  %4097 = vdwg.mxu0
  %v4098 = vand.u32 2147483647, %v4095
  %v4099 = vsub.f32 0.0, %v4098
  %v4100 = vmul.f32 %v4099, 1.442695
  %v4101 = vpow.pop %v4100
  %v4102 = vadd.f32 %v4101, 1.0
  %v4103 = vrcp.pop %v4102
  %vm4104 = vcmp.ge.f32.partialorder %v4095, 0.0
  %v4105 = vmul.f32 %v4101, %v4103
  %v4106 = vsel %vm4104, %v4103, %v4105
  %v4107 = vmul.f32 %v4095, %v4106
  %v4109 = vsel %vm2623, %v4107, 0
  %4111 = vmatprep.subr.mxu0 0.0
  %4112 = vmatpush1.msra.mxu0 %v1204
  %4113 = vmatprep.subr.mxu0 0.0
  %4114 = vmatpush1.msra.mxu0 0.0
  %4115 = vmatprep.subr.mxu0 0.0
  %4116 = vmatpush1.msra.mxu0 0.0
  %4117 = vmatprep.subr.mxu0 0.0
  %4118 = vmatpush1.msra.mxu0 0.0
  %4119 = vmatprep.subr.mxu0 0.0
  %4120 = vmatpush1.msra.mxu0 0.0
  %4121 = vmatprep.subr.mxu0 0.0
  %4122 = vmatpush1.msra.mxu0 0.0
  %4123 = vmatprep.subr.mxu0 0.0
  %4124 = vmatpush1.msra.mxu0 0.0
  %4125 = vmatprep.subr.mxu0 0.0
  %4126 = vmatpush1.msra.mxu0 0.0
  %4127 = vmatprep.subr.mxu0 0.0
  %4128 = vmatpush1.msra.mxu0 0.0
  %4129 = vmatprep.subr.mxu0 0.0
  %4130 = vmatpush1.msra.mxu0 0.0
  %4131 = vmatprep.subr.mxu0 0.0
  %4132 = vmatpush1.msra.mxu0 0.0
  %4133 = vmatprep.subr.mxu0 0.0
  %4134 = vmatpush1.msra.mxu0 0.0
  %4135 = vmatprep.subr.mxu0 0.0
  %4136 = vmatpush1.msra.mxu0 0.0
  %4137 = vmatprep.subr.mxu0 0.0
  %4138 = vmatpush1.msra.mxu0 0.0
  %4139 = vmatprep.subr.mxu0 0.0
  %4140 = vmatpush1.msra.mxu0 0.0
  %4141 = vmatprep.subr.mxu0 0.0
  %4142 = vmatpush1.msra.mxu0 0.0
  %4143 = vmatprep.subr.mxu0 0.0
  %4144 = vmatpush1.msra.mxu0 0.0
  %4145 = vmatprep.subr.mxu0 0.0
  %4146 = vmatpush1.msra.mxu0 0.0
  %4147 = vmatprep.subr.mxu0 0.0
  %4148 = vmatpush1.msra.mxu0 0.0
  %4149 = vmatprep.subr.mxu0 0.0
  %4150 = vmatpush1.msra.mxu0 0.0
  %4151 = vmatprep.subr.mxu0 0.0
  %4152 = vmatpush1.msra.mxu0 0.0
  %4153 = vmatprep.subr.mxu0 0.0
  %4154 = vmatpush1.msra.mxu0 0.0
  %4155 = vmatprep.subr.mxu0 0.0
  %4156 = vmatpush1.msra.mxu0 0.0
  %4157 = vmatprep.subr.mxu0 0.0
  %4158 = vmatpush1.msra.mxu0 0.0
  %4159 = vmatprep.subr.mxu0 0.0
  %4160 = vmatpush1.msra.mxu0 0.0
  %4161 = vmatprep.subr.mxu0 0.0
  %4162 = vmatpush1.msra.mxu0 0.0
  %4163 = vmatprep.subr.mxu0 0.0
  %4164 = vmatpush1.msra.mxu0 0.0
  %4165 = vmatprep.subr.mxu0 0.0
  %4166 = vmatpush1.msra.mxu0 0.0
  %4167 = vmatprep.subr.mxu0 0.0
  %4168 = vmatpush1.msra.mxu0 0.0
  %4169 = vmatprep.subr.mxu0 0.0
  %4170 = vmatpush1.msra.mxu0 0.0
  %4171 = vmatprep.subr.mxu0 0.0
  %4172 = vmatpush1.msra.mxu0 0.0
  %4173 = vmatprep.subr.mxu0 0.0
  %4174 = vmatpush1.msra.mxu0 0.0
  %4175 = vmatprep.mubr.f32.mxu0 0.0
  %4176 = vmatmul.mubr.f32.gmra.mrb[0].mxu0 %v4109
  %v4177 = vpop.f32.mrb[0].mxu0
  %v4178 = vadd.f32 %v1205, %v4177
  %v4179 = vpop.f32.mrb[0].mxu0
  %4180 = vdwg.mxu0
  %v4181 = vand.u32 2147483647, %v4178
  %v4182 = vsub.f32 0.0, %v4181
  %v4183 = vmul.f32 %v4182, 1.442695
  %v4184 = vpow.pop %v4183
  %v4185 = vadd.f32 %v4184, 1.0
  %v4186 = vrcp.pop %v4185
  %vm4187 = vcmp.ge.f32.partialorder %v4178, 0.0
  %v4188 = vmul.f32 %v4184, %v4186
  %v4189 = vsel %vm4187, %v4186, %v4188
  %v4190 = vlaneseq
  %v4191 = vshrl.u32 %v4190, 7
  %v4192 = vsub.s32 0, %v4191
  %v4193 = vrot.slane %v4189, %v4192
  %v4194 = vmul.f32 %v3958, %v4193
  %v4195 = vmul.f32 %v3959, %v4193
  %v4196 = vmul.f32 %v3960, %v4193
  %v4197 = vmul.f32 %v3961, %v4193
  %v4198 = vmul.f32 %v3962, %v4193
  %v4199 = vmul.f32 %v3963, %v4193
  %v4200 = vmul.f32 %v3964, %v4193
  %v4201 = vmul.f32 %v3965, %v4193
  %v4202 = vmul.f32 %v3966, %v4193
  %v4203 = vmul.f32 %v3967, %v4193
  %v4204 = vmul.f32 %v3968, %v4193
  %v4205 = vmul.f32 %v3969, %v4193
  %v4206 = vmul.f32 %v3970, %v4193
  %v4207 = vmul.f32 %v3971, %v4193
  %v4208 = vmul.f32 %v3972, %v4193
  %v4209 = vmul.f32 %v3973, %v4193
  %v4210 = vmul.f32 %v3974, %v4193
  %v4211 = vmul.f32 %v3975, %v4193
  %v4212 = vmul.f32 %v3976, %v4193
  %v4213 = vmul.f32 %v3977, %v4193
  %v4214 = vmul.f32 %v3978, %v4193
  %v4215 = vmul.f32 %v3979, %v4193
  %v4216 = vmul.f32 %v3980, %v4193
  %v4217 = vmul.f32 %v3981, %v4193
  %v4218 = vmul.f32 %v3982, %v4193
  %v4219 = vmul.f32 %v3983, %v4193
  %v4220 = vmul.f32 %v3984, %v4193
  %v4221 = vmul.f32 %v3985, %v4193
  %v4222 = vmul.f32 %v3986, %v4193
  %v4223 = vmul.f32 %v3987, %v4193
  %v4224 = vmul.f32 %v3988, %v4193
  %v4225 = vmul.f32 %v3989, %v4193
  %v4226 = vpack.c.bf16 %v4195, %v4194
  %v4227 = vpack.c.bf16 %v4197, %v4196
  %v4228 = vpack.c.bf16 %v4199, %v4198
  %v4229 = vpack.c.bf16 %v4201, %v4200
  %v4230 = vpack.c.bf16 %v4203, %v4202
  %v4231 = vpack.c.bf16 %v4205, %v4204
  %v4232 = vpack.c.bf16 %v4207, %v4206
  %v4233 = vpack.c.bf16 %v4209, %v4208
  %v4234 = vpack.c.bf16 %v4211, %v4210
  %v4235 = vpack.c.bf16 %v4213, %v4212
  %v4236 = vpack.c.bf16 %v4215, %v4214
  %v4237 = vpack.c.bf16 %v4217, %v4216
  %v4238 = vpack.c.bf16 %v4219, %v4218
  %v4239 = vpack.c.bf16 %v4221, %v4220
  %v4240 = vpack.c.bf16 %v4223, %v4222
  %v4241 = vpack.c.bf16 %v4225, %v4224
  %s4242 = scalar_lea.vmem [#allocation3], 128
  %4243 = vst [vmem:[%s4242] sm:$0xff] %v4226
  %4244 = vst [vmem:[%s4242 + $0x8] sm:$0xff] %v4227
  %4245 = vst [vmem:[%s4242 + $0x10] sm:$0xff] %v4228
  %4246 = vst [vmem:[%s4242 + $0x18] sm:$0xff] %v4229
  %4247 = vst [vmem:[%s4242 + $0x20] sm:$0xff] %v4230
  %4248 = vst [vmem:[%s4242 + $0x28] sm:$0xff] %v4231
  %4249 = vst [vmem:[%s4242 + $0x30] sm:$0xff] %v4232
  %4250 = vst [vmem:[%s4242 + $0x38] sm:$0xff] %v4233
  %4251 = vst [vmem:[%s4242 + $0x40] sm:$0xff] %v4234
  %4252 = vst [vmem:[%s4242 + $0x48] sm:$0xff] %v4235
  %4253 = vst [vmem:[%s4242 + $0x50] sm:$0xff] %v4236
  %4254 = vst [vmem:[%s4242 + $0x58] sm:$0xff] %v4237
  %4255 = vst [vmem:[%s4242 + $0x60] sm:$0xff] %v4238
  %4256 = vst [vmem:[%s4242 + $0x68] sm:$0xff] %v4239
  %4257 = vst [vmem:[%s4242 + $0x70] sm:$0xff] %v4240
  %4258 = vst [vmem:[%s4242 + $0x78] sm:$0xff] %v4241
  %v4259 = vld [vmem:[#allocation3] sm:$0xff]
  %v4260 = vld [vmem:[#allocation3 + $0x8] sm:$0xff]
  %v4261 = vld [vmem:[#allocation3 + $0x10] sm:$0xff]
  %v4262 = vld [vmem:[#allocation3 + $0x18] sm:$0xff]
  %v4263 = vld [vmem:[#allocation3 + $0x20] sm:$0xff]
  %v4264 = vld [vmem:[#allocation3 + $0x28] sm:$0xff]
  %v4265 = vld [vmem:[#allocation3 + $0x30] sm:$0xff]
  %v4266 = vld [vmem:[#allocation3 + $0x38] sm:$0xff]
  %v4267 = vld [vmem:[#allocation3 + $0x40] sm:$0xff]
  %v4268 = vld [vmem:[#allocation3 + $0x48] sm:$0xff]
  %v4269 = vld [vmem:[#allocation3 + $0x50] sm:$0xff]
  %v4270 = vld [vmem:[#allocation3 + $0x58] sm:$0xff]
  %v4271 = vld [vmem:[#allocation3 + $0x60] sm:$0xff]
  %v4272 = vld [vmem:[#allocation3 + $0x68] sm:$0xff]
  %v4273 = vld [vmem:[#allocation3 + $0x70] sm:$0xff]
  %v4274 = vld [vmem:[#allocation3 + $0x78] sm:$0xff]
  %v4275 = vld [vmem:[#allocation3 + $0x80] sm:$0xff]
  %v4276 = vld [vmem:[#allocation3 + $0x88] sm:$0xff]
  %v4277 = vld [vmem:[#allocation3 + $0x90] sm:$0xff]
  %v4278 = vld [vmem:[#allocation3 + $0x98] sm:$0xff]
  %v4279 = vld [vmem:[#allocation3 + $0xa0] sm:$0xff]
  %v4280 = vld [vmem:[#allocation3 + $0xa8] sm:$0xff]
  %v4281 = vld [vmem:[#allocation3 + $0xb0] sm:$0xff]
  %v4282 = vld [vmem:[#allocation3 + $0xb8] sm:$0xff]
  %v4283 = vld [vmem:[#allocation3 + $0xc0] sm:$0xff]
  %v4284 = vld [vmem:[#allocation3 + $0xc8] sm:$0xff]
  %v4285 = vld [vmem:[#allocation3 + $0xd0] sm:$0xff]
  %v4286 = vld [vmem:[#allocation3 + $0xd8] sm:$0xff]
  %v4287 = vld [vmem:[#allocation3 + $0xe0] sm:$0xff]
  %v4288 = vld [vmem:[#allocation3 + $0xe8] sm:$0xff]
  %v4289 = vld [vmem:[#allocation3 + $0xf0] sm:$0xff]
  %v4290 = vld [vmem:[#allocation3 + $0xf8] sm:$0xff]
  %v4291 = vld [vmem:[%s9] sm:$0xf]
  %v4292 = vld [vmem:[%s9 + $0x4] sm:$0xf]
  %v4293 = vld [vmem:[%s9 + $0x8] sm:$0xf]
  %v4294 = vld [vmem:[%s9 + $0xc] sm:$0xf]
  %v4295 = vld [vmem:[%s9 + $0x10] sm:$0xf]
  %v4296 = vld [vmem:[%s9 + $0x14] sm:$0xf]
  %v4297 = vld [vmem:[%s9 + $0x18] sm:$0xf]
  %v4298 = vld [vmem:[%s9 + $0x1c] sm:$0xf]
  %v4299 = vld [vmem:[%s9 + $0x20] sm:$0xf]
  %v4300 = vld [vmem:[%s9 + $0x24] sm:$0xf]
  %v4301 = vld [vmem:[%s9 + $0x28] sm:$0xf]
  %v4302 = vld [vmem:[%s9 + $0x2c] sm:$0xf]
  %v4303 = vld [vmem:[%s9 + $0x30] sm:$0xf]
  %v4304 = vld [vmem:[%s9 + $0x34] sm:$0xf]
  %v4305 = vld [vmem:[%s9 + $0x38] sm:$0xf]
  %v4306 = vld [vmem:[%s9 + $0x3c] sm:$0xf]
  %v4307 = vld [vmem:[%s10] sm:$0x1]
  %v4309 = vlaneseq
  %v4310 = vshrl.u32 %v4309, 7
  %v4311 = vsub.s32 0, %v4310
  %v4312 = vrot.slane %v4307, %v4311
  %v4330 = vunpack.c.l.b16 %v4291
  %v4331 = vunpack.c.l.b16 %v4292
  %v4332 = vunpack.c.l.b16 %v4293
  %v4333 = vunpack.c.l.b16 %v4294
  %v4334 = vunpack.c.l.b16 %v4295
  %v4335 = vunpack.c.l.b16 %v4296
  %v4336 = vunpack.c.l.b16 %v4297
  %v4337 = vunpack.c.l.b16 %v4298
  %v4338 = vunpack.c.l.b16 %v4299
  %v4339 = vunpack.c.l.b16 %v4300
  %v4340 = vunpack.c.l.b16 %v4301
  %v4341 = vunpack.c.l.b16 %v4302
  %v4342 = vunpack.c.l.b16 %v4303
  %v4343 = vunpack.c.l.b16 %v4304
  %v4344 = vunpack.c.l.b16 %v4305
  %v4345 = vunpack.c.l.b16 %v4306
  %v4346 = vpack.c.b16 %v4331, %v4330
  %v4347 = vpack.c.b16 %v4333, %v4332
  %v4348 = vpack.c.b16 %v4335, %v4334
  %v4349 = vpack.c.b16 %v4337, %v4336
  %v4350 = vpack.c.b16 %v4339, %v4338
  %v4351 = vpack.c.b16 %v4341, %v4340
  %v4352 = vpack.c.b16 %v4343, %v4342
  %v4353 = vpack.c.b16 %v4345, %v4344
  %4362 = vmatprep.subr.bf16.mxu0 0
  %4363 = vmatpush1.bf16.msra.mxu0 %v4346
  %4364 = vmatprep.subr.bf16.mxu0 0
  %4365 = vmatpush1.bf16.msra.mxu0 %v4347
  %4366 = vmatprep.subr.bf16.mxu0 0
  %4367 = vmatpush1.bf16.msra.mxu0 %v4348
  %4368 = vmatprep.subr.bf16.mxu0 0
  %4369 = vmatpush1.bf16.msra.mxu0 %v4349
  %4370 = vmatprep.subr.bf16.mxu0 0
  %4371 = vmatpush1.bf16.msra.mxu0 %v4350
  %4372 = vmatprep.subr.bf16.mxu0 0
  %4373 = vmatpush1.bf16.msra.mxu0 %v4351
  %4374 = vmatprep.subr.bf16.mxu0 0
  %4375 = vmatpush1.bf16.msra.mxu0 %v4352
  %4376 = vmatprep.subr.bf16.mxu0 0
  %4377 = vmatpush1.bf16.msra.mxu0 %v4353
  %4378 = vmatprep.subr.bf16.mxu0 0
  %4379 = vmatpush1.bf16.msra.mxu0 0
  %4380 = vmatprep.subr.bf16.mxu0 0
  %4381 = vmatpush1.bf16.msra.mxu0 0
  %4382 = vmatprep.subr.bf16.mxu0 0
  %4383 = vmatpush1.bf16.msra.mxu0 0
  %4384 = vmatprep.subr.bf16.mxu0 0
  %4385 = vmatpush1.bf16.msra.mxu0 0
  %4386 = vmatprep.subr.bf16.mxu0 0
  %4387 = vmatpush1.bf16.msra.mxu0 0
  %4388 = vmatprep.subr.bf16.mxu0 0
  %4389 = vmatpush1.bf16.msra.mxu0 0
  %4390 = vmatprep.subr.bf16.mxu0 0
  %4391 = vmatpush1.bf16.msra.mxu0 0
  %4392 = vmatprep.subr.bf16.mxu0 0
  %4393 = vmatpush1.bf16.msra.mxu0 0
  %4394 = vmatprep.mubr.bf16.mxu0 0
  %4395 = vmatmul.mubr.bf16.gmra.mrb[0].mxu0 %v4259
  %v4396 = vpop.f32.mrb[0].mxu0
  %v4397 = vadd.f32 %v4312, %v4396
  %v4398 = vpop.f32.mrb[0].mxu0
  %v4399 = vpop.f32.mrb[0].mxu0
  %v4400 = vadd.f32 %v4312, %v4399
  %v4401 = vpop.f32.mrb[0].mxu0
  %4402 = vmatprep.mubr.bf16.mxu0 0
  %4403 = vmatmul.mubr.bf16.gmra.mrb[0].mxu0 %v4260
  %v4404 = vpop.f32.mrb[0].mxu0
  %v4405 = vadd.f32 %v4312, %v4404
  %v4406 = vpop.f32.mrb[0].mxu0
  %v4407 = vpop.f32.mrb[0].mxu0
  %v4408 = vadd.f32 %v4312, %v4407
  %v4409 = vpop.f32.mrb[0].mxu0
  %4410 = vmatprep.mubr.bf16.mxu0 0
  %4411 = vmatmul.mubr.bf16.gmra.mrb[0].mxu0 %v4261
  %v4412 = vpop.f32.mrb[0].mxu0
  %v4413 = vadd.f32 %v4312, %v4412
  %v4414 = vpop.f32.mrb[0].mxu0
  %v4415 = vpop.f32.mrb[0].mxu0
  %v4416 = vadd.f32 %v4312, %v4415
  %v4417 = vpop.f32.mrb[0].mxu0
  %4418 = vmatprep.mubr.bf16.mxu0 0
  %4419 = vmatmul.mubr.bf16.gmra.mrb[0].mxu0 %v4262
  %v4420 = vpop.f32.mrb[0].mxu0
  %v4421 = vadd.f32 %v4312, %v4420
  %v4422 = vpop.f32.mrb[0].mxu0
  %v4423 = vpop.f32.mrb[0].mxu0
  %v4424 = vadd.f32 %v4312, %v4423
  %v4425 = vpop.f32.mrb[0].mxu0
  %4426 = vmatprep.mubr.bf16.mxu0 0
  %4427 = vmatmul.mubr.bf16.gmra.mrb[0].mxu0 %v4263
  %v4428 = vpop.f32.mrb[0].mxu0
  %v4429 = vadd.f32 %v4312, %v4428
  %v4430 = vpop.f32.mrb[0].mxu0
  %v4431 = vpop.f32.mrb[0].mxu0
  %v4432 = vadd.f32 %v4312, %v4431
  %v4433 = vpop.f32.mrb[0].mxu0
  %4434 = vmatprep.mubr.bf16.mxu0 0
  %4435 = vmatmul.mubr.bf16.gmra.mrb[0].mxu0 %v4264
  %v4436 = vpop.f32.mrb[0].mxu0
  %v4437 = vadd.f32 %v4312, %v4436
  %v4438 = vpop.f32.mrb[0].mxu0
  %v4439 = vpop.f32.mrb[0].mxu0
  %v4440 = vadd.f32 %v4312, %v4439
  %v4441 = vpop.f32.mrb[0].mxu0
  %4442 = vmatprep.mubr.bf16.mxu0 0
  %4443 = vmatmul.mubr.bf16.gmra.mrb[0].mxu0 %v4265
  %v4444 = vpop.f32.mrb[0].mxu0
  %v4445 = vadd.f32 %v4312, %v4444
  %v4446 = vpop.f32.mrb[0].mxu0
  %v4447 = vpop.f32.mrb[0].mxu0
  %v4448 = vadd.f32 %v4312, %v4447
  %v4449 = vpop.f32.mrb[0].mxu0
  %4450 = vmatprep.mubr.bf16.mxu0 0
  %4451 = vmatmul.mubr.bf16.gmra.mrb[0].mxu0 %v4266
  %v4452 = vpop.f32.mrb[0].mxu0
  %v4453 = vadd.f32 %v4312, %v4452
  %v4454 = vpop.f32.mrb[0].mxu0
  %v4455 = vpop.f32.mrb[0].mxu0
  %v4456 = vadd.f32 %v4312, %v4455
  %v4457 = vpop.f32.mrb[0].mxu0
  %4458 = vmatprep.mubr.bf16.mxu0 0
  %4459 = vmatmul.mubr.bf16.gmra.mrb[0].mxu0 %v4267
  %v4460 = vpop.f32.mrb[0].mxu0
  %v4461 = vadd.f32 %v4312, %v4460
  %v4462 = vpop.f32.mrb[0].mxu0
  %v4463 = vpop.f32.mrb[0].mxu0
  %v4464 = vadd.f32 %v4312, %v4463
  %v4465 = vpop.f32.mrb[0].mxu0
  %4466 = vmatprep.mubr.bf16.mxu0 0
  %4467 = vmatmul.mubr.bf16.gmra.mrb[0].mxu0 %v4268
  %v4468 = vpop.f32.mrb[0].mxu0
  %v4469 = vadd.f32 %v4312, %v4468
  %v4470 = vpop.f32.mrb[0].mxu0
  %v4471 = vpop.f32.mrb[0].mxu0
  %v4472 = vadd.f32 %v4312, %v4471
  %v4473 = vpop.f32.mrb[0].mxu0
  %4474 = vmatprep.mubr.bf16.mxu0 0
  %4475 = vmatmul.mubr.bf16.gmra.mrb[0].mxu0 %v4269
  %v4476 = vpop.f32.mrb[0].mxu0
  %v4477 = vadd.f32 %v4312, %v4476
  %v4478 = vpop.f32.mrb[0].mxu0
  %v4479 = vpop.f32.mrb[0].mxu0
  %v4480 = vadd.f32 %v4312, %v4479
  %v4481 = vpop.f32.mrb[0].mxu0
  %4482 = vmatprep.mubr.bf16.mxu0 0
  %4483 = vmatmul.mubr.bf16.gmra.mrb[0].mxu0 %v4270
  %v4484 = vpop.f32.mrb[0].mxu0
  %v4485 = vadd.f32 %v4312, %v4484
  %v4486 = vpop.f32.mrb[0].mxu0
  %v4487 = vpop.f32.mrb[0].mxu0
  %v4488 = vadd.f32 %v4312, %v4487
  %v4489 = vpop.f32.mrb[0].mxu0
  %4490 = vmatprep.mubr.bf16.mxu0 0
  %4491 = vmatmul.mubr.bf16.gmra.mrb[0].mxu0 %v4271
  %v4492 = vpop.f32.mrb[0].mxu0
  %v4493 = vadd.f32 %v4312, %v4492
  %v4494 = vpop.f32.mrb[0].mxu0
  %v4495 = vpop.f32.mrb[0].mxu0
  %v4496 = vadd.f32 %v4312, %v4495
  %v4497 = vpop.f32.mrb[0].mxu0
  %4498 = vmatprep.mubr.bf16.mxu0 0
  %4499 = vmatmul.mubr.bf16.gmra.mrb[0].mxu0 %v4272
  %v4500 = vpop.f32.mrb[0].mxu0
  %v4501 = vadd.f32 %v4312, %v4500
  %v4502 = vpop.f32.mrb[0].mxu0
  %v4503 = vpop.f32.mrb[0].mxu0
  %v4504 = vadd.f32 %v4312, %v4503
  %v4505 = vpop.f32.mrb[0].mxu0
  %4506 = vmatprep.mubr.bf16.mxu0 0
  %4507 = vmatmul.mubr.bf16.gmra.mrb[0].mxu0 %v4273
  %v4508 = vpop.f32.mrb[0].mxu0
  %v4509 = vadd.f32 %v4312, %v4508
  %v4510 = vpop.f32.mrb[0].mxu0
  %v4511 = vpop.f32.mrb[0].mxu0
  %v4512 = vadd.f32 %v4312, %v4511
  %v4513 = vpop.f32.mrb[0].mxu0
  %4514 = vmatprep.mubr.bf16.mxu0 0
  %4515 = vmatmul.mubr.bf16.gmra.mrb[0].mxu0 %v4274
  %v4516 = vpop.f32.mrb[0].mxu0
  %v4517 = vadd.f32 %v4312, %v4516
  %v4518 = vpop.f32.mrb[0].mxu0
  %v4519 = vpop.f32.mrb[0].mxu0
  %v4520 = vadd.f32 %v4312, %v4519
  %v4521 = vpop.f32.mrb[0].mxu0
  %4522 = vmatprep.mubr.bf16.mxu0 0
  %4523 = vmatmul.mubr.bf16.gmra.mrb[0].mxu0 %v4275
  %v4524 = vpop.f32.mrb[0].mxu0
  %v4525 = vadd.f32 %v4312, %v4524
  %v4526 = vpop.f32.mrb[0].mxu0
  %v4527 = vpop.f32.mrb[0].mxu0
  %v4528 = vadd.f32 %v4312, %v4527
  %v4529 = vpop.f32.mrb[0].mxu0
  %4530 = vmatprep.mubr.bf16.mxu0 0
  %4531 = vmatmul.mubr.bf16.gmra.mrb[0].mxu0 %v4276
  %v4532 = vpop.f32.mrb[0].mxu0
  %v4533 = vadd.f32 %v4312, %v4532
  %v4534 = vpop.f32.mrb[0].mxu0
  %v4535 = vpop.f32.mrb[0].mxu0
  %v4536 = vadd.f32 %v4312, %v4535
  %v4537 = vpop.f32.mrb[0].mxu0
  %4538 = vmatprep.mubr.bf16.mxu0 0
  %4539 = vmatmul.mubr.bf16.gmra.mrb[0].mxu0 %v4277
  %v4540 = vpop.f32.mrb[0].mxu0
  %v4541 = vadd.f32 %v4312, %v4540
  %v4542 = vpop.f32.mrb[0].mxu0
  %v4543 = vpop.f32.mrb[0].mxu0
  %v4544 = vadd.f32 %v4312, %v4543
  %v4545 = vpop.f32.mrb[0].mxu0
  %4546 = vmatprep.mubr.bf16.mxu0 0
  %4547 = vmatmul.mubr.bf16.gmra.mrb[0].mxu0 %v4278
  %v4548 = vpop.f32.mrb[0].mxu0
  %v4549 = vadd.f32 %v4312, %v4548
  %v4550 = vpop.f32.mrb[0].mxu0
  %v4551 = vpop.f32.mrb[0].mxu0
  %v4552 = vadd.f32 %v4312, %v4551
  %v4553 = vpop.f32.mrb[0].mxu0
  %4554 = vmatprep.mubr.bf16.mxu0 0
  %4555 = vmatmul.mubr.bf16.gmra.mrb[0].mxu0 %v4279
  %v4556 = vpop.f32.mrb[0].mxu0
  %v4557 = vadd.f32 %v4312, %v4556
  %v4558 = vpop.f32.mrb[0].mxu0
  %v4559 = vpop.f32.mrb[0].mxu0
  %v4560 = vadd.f32 %v4312, %v4559
  %v4561 = vpop.f32.mrb[0].mxu0
  %4562 = vmatprep.mubr.bf16.mxu0 0
  %4563 = vmatmul.mubr.bf16.gmra.mrb[0].mxu0 %v4280
  %v4564 = vpop.f32.mrb[0].mxu0
  %v4565 = vadd.f32 %v4312, %v4564
  %v4566 = vpop.f32.mrb[0].mxu0
  %v4567 = vpop.f32.mrb[0].mxu0
  %v4568 = vadd.f32 %v4312, %v4567
  %v4569 = vpop.f32.mrb[0].mxu0
  %4570 = vmatprep.mubr.bf16.mxu0 0
  %4571 = vmatmul.mubr.bf16.gmra.mrb[0].mxu0 %v4281
  %v4572 = vpop.f32.mrb[0].mxu0
  %v4573 = vadd.f32 %v4312, %v4572
  %v4574 = vpop.f32.mrb[0].mxu0
  %v4575 = vpop.f32.mrb[0].mxu0
  %v4576 = vadd.f32 %v4312, %v4575
  %v4577 = vpop.f32.mrb[0].mxu0
  %4578 = vmatprep.mubr.bf16.mxu0 0
  %4579 = vmatmul.mubr.bf16.gmra.mrb[0].mxu0 %v4282
  %v4580 = vpop.f32.mrb[0].mxu0
  %v4581 = vadd.f32 %v4312, %v4580
  %v4582 = vpop.f32.mrb[0].mxu0
  %v4583 = vpop.f32.mrb[0].mxu0
  %v4584 = vadd.f32 %v4312, %v4583
  %v4585 = vpop.f32.mrb[0].mxu0
  %4586 = vmatprep.mubr.bf16.mxu0 0
  %4587 = vmatmul.mubr.bf16.gmra.mrb[0].mxu0 %v4283
  %v4588 = vpop.f32.mrb[0].mxu0
  %v4589 = vadd.f32 %v4312, %v4588
  %v4590 = vpop.f32.mrb[0].mxu0
  %v4591 = vpop.f32.mrb[0].mxu0
  %v4592 = vadd.f32 %v4312, %v4591
  %v4593 = vpop.f32.mrb[0].mxu0
  %4594 = vmatprep.mubr.bf16.mxu0 0
  %4595 = vmatmul.mubr.bf16.gmra.mrb[0].mxu0 %v4284
  %v4596 = vpop.f32.mrb[0].mxu0
  %v4597 = vadd.f32 %v4312, %v4596
  %v4598 = vpop.f32.mrb[0].mxu0
  %v4599 = vpop.f32.mrb[0].mxu0
  %v4600 = vadd.f32 %v4312, %v4599
  %v4601 = vpop.f32.mrb[0].mxu0
  %4602 = vmatprep.mubr.bf16.mxu0 0
  %4603 = vmatmul.mubr.bf16.gmra.mrb[0].mxu0 %v4285
  %v4604 = vpop.f32.mrb[0].mxu0
  %v4605 = vadd.f32 %v4312, %v4604
  %v4606 = vpop.f32.mrb[0].mxu0
  %v4607 = vpop.f32.mrb[0].mxu0
  %v4608 = vadd.f32 %v4312, %v4607
  %v4609 = vpop.f32.mrb[0].mxu0
  %4610 = vmatprep.mubr.bf16.mxu0 0
  %4611 = vmatmul.mubr.bf16.gmra.mrb[0].mxu0 %v4286
  %v4612 = vpop.f32.mrb[0].mxu0
  %v4613 = vadd.f32 %v4312, %v4612
  %v4614 = vpop.f32.mrb[0].mxu0
  %v4615 = vpop.f32.mrb[0].mxu0
  %v4616 = vadd.f32 %v4312, %v4615
  %v4617 = vpop.f32.mrb[0].mxu0
  %4618 = vmatprep.mubr.bf16.mxu0 0
  %4619 = vmatmul.mubr.bf16.gmra.mrb[0].mxu0 %v4287
  %v4620 = vpop.f32.mrb[0].mxu0
  %v4621 = vadd.f32 %v4312, %v4620
  %v4622 = vpop.f32.mrb[0].mxu0
  %v4623 = vpop.f32.mrb[0].mxu0
  %v4624 = vadd.f32 %v4312, %v4623
  %v4625 = vpop.f32.mrb[0].mxu0
  %4626 = vmatprep.mubr.bf16.mxu0 0
  %4627 = vmatmul.mubr.bf16.gmra.mrb[0].mxu0 %v4288
  %v4628 = vpop.f32.mrb[0].mxu0
  %v4629 = vadd.f32 %v4312, %v4628
  %v4630 = vpop.f32.mrb[0].mxu0
  %v4631 = vpop.f32.mrb[0].mxu0
  %v4632 = vadd.f32 %v4312, %v4631
  %v4633 = vpop.f32.mrb[0].mxu0
  %4634 = vmatprep.mubr.bf16.mxu0 0
  %4635 = vmatmul.mubr.bf16.gmra.mrb[0].mxu0 %v4289
  %v4636 = vpop.f32.mrb[0].mxu0
  %v4637 = vadd.f32 %v4312, %v4636
  %v4638 = vpop.f32.mrb[0].mxu0
  %v4639 = vpop.f32.mrb[0].mxu0
  %v4640 = vadd.f32 %v4312, %v4639
  %v4641 = vpop.f32.mrb[0].mxu0
  %4642 = vmatprep.mubr.bf16.mxu0 0
  %4643 = vmatmul.mubr.bf16.gmra.mrb[0].mxu0 %v4290
  %v4644 = vpop.f32.mrb[0].mxu0
  %v4645 = vadd.f32 %v4312, %v4644
  %v4646 = vpop.f32.mrb[0].mxu0
  %v4647 = vpop.f32.mrb[0].mxu0
  %v4648 = vadd.f32 %v4312, %v4647
  %v4649 = vpop.f32.mrb[0].mxu0
  %4650 = vdwg.mxu0
  %v4651 = vadd.f32 %v4397, %v39
  %v4652 = vadd.f32 %v4400, %v40
  %v4653 = vadd.f32 %v4405, %v41
  %v4654 = vadd.f32 %v4408, %v42
  %v4655 = vadd.f32 %v4413, %v43
  %v4656 = vadd.f32 %v4416, %v44
  %v4657 = vadd.f32 %v4421, %v45
  %v4658 = vadd.f32 %v4424, %v46
  %v4659 = vadd.f32 %v4429, %v47
  %v4660 = vadd.f32 %v4432, %v48
  %v4661 = vadd.f32 %v4437, %v49
  %v4662 = vadd.f32 %v4440, %v50
  %v4663 = vadd.f32 %v4445, %v51
  %v4664 = vadd.f32 %v4448, %v52
  %v4665 = vadd.f32 %v4453, %v53
  %v4666 = vadd.f32 %v4456, %v54
  %v4667 = vadd.f32 %v4461, %v55
  %v4668 = vadd.f32 %v4464, %v56
  %v4669 = vadd.f32 %v4469, %v57
  %v4670 = vadd.f32 %v4472, %v58
  %v4671 = vadd.f32 %v4477, %v59
  %v4672 = vadd.f32 %v4480, %v60
  %v4673 = vadd.f32 %v4485, %v61
  %v4674 = vadd.f32 %v4488, %v62
  %v4675 = vadd.f32 %v4493, %v63
  %v4676 = vadd.f32 %v4496, %v64
  %v4677 = vadd.f32 %v4501, %v65
  %v4678 = vadd.f32 %v4504, %v66
  %v4679 = vadd.f32 %v4509, %v67
  %v4680 = vadd.f32 %v4512, %v68
  %v4681 = vadd.f32 %v4517, %v69
  %v4682 = vadd.f32 %v4520, %v70
  %v4683 = vadd.f32 %v4525, %v71
  %v4684 = vadd.f32 %v4528, %v72
  %v4685 = vadd.f32 %v4533, %v73
  %v4686 = vadd.f32 %v4536, %v74
  %v4687 = vadd.f32 %v4541, %v75
  %v4688 = vadd.f32 %v4544, %v76
  %v4689 = vadd.f32 %v4549, %v77
  %v4690 = vadd.f32 %v4552, %v78
  %v4691 = vadd.f32 %v4557, %v79
  %v4692 = vadd.f32 %v4560, %v80
  %v4693 = vadd.f32 %v4565, %v81
  %v4694 = vadd.f32 %v4568, %v82
  %v4695 = vadd.f32 %v4573, %v83
  %v4696 = vadd.f32 %v4576, %v84
  %v4697 = vadd.f32 %v4581, %v85
  %v4698 = vadd.f32 %v4584, %v86
  %v4699 = vadd.f32 %v4589, %v87
  %v4700 = vadd.f32 %v4592, %v88
  %v4701 = vadd.f32 %v4597, %v89
  %v4702 = vadd.f32 %v4600, %v90
  %v4703 = vadd.f32 %v4605, %v91
  %v4704 = vadd.f32 %v4608, %v92
  %v4705 = vadd.f32 %v4613, %v93
  %v4706 = vadd.f32 %v4616, %v94
  %v4707 = vadd.f32 %v4621, %v95
  %v4708 = vadd.f32 %v4624, %v96
  %v4709 = vadd.f32 %v4629, %v97
  %v4710 = vadd.f32 %v4632, %v98
  %v4711 = vadd.f32 %v4637, %v99
  %v4712 = vadd.f32 %v4640, %v100
  %v4713 = vadd.f32 %v4645, %v101
  %v4714 = vadd.f32 %v4648, %v102
  %4715 = vst.msk [vmem:[%s11] sm:$0xff] %vm158, %v4651
  %4716 = vst.msk [vmem:[%s11 + $0x8] sm:$0xff] %vm158, %v4652
  %4717 = vst.msk [vmem:[%s11 + $0x10] sm:$0xff] %vm158, %v4653
  %4718 = vst.msk [vmem:[%s11 + $0x18] sm:$0xff] %vm158, %v4654
  %4719 = vst.msk [vmem:[%s11 + $0x20] sm:$0xff] %vm158, %v4655
  %4720 = vst.msk [vmem:[%s11 + $0x28] sm:$0xff] %vm158, %v4656
  %4721 = vst.msk [vmem:[%s11 + $0x30] sm:$0xff] %vm158, %v4657
  %4722 = vst.msk [vmem:[%s11 + $0x38] sm:$0xff] %vm158, %v4658
  %4723 = vst.msk [vmem:[%s11 + $0x40] sm:$0xff] %vm158, %v4659
  %4724 = vst.msk [vmem:[%s11 + $0x48] sm:$0xff] %vm158, %v4660
  %4725 = vst.msk [vmem:[%s11 + $0x50] sm:$0xff] %vm158, %v4661
  %4726 = vst.msk [vmem:[%s11 + $0x58] sm:$0xff] %vm158, %v4662
  %4727 = vst.msk [vmem:[%s11 + $0x60] sm:$0xff] %vm158, %v4663
  %4728 = vst.msk [vmem:[%s11 + $0x68] sm:$0xff] %vm158, %v4664
  %4729 = vst.msk [vmem:[%s11 + $0x70] sm:$0xff] %vm158, %v4665
  %4730 = vst.msk [vmem:[%s11 + $0x78] sm:$0xff] %vm158, %v4666
  %4731 = vst.msk [vmem:[%s11 + $0x80] sm:$0xff] %vm158, %v4667
  %4732 = vst.msk [vmem:[%s11 + $0x88] sm:$0xff] %vm158, %v4668
  %4733 = vst.msk [vmem:[%s11 + $0x90] sm:$0xff] %vm158, %v4669
  %4734 = vst.msk [vmem:[%s11 + $0x98] sm:$0xff] %vm158, %v4670
  %4735 = vst.msk [vmem:[%s11 + $0xa0] sm:$0xff] %vm158, %v4671
  %4736 = vst.msk [vmem:[%s11 + $0xa8] sm:$0xff] %vm158, %v4672
  %4737 = vst.msk [vmem:[%s11 + $0xb0] sm:$0xff] %vm158, %v4673
  %4738 = vst.msk [vmem:[%s11 + $0xb8] sm:$0xff] %vm158, %v4674
  %4739 = vst.msk [vmem:[%s11 + $0xc0] sm:$0xff] %vm158, %v4675
  %4740 = vst.msk [vmem:[%s11 + $0xc8] sm:$0xff] %vm158, %v4676
  %4741 = vst.msk [vmem:[%s11 + $0xd0] sm:$0xff] %vm158, %v4677
  %4742 = vst.msk [vmem:[%s11 + $0xd8] sm:$0xff] %vm158, %v4678
  %4743 = vst.msk [vmem:[%s11 + $0xe0] sm:$0xff] %vm158, %v4679
  %4744 = vst.msk [vmem:[%s11 + $0xe8] sm:$0xff] %vm158, %v4680
  %4745 = vst.msk [vmem:[%s11 + $0xf0] sm:$0xff] %vm158, %v4681
  %4746 = vst.msk [vmem:[%s11 + $0xf8] sm:$0xff] %vm158, %v4682
  %4747 = vst.msk [vmem:[%s11 + $0x100] sm:$0xff] %vm158, %v4683
  %4748 = vst.msk [vmem:[%s11 + $0x108] sm:$0xff] %vm158, %v4684
  %4749 = vst.msk [vmem:[%s11 + $0x110] sm:$0xff] %vm158, %v4685
  %4750 = vst.msk [vmem:[%s11 + $0x118] sm:$0xff] %vm158, %v4686
  %4751 = vst.msk [vmem:[%s11 + $0x120] sm:$0xff] %vm158, %v4687
  %4752 = vst.msk [vmem:[%s11 + $0x128] sm:$0xff] %vm158, %v4688
  %4753 = vst.msk [vmem:[%s11 + $0x130] sm:$0xff] %vm158, %v4689
  %4754 = vst.msk [vmem:[%s11 + $0x138] sm:$0xff] %vm158, %v4690
  %4755 = vst.msk [vmem:[%s11 + $0x140] sm:$0xff] %vm158, %v4691
  %4756 = vst.msk [vmem:[%s11 + $0x148] sm:$0xff] %vm158, %v4692
  %4757 = vst.msk [vmem:[%s11 + $0x150] sm:$0xff] %vm158, %v4693
  %4758 = vst.msk [vmem:[%s11 + $0x158] sm:$0xff] %vm158, %v4694
  %4759 = vst.msk [vmem:[%s11 + $0x160] sm:$0xff] %vm158, %v4695
  %4760 = vst.msk [vmem:[%s11 + $0x168] sm:$0xff] %vm158, %v4696
  %4761 = vst.msk [vmem:[%s11 + $0x170] sm:$0xff] %vm158, %v4697
  %4762 = vst.msk [vmem:[%s11 + $0x178] sm:$0xff] %vm158, %v4698
  %4763 = vst.msk [vmem:[%s11 + $0x180] sm:$0xff] %vm158, %v4699
  %4764 = vst.msk [vmem:[%s11 + $0x188] sm:$0xff] %vm158, %v4700
  %4765 = vst.msk [vmem:[%s11 + $0x190] sm:$0xff] %vm158, %v4701
  %4766 = vst.msk [vmem:[%s11 + $0x198] sm:$0xff] %vm158, %v4702
  %4767 = vst.msk [vmem:[%s11 + $0x1a0] sm:$0xff] %vm158, %v4703
  %4768 = vst.msk [vmem:[%s11 + $0x1a8] sm:$0xff] %vm158, %v4704
  %4769 = vst.msk [vmem:[%s11 + $0x1b0] sm:$0xff] %vm158, %v4705
  %4770 = vst.msk [vmem:[%s11 + $0x1b8] sm:$0xff] %vm158, %v4706
  %4771 = vst.msk [vmem:[%s11 + $0x1c0] sm:$0xff] %vm158, %v4707
  %4772 = vst.msk [vmem:[%s11 + $0x1c8] sm:$0xff] %vm158, %v4708
  %4773 = vst.msk [vmem:[%s11 + $0x1d0] sm:$0xff] %vm158, %v4709
  %4774 = vst.msk [vmem:[%s11 + $0x1d8] sm:$0xff] %vm158, %v4710
  %4775 = vst.msk [vmem:[%s11 + $0x1e0] sm:$0xff] %vm158, %v4711
  %4776 = vst.msk [vmem:[%s11 + $0x1e8] sm:$0xff] %vm158, %v4712
  %4777 = vst.msk [vmem:[%s11 + $0x1f0] sm:$0xff] %vm158, %v4713
  %4778 = vst.msk [vmem:[%s11 + $0x1f8] sm:$0xff] %vm158, %v4714
  // Predicated region
  $region46: #{tpu_custom_call.1} parent=0 // pred_check
    _
  $region47: #{tpu_custom_call.1} parent=0 // pred_check_branch
    %4780 = sbr.rel (0) target = $region49
  $region48: #{tpu_custom_call.1} parent=0 // pred_region
    _
  $region49: #{tpu_custom_call.1} parent=0 // pred_fallthru
    _
  // Predicated region
  $region50: #{tpu_custom_call.1} parent=0 // pred_check
    _
  $region51: #{tpu_custom_call.1} parent=0 // pred_check_branch
    %4782 = sbr.rel (0) target = $region53
  $region52: #{tpu_custom_call.1} parent=0 // pred_region
    _
  $region53: #{tpu_custom_call.1} parent=0 // pred_fallthru
    _

</llo_original>
